<compile_context>
chip_gen: v7x
topology: tpu7x:2x2x1
jax: 0.10.0
libtpu: 0.0.40
codegen_flags: <defaults>
</compile_context>

<pallas_src>
import functools
import math

import jax
import jax.numpy as jnp
from jax.experimental import pallas as pl
from jax.experimental.pallas import tpu as pltpu


_CFG = {"single_buffer_weights": True}


# -----------------------------------------------------------------------------
# Helpers: tiling, VMEM budgeting, resident-weight specs
# -----------------------------------------------------------------------------
def _pick_row_tile(n, max_tile=256, align=8):
    """Largest divisor of n (multiple of align, <= max_tile); prefer >=2 blocks (v7x megacore)."""
    cands = [t for t in range(align, min(n, max_tile) + 1, align) if n % t == 0]
    if not cands:
        return n
    multi = [t for t in cands if n // t >= 2]
    return max(multi) if multi else max(cands)


def _pick_col_tile(n, max_tile=512, align=128):
    """Largest divisor of n that is a multiple of 128 and <= max_tile; else the full dim."""
    cands = [t for t in range(align, min(n, max_tile) + 1, align) if n % t == 0]
    return max(cands) if cands else n


def _est_vmem(entries):
    """entries: iterable of (block_shape, dtype, n_buffers) -> rough VMEM byte count."""
    total = 0
    for shape, dtype, bufs in entries:
        total += math.prod(shape) * jnp.dtype(dtype).itemsize * bufs
    return total


def _compiler_params(dims, est_vmem_bytes):
    # Explicit scoped-VMEM budget (defaults are only 16/32 MiB); keep headroom under v7x's 64 MiB.
    limit = int(min(max(2 * est_vmem_bytes, 32 << 20), 56 << 20))
    return pltpu.CompilerParams(dimension_semantics=dims, vmem_limit_bytes=limit)


def _weight_spec(block_shape, index_map):
    """BlockSpec for a grid-constant resident weight: single-buffered (no wasted second copy)."""
    if _CFG["single_buffer_weights"]:
        return pl.BlockSpec(block_shape, index_map, pipeline_mode=pl.Buffered(1))
    return pl.BlockSpec(block_shape, index_map)


# -----------------------------------------------------------------------------
# Kernel 1: fused QKV projection   q,k,v = split(x @ Wqkv + b)
# -----------------------------------------------------------------------------
def _qkv_kernel(x_ref, w_ref, b_ref, q_ref, k_ref, v_ref, *, d_model):
    x = x_ref[0]                                                          # (ts, D) bf16
    y = jnp.dot(x, w_ref[...], preferred_element_type=jnp.float32) + b_ref[...]
    q_ref[0] = y[:, :d_model].astype(q_ref.dtype)
    k_ref[0] = y[:, d_model:2 * d_model].astype(k_ref.dtype)
    v_ref[0] = y[:, 2 * d_model:].astype(v_ref.dtype)


def qkv_projection(x, w, b):
    """x:(B,S,D) bf16, w:(D,3D) bf16 pre-transposed, b:(1,3D) f32 -> q,k,v each (B,S,D) bf16."""
    B, S, D = x.shape
    ts = _pick_row_tile(S)
    est = _est_vmem([
        ((1, ts, D), x.dtype, 2), (w.shape, w.dtype, 1), (b.shape, b.dtype, 2),
        ((1, ts, D), x.dtype, 6),                       # 3 outputs, double-buffered
    ])
    out = jax.ShapeDtypeStruct((B, S, D), x.dtype)
    act = lambda: pl.BlockSpec((1, ts, D), lambda bi, si: (bi, si, 0))
    return pl.pallas_call(
        functools.partial(_qkv_kernel, d_model=D),
        out_shape=(out, out, out),
        grid=(B, S // ts),
        in_specs=[
            act(),
            _weight_spec((D, 3 * D), lambda bi, si: (0, 0)),     # resident, single-buffered
            pl.BlockSpec((1, 3 * D), lambda bi, si: (0, 0)),
        ],
        out_specs=(act(), act(), act()),
        compiler_params=_compiler_params(("parallel", "parallel"), est),
    )(x, w, b)


# -----------------------------------------------------------------------------
# Kernel 2: flash attention, all heads per invocation, lane-dense (tq, D) output
# -----------------------------------------------------------------------------
def _flash_attn_kernel(q_ref, k_ref, v_ref, o_ref, m_sc, l_sc, acc_sc, *, nhead, head_dim):
    kv = pl.program_id(2)

    @pl.when(kv == 0)
    def _():
        m_sc[...] = jnp.full_like(m_sc, -jnp.inf)
        l_sc[...] = jnp.zeros_like(l_sc)
        acc_sc[...] = jnp.zeros_like(acc_sc)

    q = q_ref[0]                       # (tq, D) bf16 — softmax scale pre-folded into Wq
    k = k_ref[0]                       # (tk, D) bf16
    v = v_ref[0]                       # (tk, D) bf16

    for h in range(nhead):             # static unroll: all heads of this (batch, q-tile) block
        sl = slice(h * head_dim, (h + 1) * head_dim)
        s = jax.lax.dot_general(q[:, sl], k[:, sl], (((1,), (1,)), ((), ())),
                                preferred_element_type=jnp.float32)       # (tq, tk) f32
        m_prev = m_sc[h]
        m_new = jnp.maximum(m_prev, s.max(axis=-1, keepdims=True))
        alpha = jnp.exp(m_prev - m_new)
        p = jnp.exp(s - m_new)
        l_sc[h] = alpha * l_sc[h] + p.sum(axis=-1, keepdims=True)
        acc_sc[h] = alpha * acc_sc[h] + jnp.dot(p.astype(v.dtype), v[:, sl],
                                                preferred_element_type=jnp.float32)
        m_sc[h] = m_new

    @pl.when(kv == pl.num_programs(2) - 1)
    def _():
        # One lane-dense (tq, D) store instead of per-head Dh-wide masked stores.
        parts = [acc_sc[h] * pl.reciprocal(l_sc[h], approx=False) for h in range(nhead)]
        o_ref[0] = jnp.concatenate(parts, axis=-1).astype(o_ref.dtype)


def flash_attention(q, k, v, nhead):
    """softmax(q k^T) v per head; q,k,v:(B,S,D) with heads packed along D. Output (B,S,D)."""
    B, S, D = q.shape
    head_dim = D // nhead
    tq = _pick_row_tile(S, max_tile=256)
    tk = _pick_row_tile(S, max_tile=256)
    est = _est_vmem([
        ((1, tq, D), q.dtype, 2), ((1, tk, D), k.dtype, 4), ((1, tq, D), q.dtype, 2),
        ((nhead, tq, 1), jnp.float32, 2), ((nhead, tq, head_dim), jnp.float32, 1),
        ((tq, tk), jnp.float32, 2 * nhead),             # transient s / p per head
    ])
    return pl.pallas_call(
        functools.partial(_flash_attn_kernel, nhead=nhead, head_dim=head_dim),
        out_shape=jax.ShapeDtypeStruct((B, S, D), q.dtype),
        grid=(B, S // tq, S // tk),
        in_specs=[
            pl.BlockSpec((1, tq, D), lambda b, i, j: (b, i, 0)),
            pl.BlockSpec((1, tk, D), lambda b, i, j: (b, j, 0)),
            pl.BlockSpec((1, tk, D), lambda b, i, j: (b, j, 0)),
        ],
        out_specs=pl.BlockSpec((1, tq, D), lambda b, i, j: (b, i, 0)),
        scratch_shapes=[
            pltpu.VMEM((nhead, tq, 1), jnp.float32),          # running max (per head)
            pltpu.VMEM((nhead, tq, 1), jnp.float32),          # running sum (per head)
            pltpu.VMEM((nhead, tq, head_dim), jnp.float32),   # output accumulator
        ],
        compiler_params=_compiler_params(("parallel", "parallel", "arbitrary"), est),
    )(q, k, v)


# -----------------------------------------------------------------------------
# Kernel 3: out_proj + residual + LN1, then FFN (nhid-tiled K loop) + residual + LN2
# -----------------------------------------------------------------------------
def _mlp_block_kernel(attn_ref, res_ref, wo_ref, bo_ref, w1_ref, b1_ref, w2_ref, b2_ref,
                      g1_ref, bb1_ref, g2_ref, bb2_ref, o_ref, x1_sc, acc_sc, *, eps):
    kh = pl.program_id(1)

    @pl.when(kh == 0)
    def _():
        # out_proj + residual + LayerNorm1, computed once per row tile.
        y = jnp.dot(attn_ref[...], wo_ref[...], preferred_element_type=jnp.float32) + bo_ref[...]
        x = y + res_ref[...].astype(jnp.float32)
        mean = jnp.mean(x, axis=-1, keepdims=True)
        var = jnp.mean(jnp.square(x - mean), axis=-1, keepdims=True)
        x1 = (x - mean) * jax.lax.rsqrt(var + eps) * g1_ref[...] + bb1_ref[...]
        x1_sc[...] = x1.astype(x1_sc.dtype)
        acc_sc[...] = jnp.zeros_like(acc_sc)

    # FFN partial sum over the current nhid tile: relu(x1 @ W1[:, kh] + b1[kh]) @ W2[kh, :]
    h = jnp.dot(x1_sc[...], w1_ref[...], preferred_element_type=jnp.float32) + b1_ref[...]
    h = jnp.maximum(h, 0.0).astype(w2_ref.dtype)
    acc_sc[...] += jnp.dot(h, w2_ref[...], preferred_element_type=jnp.float32)

    @pl.when(kh == pl.num_programs(1) - 1)
    def _():
        # + bias2 + residual (post-LN1 activation) + LayerNorm2.  LN params only touched here,
        # outside the nhid K loop, so their broadcasts are not re-emitted per K step.
        z = acc_sc[...] + b2_ref[...] + x1_sc[...].astype(jnp.float32)
        mean = jnp.mean(z, axis=-1, keepdims=True)
        var = jnp.mean(jnp.square(z - mean), axis=-1, keepdims=True)
        o_ref[...] = ((z - mean) * jax.lax.rsqrt(var + eps) * g2_ref[...]
                      + bb2_ref[...]).astype(o_ref.dtype)


def mlp_block(attn, res, wo, bo, w1, b1, w2, b2, g1, bb1, g2, bb2, eps=1e-5):
    """LN2(x1 + lin2(relu(lin1(x1)))) with x1 = LN1(attn @ wo + bo + res).  attn,res:(N,D)."""
    N, D = attn.shape
    nhid = w1.shape[1]
    tm = _pick_row_tile(N)
    tkh = _pick_col_tile(nhid)
    est = _est_vmem([
        ((tm, D), attn.dtype, 4), ((D, D), wo.dtype, 1),
        ((D, tkh), w1.dtype, 2), ((tkh, D), w2.dtype, 2),
        ((1, tkh), b1.dtype, 2), ((1, D), jnp.float32, 12),
        ((tm, D), attn.dtype, 2),                               # output
        ((tm, D), jnp.float32, 1), ((tm, D), attn.dtype, 1),    # scratch
        ((tm, tkh), jnp.float32, 2),                            # hidden intermediate
    ])
    row = lambda i, k_: (i, 0)
    const = lambda i, k_: (0, 0)
    return pl.pallas_call(
        functools.partial(_mlp_block_kernel, eps=eps),
        out_shape=jax.ShapeDtypeStruct((N, D), attn.dtype),
        grid=(N // tm, nhid // tkh),
        in_specs=[
            pl.BlockSpec((tm, D), row),                       # attention output
            pl.BlockSpec((tm, D), row),                       # residual (layer input)
            _weight_spec((D, D), const),                      # Wo (resident, single-buffered)
            pl.BlockSpec((1, D), const),                      # bo
            pl.BlockSpec((D, tkh), lambda i, k_: (0, k_)),    # W1 tile over nhid
            pl.BlockSpec((1, tkh), lambda i, k_: (0, k_)),    # b1 tile
            pl.BlockSpec((tkh, D), lambda i, k_: (k_, 0)),    # W2 tile over nhid
            pl.BlockSpec((1, D), const),                      # b2
            pl.BlockSpec((1, D), const),                      # ln1 gamma
            pl.BlockSpec((1, D), const),                      # ln1 beta
            pl.BlockSpec((1, D), const),                      # ln2 gamma
            pl.BlockSpec((1, D), const),                      # ln2 beta
        ],
        out_specs=pl.BlockSpec((tm, D), row),
        scratch_shapes=[
            pltpu.VMEM((tm, D), attn.dtype),     # x1 (post-LN1): bf16 MXU operand + FFN residual
            pltpu.VMEM((tm, D), jnp.float32),    # FFN accumulator over nhid tiles
        ],
        compiler_params=_compiler_params(("parallel", "arbitrary"), est),
    )(attn, res, wo, bo, w1, b1, w2, b2, g1, bb1, g2, bb2)


# -----------------------------------------------------------------------------
# Parameter construction (deterministic, synthetic).
# Weights are pre-transposed to (Din, Dout) and cast to bf16 (MXU operands);
# biases / LN params stay f32 (elementwise path).  The 1/sqrt(Dh) softmax scale
# is folded into the Q projection columns at prep time.
# -----------------------------------------------------------------------------
def init_params(key, ninp, nhead, nhid, nlayers):
    head_dim = ninp // nhead
    scale = 1.0 / math.sqrt(head_dim)
    params = []
    for _ in range(nlayers):
        key, k0, k1, k2, k3 = jax.random.split(key, 5)
        in_proj_w = 0.02 * jax.random.normal(k0, (ninp, 3 * ninp), jnp.float32)
        in_proj_b = jnp.zeros((1, 3 * ninp), jnp.float32)
        in_proj_w = in_proj_w.at[:, :ninp].multiply(scale)   # fold softmax scale into Wq
        in_proj_b = in_proj_b.at[:, :ninp].multiply(scale)   # ... and bq
        params.append({
            "in_proj_w": in_proj_w.astype(jnp.bfloat16),
            "in_proj_b": in_proj_b,
            "out_proj_w": (0.02 * jax.random.normal(k1, (ninp, ninp), jnp.float32)
                           ).astype(jnp.bfloat16),
            "out_proj_b": jnp.zeros((1, ninp), jnp.float32),
            "lin1_w": (0.02 * jax.random.normal(k2, (ninp, nhid), jnp.float32)
                       ).astype(jnp.bfloat16),
            "lin1_b": jnp.zeros((1, nhid), jnp.float32),
            "lin2_w": (0.02 * jax.random.normal(k3, (nhid, ninp), jnp.float32)
                       ).astype(jnp.bfloat16),
            "lin2_b": jnp.zeros((1, ninp), jnp.float32),
            "ln1_g": jnp.ones((1, ninp), jnp.float32),
            "ln1_b": jnp.zeros((1, ninp), jnp.float32),
            "ln2_g": jnp.ones((1, ninp), jnp.float32),
            "ln2_b": jnp.zeros((1, ninp), jnp.float32),
        })
    return params


# -----------------------------------------------------------------------------
# Forward pass (thin JAX glue, compute in 3 Pallas kernels per layer)
# -----------------------------------------------------------------------------
def encoder_layer_forward(x, p, nhead):
    # x: (B, S, D) bf16
    B, S, D = x.shape
    N = B * S
    q, k, v = qkv_projection(x, p["in_proj_w"], p["in_proj_b"])
    attn = flash_attention(q, k, v, nhead)                 # (B, S, D), heads packed along D
    out = mlp_block(attn.reshape(N, D), x.reshape(N, D),
                    p["out_proj_w"], p["out_proj_b"],
                    p["lin1_w"], p["lin1_b"], p["lin2_w"], p["lin2_b"],
                    p["ln1_g"], p["ln1_b"], p["ln2_g"], p["ln2_b"])
    return out.reshape(B, S, D)


def transformer_model_forward(src, params, nhead):
    # src: (S, B, D) f32 (PyTorch batch_first=False).  One transpose in / one out for the whole
    # stack; layers run in (B, S, D) so attention needs no per-layer head split/merge transposes.
    x = jnp.transpose(src, (1, 0, 2)).astype(jnp.bfloat16)
    for p in params:
        x = encoder_layer_forward(x, p, nhead)
    return jnp.transpose(x, (1, 0, 2)).astype(src.dtype)


# -----------------------------------------------------------------------------
if __name__ == "__main__":
    # Small shapes implied by the module's forward: src is (seq, batch, ninp).
    ninp, nhead, nhid, nlayers = 32, 4, 64, 2
    seq_len, batch = 8, 2

    key = jax.random.PRNGKey(0)
    key, pkey, xkey = jax.random.split(key, 3)

    params = init_params(pkey, ninp, nhead, nhid, nlayers)
    src = jax.random.normal(xkey, (seq_len, batch, ninp), jnp.float32)

    def run():
        fwd = jax.jit(functools.partial(transformer_model_forward, nhead=nhead))
        return jax.block_until_ready(fwd(src, params))

    try:
        out = run()
    except Exception:
        # Fallback for jax builds that reject pipeline_mode=pl.Buffered(1) on pallas_call specs:
        # rerun with default double-buffered resident weights (correctness unchanged).
        _CFG["single_buffer_weights"] = False
        out = run()

    assert out.shape == (seq_len, batch, ninp)
    assert bool(jnp.all(jnp.isfinite(out)))
    print("KERNEL_OK")
</pallas_src>

<mosaic_0001>
module attributes {stable_mosaic.version = 11 : i64} {
  func.func @_qkv_kernel(%arg0: i32, %arg1: i32, %arg2: memref<1x8x32xbf16, #tpu.memory_space<vmem>>, %arg3: memref<32x96xbf16, #tpu.memory_space<vmem>>, %arg4: memref<1x96xf32, #tpu.memory_space<vmem>>, %arg5: memref<1x8x32xbf16, #tpu.memory_space<vmem>>, %arg6: memref<1x8x32xbf16, #tpu.memory_space<vmem>>, %arg7: memref<1x8x32xbf16, #tpu.memory_space<vmem>>) attributes {dimension_semantics = [#tpu.dimension_semantics<parallel>, #tpu.dimension_semantics<parallel>], iteration_bounds = array<i64: 2, 1>, scalar_prefetch = 0 : i64, scratch_operands = 0 : i64, tpu.core_type = #tpu.core_type<tc>, window_params = [{transform_indices = @transform_0, window_bounds = array<i64: 1, 8, 32>}, {pipeline_mode = #tpu.pipeline_mode<synchronous>, transform_indices = @transform_1, window_bounds = array<i64: 32, 96>}, {pipeline_mode = #tpu.pipeline_mode<synchronous>, transform_indices = @transform_2, window_bounds = array<i64: 1, 96>}, {transform_indices = @transform_3, window_bounds = array<i64: 1, 8, 32>}, {transform_indices = @transform_4, window_bounds = array<i64: 1, 8, 32>}, {transform_indices = @transform_5, window_bounds = array<i64: 1, 8, 32>}]} {
    %c0 = arith.constant 0 : index
    %c0_0 = arith.constant 0 : index
    %c0_1 = arith.constant 0 : index
    %0 = vector.load %arg2[%c0, %c0_0, %c0_1] : memref<1x8x32xbf16, #tpu.memory_space<vmem>>, vector<1x8x32xbf16>
    %1 = vector.shape_cast %0 : vector<1x8x32xbf16> to vector<8x32xbf16>
    %c0_2 = arith.constant 0 : index
    %c0_3 = arith.constant 0 : index
    %2 = vector.load %arg3[%c0_2, %c0_3] : memref<32x96xbf16, #tpu.memory_space<vmem>>, vector<32x96xbf16>
    %cst = arith.constant dense<0.000000e+00> : vector<8x96xf32>
    %3 = tpu.matmul %1, %2, %cst {dimension_numbers = #tpu.dot_dimension_numbers<[1], [0], [0], [1], [0, 0, 1, 1], [], []>} : vector<8x32xbf16>, vector<32x96xbf16>, vector<8x96xf32> -> vector<8x96xf32>
    %c0_4 = arith.constant 0 : index
    %c0_5 = arith.constant 0 : index
    %4 = vector.load %arg4[%c0_4, %c0_5] : memref<1x96xf32, #tpu.memory_space<vmem>>, vector<1x96xf32>
    %5 = vector.broadcast %4 : vector<1x96xf32> to vector<8x96xf32>
    %6 = arith.addf %3, %5 : vector<8x96xf32>
    %7 = vector.extract_strided_slice %6 {offsets = [0, 0], sizes = [8, 32], strides = [1, 1]} : vector<8x96xf32> to vector<8x32xf32>
    %8 = arith.truncf %7 : vector<8x32xf32> to vector<8x32xbf16>
    %c0_6 = arith.constant 0 : index
    %c0_7 = arith.constant 0 : index
    %c0_8 = arith.constant 0 : index
    %9 = vector.load %arg5[%c0_6, %c0_7, %c0_8] : memref<1x8x32xbf16, #tpu.memory_space<vmem>>, vector<1x8x32xbf16>
    %10 = vector.shape_cast %9 : vector<1x8x32xbf16> to vector<8x32xbf16>
    %11 = vector.shape_cast %8 : vector<8x32xbf16> to vector<1x8x32xbf16>
    tpu.vector_store %arg5[%c0_6, %c0_7, %c0_8], %11 {strides = array<i32>} : memref<1x8x32xbf16, #tpu.memory_space<vmem>>, vector<1x8x32xbf16>,
    %12 = vector.extract_strided_slice %6 {offsets = [0, 32], sizes = [8, 32], strides = [1, 1]} : vector<8x96xf32> to vector<8x32xf32>
    %13 = arith.truncf %12 : vector<8x32xf32> to vector<8x32xbf16>
    %c0_9 = arith.constant 0 : index
    %c0_10 = arith.constant 0 : index
    %c0_11 = arith.constant 0 : index
    %14 = vector.load %arg6[%c0_9, %c0_10, %c0_11] : memref<1x8x32xbf16, #tpu.memory_space<vmem>>, vector<1x8x32xbf16>
    %15 = vector.shape_cast %14 : vector<1x8x32xbf16> to vector<8x32xbf16>
    %16 = vector.shape_cast %13 : vector<8x32xbf16> to vector<1x8x32xbf16>
    tpu.vector_store %arg6[%c0_9, %c0_10, %c0_11], %16 {strides = array<i32>} : memref<1x8x32xbf16, #tpu.memory_space<vmem>>, vector<1x8x32xbf16>,
    %17 = vector.extract_strided_slice %6 {offsets = [0, 64], sizes = [8, 32], strides = [1, 1]} : vector<8x96xf32> to vector<8x32xf32>
    %18 = arith.truncf %17 : vector<8x32xf32> to vector<8x32xbf16>
    %c0_12 = arith.constant 0 : index
    %c0_13 = arith.constant 0 : index
    %c0_14 = arith.constant 0 : index
    %19 = vector.load %arg7[%c0_12, %c0_13, %c0_14] : memref<1x8x32xbf16, #tpu.memory_space<vmem>>, vector<1x8x32xbf16>
    %20 = vector.shape_cast %19 : vector<1x8x32xbf16> to vector<8x32xbf16>
    %21 = vector.shape_cast %18 : vector<8x32xbf16> to vector<1x8x32xbf16>
    tpu.vector_store %arg7[%c0_12, %c0_13, %c0_14], %21 {strides = array<i32>} : memref<1x8x32xbf16, #tpu.memory_space<vmem>>, vector<1x8x32xbf16>,
    return
  }
  func.func @transform_0(%arg0: i32, %arg1: i32) -> (i32, i32, i32) {
    %c0_i32 = arith.constant 0 : i32
    %c0_i32_0 = arith.constant 0 : i32
    return %arg0, %arg1, %c0_i32 : i32, i32, i32
  }
  func.func @transform_1(%arg0: i32, %arg1: i32) -> (i32, i32) {
    %c0_i32 = arith.constant 0 : i32
    %c0_i32_0 = arith.constant 0 : i32
    %c0_i32_1 = arith.constant 0 : i32
    return %c0_i32, %c0_i32_0 : i32, i32
  }
  func.func @transform_2(%arg0: i32, %arg1: i32) -> (i32, i32) {
    %c0_i32 = arith.constant 0 : i32
    %c0_i32_0 = arith.constant 0 : i32
    %c0_i32_1 = arith.constant 0 : i32
    return %c0_i32, %c0_i32_0 : i32, i32
  }
  func.func @transform_3(%arg0: i32, %arg1: i32) -> (i32, i32, i32) {
    %c0_i32 = arith.constant 0 : i32
    %c0_i32_0 = arith.constant 0 : i32
    return %arg0, %arg1, %c0_i32 : i32, i32, i32
  }
  func.func @transform_4(%arg0: i32, %arg1: i32) -> (i32, i32, i32) {
    %c0_i32 = arith.constant 0 : i32
    %c0_i32_0 = arith.constant 0 : i32
    return %arg0, %arg1, %c0_i32 : i32, i32, i32
  }
  func.func @transform_5(%arg0: i32, %arg1: i32) -> (i32, i32, i32) {
    %c0_i32 = arith.constant 0 : i32
    %c0_i32_0 = arith.constant 0 : i32
    return %arg0, %arg1, %c0_i32 : i32, i32, i32
  }
}

module attributes {stable_mosaic.version = 11 : i64} {
  func.func @_mlp_block_kernel(%arg0: i32, %arg1: i32, %arg2: memref<8x32xbf16, #tpu.memory_space<vmem>>, %arg3: memref<8x32xbf16, #tpu.memory_space<vmem>>, %arg4: memref<32x32xbf16, #tpu.memory_space<vmem>>, %arg5: memref<1x32xf32, #tpu.memory_space<vmem>>, %arg6: memref<32x64xbf16, #tpu.memory_space<vmem>>, %arg7: memref<1x64xf32, #tpu.memory_space<vmem>>, %arg8: memref<64x32xbf16, #tpu.memory_space<vmem>>, %arg9: memref<1x32xf32, #tpu.memory_space<vmem>>, %arg10: memref<1x32xf32, #tpu.memory_space<vmem>>, %arg11: memref<1x32xf32, #tpu.memory_space<vmem>>, %arg12: memref<1x32xf32, #tpu.memory_space<vmem>>, %arg13: memref<1x32xf32, #tpu.memory_space<vmem>>, %arg14: memref<8x32xbf16, #tpu.memory_space<vmem>>, %arg15: memref<8x32xbf16, #tpu.memory_space<vmem>>, %arg16: memref<8x32xf32, #tpu.memory_space<vmem>>) attributes {dimension_semantics = [#tpu.dimension_semantics<parallel>, #tpu.dimension_semantics<arbitrary>], iteration_bounds = array<i64: 2, 1>, scalar_prefetch = 0 : i64, scratch_operands = 2 : i64, tpu.core_type = #tpu.core_type<tc>, window_params = [{transform_indices = @transform_0, window_bounds = array<i64: 8, 32>}, {transform_indices = @transform_1, window_bounds = array<i64: 8, 32>}, {pipeline_mode = #tpu.pipeline_mode<synchronous>, transform_indices = @transform_2, window_bounds = array<i64: 32, 32>}, {pipeline_mode = #tpu.pipeline_mode<synchronous>, transform_indices = @transform_3, window_bounds = array<i64: 1, 32>}, {transform_indices = @transform_4, window_bounds = array<i64: 32, 64>}, {transform_indices = @transform_5, window_bounds = array<i64: 1, 64>}, {transform_indices = @transform_6, window_bounds = array<i64: 64, 32>}, {pipeline_mode = #tpu.pipeline_mode<synchronous>, transform_indices = @transform_7, window_bounds = array<i64: 1, 32>}, {pipeline_mode = #tpu.pipeline_mode<synchronous>, transform_indices = @transform_8, window_bounds = array<i64: 1, 32>}, {pipeline_mode = #tpu.pipeline_mode<synchronous>, transform_indices = @transform_9, window_bounds = array<i64: 1, 32>}, {pipeline_mode = #tpu.pipeline_mode<synchronous>, transform_indices = @transform_10, window_bounds = array<i64: 1, 32>}, {pipeline_mode = #tpu.pipeline_mode<synchronous>, transform_indices = @transform_11, window_bounds = array<i64: 1, 32>}, {transform_indices = @transform_12, window_bounds = array<i64: 8, 32>}]} {
    %c0_i32 = arith.constant 0 : i32
    %0 = arith.cmpi eq, %arg1, %c0_i32 : i32
    %1 = arith.extui %0 : i1 to i32
    %c0_i32_0 = arith.constant 0 : i32
    %2 = arith.cmpi ne, %1, %c0_i32_0 : i32
    scf.if %2 {
      %c0_16 = arith.constant 0 : index
      %c0_17 = arith.constant 0 : index
      %20 = vector.load %arg2[%c0_16, %c0_17] : memref<8x32xbf16, #tpu.memory_space<vmem>>, vector<8x32xbf16>
      %c0_18 = arith.constant 0 : index
      %c0_19 = arith.constant 0 : index
      %21 = vector.load %arg4[%c0_18, %c0_19] : memref<32x32xbf16, #tpu.memory_space<vmem>>, vector<32x32xbf16>
      %cst_20 = arith.constant dense<0.000000e+00> : vector<8x32xf32>
      %22 = tpu.matmul %20, %21, %cst_20 {dimension_numbers = #tpu.dot_dimension_numbers<[1], [0], [0], [1], [0, 0, 1, 1], [], []>} : vector<8x32xbf16>, vector<32x32xbf16>, vector<8x32xf32> -> vector<8x32xf32>
      %c0_21 = arith.constant 0 : index
      %c0_22 = arith.constant 0 : index
      %23 = vector.load %arg5[%c0_21, %c0_22] : memref<1x32xf32, #tpu.memory_space<vmem>>, vector<1x32xf32>
      %24 = vector.broadcast %23 : vector<1x32xf32> to vector<8x32xf32>
      %25 = arith.addf %22, %24 : vector<8x32xf32>
      %c0_23 = arith.constant 0 : index
      %c0_24 = arith.constant 0 : index
      %26 = vector.load %arg3[%c0_23, %c0_24] : memref<8x32xbf16, #tpu.memory_space<vmem>>, vector<8x32xbf16>
      %27 = arith.extf %26 : vector<8x32xbf16> to vector<8x32xf32>
      %28 = arith.addf %25, %27 : vector<8x32xf32>
      %cst_25 = arith.constant dense<0.000000e+00> : vector<8xf32>
      %29 = vector.multi_reduction <add>, %28, %cst_25 [1] : vector<8x32xf32> to vector<8xf32>
      %30 = vector.shape_cast %29 : vector<8xf32> to vector<8x1xf32>
      %cst_26 = arith.constant 3.200000e+01 : f32
      %31 = vector.broadcast %cst_26 : f32 to vector<8x1xf32>
      %32 = arith.divf %30, %31 : vector<8x1xf32>
      %33 = vector.broadcast %32 : vector<8x1xf32> to vector<8x32xf32>
      %34 = arith.subf %28, %33 : vector<8x32xf32>
      %35 = arith.mulf %34, %34 : vector<8x32xf32>
      %cst_27 = arith.constant dense<0.000000e+00> : vector<8xf32>
      %36 = vector.multi_reduction <add>, %35, %cst_27 [1] : vector<8x32xf32> to vector<8xf32>
      %37 = vector.shape_cast %36 : vector<8xf32> to vector<8x1xf32>
      %cst_28 = arith.constant 3.200000e+01 : f32
      %38 = vector.broadcast %cst_28 : f32 to vector<8x1xf32>
      %39 = arith.divf %37, %38 : vector<8x1xf32>
      %40 = vector.broadcast %32 : vector<8x1xf32> to vector<8x32xf32>
      %41 = arith.subf %28, %40 : vector<8x32xf32>
      %cst_29 = arith.constant 9.99999974E-6 : f32
      %42 = vector.broadcast %cst_29 : f32 to vector<8x1xf32>
      %43 = arith.addf %39, %42 : vector<8x1xf32>
      %44 = math.rsqrt %43 : vector<8x1xf32>
      %45 = vector.broadcast %44 : vector<8x1xf32> to vector<8x32xf32>
      %46 = arith.mulf %41, %45 : vector<8x32xf32>
      %c0_30 = arith.constant 0 : index
      %c0_31 = arith.constant 0 : index
      %47 = vector.load %arg10[%c0_30, %c0_31] : memref<1x32xf32, #tpu.memory_space<vmem>>, vector<1x32xf32>
      %48 = vector.broadcast %47 : vector<1x32xf32> to vector<8x32xf32>
      %49 = arith.mulf %46, %48 : vector<8x32xf32>
      %c0_32 = arith.constant 0 : index
      %c0_33 = arith.constant 0 : index
      %50 = vector.load %arg11[%c0_32, %c0_33] : memref<1x32xf32, #tpu.memory_space<vmem>>, vector<1x32xf32>
      %51 = vector.broadcast %50 : vector<1x32xf32> to vector<8x32xf32>
      %52 = arith.addf %49, %51 : vector<8x32xf32>
      %53 = arith.truncf %52 : vector<8x32xf32> to vector<8x32xbf16>
      %c0_34 = arith.constant 0 : index
      %c0_35 = arith.constant 0 : index
      %54 = vector.load %arg15[%c0_34, %c0_35] : memref<8x32xbf16, #tpu.memory_space<vmem>>, vector<8x32xbf16>
      tpu.vector_store %arg15[%c0_34, %c0_35], %53 {strides = array<i32>} : memref<8x32xbf16, #tpu.memory_space<vmem>>, vector<8x32xbf16>,
      %cst_36 = arith.constant 0.000000e+00 : f32
      %55 = vector.broadcast %cst_36 : f32 to vector<8x32xf32>
      %c0_37 = arith.constant 0 : index
      %c0_38 = arith.constant 0 : index
      %56 = vector.load %arg16[%c0_37, %c0_38] : memref<8x32xf32, #tpu.memory_space<vmem>>, vector<8x32xf32>
      tpu.vector_store %arg16[%c0_37, %c0_38], %55 {strides = array<i32>} : memref<8x32xf32, #tpu.memory_space<vmem>>, vector<8x32xf32>,
    } else {
    }
    %c0 = arith.constant 0 : index
    %c0_1 = arith.constant 0 : index
    %3 = vector.load %arg15[%c0, %c0_1] : memref<8x32xbf16, #tpu.memory_space<vmem>>, vector<8x32xbf16>
    %c0_2 = arith.constant 0 : index
    %c0_3 = arith.constant 0 : index
    %4 = vector.load %arg6[%c0_2, %c0_3] : memref<32x64xbf16, #tpu.memory_space<vmem>>, vector<32x64xbf16>
    %cst = arith.constant dense<0.000000e+00> : vector<8x64xf32>
    %5 = tpu.matmul %3, %4, %cst {dimension_numbers = #tpu.dot_dimension_numbers<[1], [0], [0], [1], [0, 0, 1, 1], [], []>} : vector<8x32xbf16>, vector<32x64xbf16>, vector<8x64xf32> -> vector<8x64xf32>
    %c0_4 = arith.constant 0 : index
    %c0_5 = arith.constant 0 : index
    %6 = vector.load %arg7[%c0_4, %c0_5] : memref<1x64xf32, #tpu.memory_space<vmem>>, vector<1x64xf32>
    %7 = vector.broadcast %6 : vector<1x64xf32> to vector<8x64xf32>
    %8 = arith.addf %5, %7 : vector<8x64xf32>
    %cst_6 = arith.constant 0.000000e+00 : f32
    %9 = vector.broadcast %cst_6 : f32 to vector<8x64xf32>
    %10 = arith.maximumf %8, %9 : vector<8x64xf32>
    %11 = arith.truncf %10 : vector<8x64xf32> to vector<8x64xbf16>
    %c0_7 = arith.constant 0 : index
    %c0_8 = arith.constant 0 : index
    %12 = vector.load %arg16[%c0_7, %c0_8] : memref<8x32xf32, #tpu.memory_space<vmem>>, vector<8x32xf32>
    %c0_9 = arith.constant 0 : index
    %c0_10 = arith.constant 0 : index
    %13 = vector.load %arg8[%c0_9, %c0_10] : memref<64x32xbf16, #tpu.memory_space<vmem>>, vector<64x32xbf16>
    %cst_11 = arith.constant dense<0.000000e+00> : vector<8x32xf32>
    %14 = tpu.matmul %11, %13, %cst_11 {dimension_numbers = #tpu.dot_dimension_numbers<[1], [0], [0], [1], [0, 0, 1, 1], [], []>} : vector<8x64xbf16>, vector<64x32xbf16>, vector<8x32xf32> -> vector<8x32xf32>
    %15 = arith.addf %12, %14 : vector<8x32xf32>
    %c0_12 = arith.constant 0 : index
    %c0_13 = arith.constant 0 : index
    %16 = vector.load %arg16[%c0_12, %c0_13] : memref<8x32xf32, #tpu.memory_space<vmem>>, vector<8x32xf32>
    tpu.vector_store %arg16[%c0_12, %c0_13], %15 {strides = array<i32>} : memref<8x32xf32, #tpu.memory_space<vmem>>, vector<8x32xf32>,
    %c0_i32_14 = arith.constant 0 : i32
    %17 = arith.cmpi eq, %arg1, %c0_i32_14 : i32
    %18 = arith.extui %17 : i1 to i32
    %c0_i32_15 = arith.constant 0 : i32
    %19 = arith.cmpi ne, %18, %c0_i32_15 : i32
    scf.if %19 {
      %c0_16 = arith.constant 0 : index
      %c0_17 = arith.constant 0 : index
      %20 = vector.load %arg16[%c0_16, %c0_17] : memref<8x32xf32, #tpu.memory_space<vmem>>, vector<8x32xf32>
      %c0_18 = arith.constant 0 : index
      %c0_19 = arith.constant 0 : index
      %21 = vector.load %arg9[%c0_18, %c0_19] : memref<1x32xf32, #tpu.memory_space<vmem>>, vector<1x32xf32>
      %22 = vector.broadcast %21 : vector<1x32xf32> to vector<8x32xf32>
      %23 = arith.addf %20, %22 : vector<8x32xf32>
      %c0_20 = arith.constant 0 : index
      %c0_21 = arith.constant 0 : index
      %24 = vector.load %arg15[%c0_20, %c0_21] : memref<8x32xbf16, #tpu.memory_space<vmem>>, vector<8x32xbf16>
      %25 = arith.extf %24 : vector<8x32xbf16> to vector<8x32xf32>
      %26 = arith.addf %23, %25 : vector<8x32xf32>
      %cst_22 = arith.constant dense<0.000000e+00> : vector<8xf32>
      %27 = vector.multi_reduction <add>, %26, %cst_22 [1] : vector<8x32xf32> to vector<8xf32>
      %28 = vector.shape_cast %27 : vector<8xf32> to vector<8x1xf32>
      %cst_23 = arith.constant 3.200000e+01 : f32
      %29 = vector.broadcast %cst_23 : f32 to vector<8x1xf32>
      %30 = arith.divf %28, %29 : vector<8x1xf32>
      %31 = vector.broadcast %30 : vector<8x1xf32> to vector<8x32xf32>
      %32 = arith.subf %26, %31 : vector<8x32xf32>
      %33 = arith.mulf %32, %32 : vector<8x32xf32>
      %cst_24 = arith.constant dense<0.000000e+00> : vector<8xf32>
      %34 = vector.multi_reduction <add>, %33, %cst_24 [1] : vector<8x32xf32> to vector<8xf32>
      %35 = vector.shape_cast %34 : vector<8xf32> to vector<8x1xf32>
      %cst_25 = arith.constant 3.200000e+01 : f32
      %36 = vector.broadcast %cst_25 : f32 to vector<8x1xf32>
      %37 = arith.divf %35, %36 : vector<8x1xf32>
      %38 = vector.broadcast %30 : vector<8x1xf32> to vector<8x32xf32>
      %39 = arith.subf %26, %38 : vector<8x32xf32>
      %cst_26 = arith.constant 9.99999974E-6 : f32
      %40 = vector.broadcast %cst_26 : f32 to vector<8x1xf32>
      %41 = arith.addf %37, %40 : vector<8x1xf32>
      %42 = math.rsqrt %41 : vector<8x1xf32>
      %43 = vector.broadcast %42 : vector<8x1xf32> to vector<8x32xf32>
      %44 = arith.mulf %39, %43 : vector<8x32xf32>
      %c0_27 = arith.constant 0 : index
      %c0_28 = arith.constant 0 : index
      %45 = vector.load %arg12[%c0_27, %c0_28] : memref<1x32xf32, #tpu.memory_space<vmem>>, vector<1x32xf32>
      %46 = vector.broadcast %45 : vector<1x32xf32> to vector<8x32xf32>
      %47 = arith.mulf %44, %46 : vector<8x32xf32>
      %c0_29 = arith.constant 0 : index
      %c0_30 = arith.constant 0 : index
      %48 = vector.load %arg13[%c0_29, %c0_30] : memref<1x32xf32, #tpu.memory_space<vmem>>, vector<1x32xf32>
      %49 = vector.broadcast %48 : vector<1x32xf32> to vector<8x32xf32>
      %50 = arith.addf %47, %49 : vector<8x32xf32>
      %51 = arith.truncf %50 : vector<8x32xf32> to vector<8x32xbf16>
      %c0_31 = arith.constant 0 : index
      %c0_32 = arith.constant 0 : index
      %52 = vector.load %arg14[%c0_31, %c0_32] : memref<8x32xbf16, #tpu.memory_space<vmem>>, vector<8x32xbf16>
      tpu.vector_store %arg14[%c0_31, %c0_32], %51 {strides = array<i32>} : memref<8x32xbf16, #tpu.memory_space<vmem>>, vector<8x32xbf16>,
    } else {
    }
    return
  }
  func.func @transform_0(%arg0: i32, %arg1: i32) -> (i32, i32) {
    %c0_i32 = arith.constant 0 : i32
    %c0_i32_0 = arith.constant 0 : i32
    return %arg0, %c0_i32 : i32, i32
  }
  func.func @transform_1(%arg0: i32, %arg1: i32) -> (i32, i32) {
    %c0_i32 = arith.constant 0 : i32
    %c0_i32_0 = arith.constant 0 : i32
    return %arg0, %c0_i32 : i32, i32
  }
  func.func @transform_2(%arg0: i32, %arg1: i32) -> (i32, i32) {
    %c0_i32 = arith.constant 0 : i32
    %c0_i32_0 = arith.constant 0 : i32
    %c0_i32_1 = arith.constant 0 : i32
    return %c0_i32, %c0_i32_0 : i32, i32
  }
  func.func @transform_3(%arg0: i32, %arg1: i32) -> (i32, i32) {
    %c0_i32 = arith.constant 0 : i32
    %c0_i32_0 = arith.constant 0 : i32
    %c0_i32_1 = arith.constant 0 : i32
    return %c0_i32, %c0_i32_0 : i32, i32
  }
  func.func @transform_4(%arg0: i32, %arg1: i32) -> (i32, i32) {
    %c0_i32 = arith.constant 0 : i32
    %c0_i32_0 = arith.constant 0 : i32
    return %c0_i32, %arg1 : i32, i32
  }
  func.func @transform_5(%arg0: i32, %arg1: i32) -> (i32, i32) {
    %c0_i32 = arith.constant 0 : i32
    %c0_i32_0 = arith.constant 0 : i32
    return %c0_i32, %arg1 : i32, i32
  }
  func.func @transform_6(%arg0: i32, %arg1: i32) -> (i32, i32) {
    %c0_i32 = arith.constant 0 : i32
    %c0_i32_0 = arith.constant 0 : i32
    return %arg1, %c0_i32 : i32, i32
  }
  func.func @transform_7(%arg0: i32, %arg1: i32) -> (i32, i32) {
    %c0_i32 = arith.constant 0 : i32
    %c0_i32_0 = arith.constant 0 : i32
    %c0_i32_1 = arith.constant 0 : i32
    return %c0_i32, %c0_i32_0 : i32, i32
  }
  func.func @transform_8(%arg0: i32, %arg1: i32) -> (i32, i32) {
    %c0_i32 = arith.constant 0 : i32
    %c0_i32_0 = arith.constant 0 : i32
    %c0_i32_1 = arith.constant 0 : i32
    return %c0_i32, %c0_i32_0 : i32, i32
  }
  func.func @transform_9(%arg0: i32, %arg1: i32) -> (i32, i32) {
    %c0_i32 = arith.constant 0 : i32
    %c0_i32_0 = arith.constant 0 : i32
    %c0_i32_1 = arith.constant 0 : i32
    return %c0_i32, %c0_i32_0 : i32, i32
  }
  func.func @transform_10(%arg0: i32, %arg1: i32) -> (i32, i32) {
    %c0_i32 = arith.constant 0 : i32
    %c0_i32_0 = arith.constant 0 : i32
    %c0_i32_1 = arith.constant 0 : i32
    return %c0_i32, %c0_i32_0 : i32, i32
  }
  func.func @transform_11(%arg0: i32, %arg1: i32) -> (i32, i32) {
    %c0_i32 = arith.constant 0 : i32
    %c0_i32_0 = arith.constant 0 : i32
    %c0_i32_1 = arith.constant 0 : i32
    return %c0_i32, %c0_i32_0 : i32, i32
  }
  func.func @transform_12(%arg0: i32, %arg1: i32) -> (i32, i32) {
    %c0_i32 = arith.constant 0 : i32
    %c0_i32_0 = arith.constant 0 : i32
    return %arg0, %c0_i32 : i32, i32
  }
}

module attributes {stable_mosaic.version = 11 : i64} {
  func.func @_flash_attn_kernel(%arg0: i32, %arg1: i32, %arg2: i32, %arg3: memref<1x8x32xbf16, #tpu.memory_space<vmem>>, %arg4: memref<1x8x32xbf16, #tpu.memory_space<vmem>>, %arg5: memref<1x8x32xbf16, #tpu.memory_space<vmem>>, %arg6: memref<1x8x32xbf16, #tpu.memory_space<vmem>>, %arg7: memref<4x8x1xf32, #tpu.memory_space<vmem>>, %arg8: memref<4x8x1xf32, #tpu.memory_space<vmem>>, %arg9: memref<4x8x8xf32, #tpu.memory_space<vmem>>) attributes {dimension_semantics = [#tpu.dimension_semantics<parallel>, #tpu.dimension_semantics<parallel>, #tpu.dimension_semantics<arbitrary>], iteration_bounds = array<i64: 2, 1, 1>, scalar_prefetch = 0 : i64, scratch_operands = 3 : i64, tpu.core_type = #tpu.core_type<tc>, window_params = [{transform_indices = @transform_0, window_bounds = array<i64: 1, 8, 32>}, {transform_indices = @transform_1, window_bounds = array<i64: 1, 8, 32>}, {transform_indices = @transform_2, window_bounds = array<i64: 1, 8, 32>}, {transform_indices = @transform_3, window_bounds = array<i64: 1, 8, 32>}]} {
    %c0_i32 = arith.constant 0 : i32
    %0 = arith.cmpi eq, %arg2, %c0_i32 : i32
    %1 = arith.extui %0 : i1 to i32
    %c0_i32_0 = arith.constant 0 : i32
    %2 = arith.cmpi ne, %1, %c0_i32_0 : i32
    scf.if %2 {
      %cst_95 = arith.constant 0xFF800000 : f32
      %156 = vector.broadcast %cst_95 : f32 to vector<4x8x1xf32>
      %c0_96 = arith.constant 0 : index
      %c0_97 = arith.constant 0 : index
      %c0_98 = arith.constant 0 : index
      %157 = vector.load %arg7[%c0_96, %c0_97, %c0_98] : memref<4x8x1xf32, #tpu.memory_space<vmem>>, vector<4x8x1xf32>
      tpu.vector_store %arg7[%c0_96, %c0_97, %c0_98], %156 {strides = array<i32>} : memref<4x8x1xf32, #tpu.memory_space<vmem>>, vector<4x8x1xf32>,
      %cst_99 = arith.constant 0.000000e+00 : f32
      %158 = vector.broadcast %cst_99 : f32 to vector<4x8x1xf32>
      %c0_100 = arith.constant 0 : index
      %c0_101 = arith.constant 0 : index
      %c0_102 = arith.constant 0 : index
      %159 = vector.load %arg8[%c0_100, %c0_101, %c0_102] : memref<4x8x1xf32, #tpu.memory_space<vmem>>, vector<4x8x1xf32>
      tpu.vector_store %arg8[%c0_100, %c0_101, %c0_102], %158 {strides = array<i32>} : memref<4x8x1xf32, #tpu.memory_space<vmem>>, vector<4x8x1xf32>,
      %cst_103 = arith.constant 0.000000e+00 : f32
      %160 = vector.broadcast %cst_103 : f32 to vector<4x8x8xf32>
      %c0_104 = arith.constant 0 : index
      %c0_105 = arith.constant 0 : index
      %c0_106 = arith.constant 0 : index
      %161 = vector.load %arg9[%c0_104, %c0_105, %c0_106] : memref<4x8x8xf32, #tpu.memory_space<vmem>>, vector<4x8x8xf32>
      tpu.vector_store %arg9[%c0_104, %c0_105, %c0_106], %160 {strides = array<i32>} : memref<4x8x8xf32, #tpu.memory_space<vmem>>, vector<4x8x8xf32>,
    } else {
    }
    %c0 = arith.constant 0 : index
    %c0_1 = arith.constant 0 : index
    %c0_2 = arith.constant 0 : index
    %3 = vector.load %arg3[%c0, %c0_1, %c0_2] : memref<1x8x32xbf16, #tpu.memory_space<vmem>>, vector<1x8x32xbf16>
    %4 = vector.shape_cast %3 : vector<1x8x32xbf16> to vector<8x32xbf16>
    %c0_3 = arith.constant 0 : index
    %c0_4 = arith.constant 0 : index
    %c0_5 = arith.constant 0 : index
    %5 = vector.load %arg4[%c0_3, %c0_4, %c0_5] : memref<1x8x32xbf16, #tpu.memory_space<vmem>>, vector<1x8x32xbf16>
    %6 = vector.shape_cast %5 : vector<1x8x32xbf16> to vector<8x32xbf16>
    %c0_6 = arith.constant 0 : index
    %c0_7 = arith.constant 0 : index
    %c0_8 = arith.constant 0 : index
    %7 = vector.load %arg5[%c0_6, %c0_7, %c0_8] : memref<1x8x32xbf16, #tpu.memory_space<vmem>>, vector<1x8x32xbf16>
    %8 = vector.shape_cast %7 : vector<1x8x32xbf16> to vector<8x32xbf16>
    %9 = vector.extract_strided_slice %4 {offsets = [0, 0], sizes = [8, 8], strides = [1, 1]} : vector<8x32xbf16> to vector<8x8xbf16>
    %10 = vector.extract_strided_slice %6 {offsets = [0, 0], sizes = [8, 8], strides = [1, 1]} : vector<8x32xbf16> to vector<8x8xbf16>
    %cst = arith.constant dense<0.000000e+00> : vector<8x8xf32>
    %11 = tpu.matmul %9, %10, %cst {dimension_numbers = #tpu.dot_dimension_numbers<[1], [1], [0], [0], [0, 0, 1, 0], [], []>} : vector<8x8xbf16>, vector<8x8xbf16>, vector<8x8xf32> -> vector<8x8xf32>
    %c0_9 = arith.constant 0 : index
    %c0_10 = arith.constant 0 : index
    %c0_11 = arith.constant 0 : index
    %12 = vector.load %arg7[%c0_9, %c0_10, %c0_11] : memref<4x8x1xf32, #tpu.memory_space<vmem>>, vector<1x8x1xf32>
    %13 = vector.shape_cast %12 : vector<1x8x1xf32> to vector<8x1xf32>
    %cst_12 = arith.constant dense<0xFF800000> : vector<8xf32>
    %14 = vector.multi_reduction <maximumf>, %11, %cst_12 [1] : vector<8x8xf32> to vector<8xf32>
    %15 = vector.shape_cast %14 : vector<8xf32> to vector<8x1xf32>
    %16 = arith.maximumf %13, %15 : vector<8x1xf32>
    %17 = arith.subf %13, %16 : vector<8x1xf32>
    %18 = math.exp %17 : vector<8x1xf32>
    %19 = vector.broadcast %16 : vector<8x1xf32> to vector<8x8xf32>
    %20 = arith.subf %11, %19 : vector<8x8xf32>
    %21 = math.exp %20 : vector<8x8xf32>
    %c0_13 = arith.constant 0 : index
    %c0_14 = arith.constant 0 : index
    %c0_15 = arith.constant 0 : index
    %22 = vector.load %arg8[%c0_13, %c0_14, %c0_15] : memref<4x8x1xf32, #tpu.memory_space<vmem>>, vector<1x8x1xf32>
    %23 = vector.shape_cast %22 : vector<1x8x1xf32> to vector<8x1xf32>
    %24 = arith.mulf %18, %23 : vector<8x1xf32>
    %cst_16 = arith.constant dense<0.000000e+00> : vector<8xf32>
    %25 = vector.multi_reduction <add>, %21, %cst_16 [1] : vector<8x8xf32> to vector<8xf32>
    %26 = vector.shape_cast %25 : vector<8xf32> to vector<8x1xf32>
    %27 = arith.addf %24, %26 : vector<8x1xf32>
    %c0_17 = arith.constant 0 : index
    %c0_18 = arith.constant 0 : index
    %c0_19 = arith.constant 0 : index
    %28 = vector.load %arg8[%c0_17, %c0_18, %c0_19] : memref<4x8x1xf32, #tpu.memory_space<vmem>>, vector<1x8x1xf32>
    %29 = vector.shape_cast %28 : vector<1x8x1xf32> to vector<8x1xf32>
    %30 = vector.shape_cast %27 : vector<8x1xf32> to vector<1x8x1xf32>
    tpu.vector_store %arg8[%c0_17, %c0_18, %c0_19], %30 {strides = array<i32>} : memref<4x8x1xf32, #tpu.memory_space<vmem>>, vector<1x8x1xf32>,
    %c0_20 = arith.constant 0 : index
    %c0_21 = arith.constant 0 : index
    %c0_22 = arith.constant 0 : index
    %31 = vector.load %arg9[%c0_20, %c0_21, %c0_22] : memref<4x8x8xf32, #tpu.memory_space<vmem>>, vector<1x8x8xf32>
    %32 = vector.shape_cast %31 : vector<1x8x8xf32> to vector<8x8xf32>
    %33 = vector.broadcast %18 : vector<8x1xf32> to vector<8x8xf32>
    %34 = arith.mulf %33, %32 : vector<8x8xf32>
    %35 = arith.truncf %21 : vector<8x8xf32> to vector<8x8xbf16>
    %36 = vector.extract_strided_slice %8 {offsets = [0, 0], sizes = [8, 8], strides = [1, 1]} : vector<8x32xbf16> to vector<8x8xbf16>
    %cst_23 = arith.constant dense<0.000000e+00> : vector<8x8xf32>
    %37 = tpu.matmul %35, %36, %cst_23 {dimension_numbers = #tpu.dot_dimension_numbers<[1], [0], [0], [1], [0, 0, 1, 1], [], []>} : vector<8x8xbf16>, vector<8x8xbf16>, vector<8x8xf32> -> vector<8x8xf32>
    %38 = arith.addf %34, %37 : vector<8x8xf32>
    %c0_24 = arith.constant 0 : index
    %c0_25 = arith.constant 0 : index
    %c0_26 = arith.constant 0 : index
    %39 = vector.load %arg9[%c0_24, %c0_25, %c0_26] : memref<4x8x8xf32, #tpu.memory_space<vmem>>, vector<1x8x8xf32>
    %40 = vector.shape_cast %39 : vector<1x8x8xf32> to vector<8x8xf32>
    %41 = vector.shape_cast %38 : vector<8x8xf32> to vector<1x8x8xf32>
    tpu.vector_store %arg9[%c0_24, %c0_25, %c0_26], %41 {strides = array<i32>} : memref<4x8x8xf32, #tpu.memory_space<vmem>>, vector<1x8x8xf32>,
    %c0_27 = arith.constant 0 : index
    %c0_28 = arith.constant 0 : index
    %c0_29 = arith.constant 0 : index
    %42 = vector.load %arg7[%c0_27, %c0_28, %c0_29] : memref<4x8x1xf32, #tpu.memory_space<vmem>>, vector<1x8x1xf32>
    %43 = vector.shape_cast %42 : vector<1x8x1xf32> to vector<8x1xf32>
    %44 = vector.shape_cast %16 : vector<8x1xf32> to vector<1x8x1xf32>
    tpu.vector_store %arg7[%c0_27, %c0_28, %c0_29], %44 {strides = array<i32>} : memref<4x8x1xf32, #tpu.memory_space<vmem>>, vector<1x8x1xf32>,
    %45 = vector.extract_strided_slice %4 {offsets = [0, 8], sizes = [8, 8], strides = [1, 1]} : vector<8x32xbf16> to vector<8x8xbf16>
    %46 = vector.extract_strided_slice %6 {offsets = [0, 8], sizes = [8, 8], strides = [1, 1]} : vector<8x32xbf16> to vector<8x8xbf16>
    %cst_30 = arith.constant dense<0.000000e+00> : vector<8x8xf32>
    %47 = tpu.matmul %45, %46, %cst_30 {dimension_numbers = #tpu.dot_dimension_numbers<[1], [1], [0], [0], [0, 0, 1, 0], [], []>} : vector<8x8xbf16>, vector<8x8xbf16>, vector<8x8xf32> -> vector<8x8xf32>
    %c1 = arith.constant 1 : index
    %c0_31 = arith.constant 0 : index
    %c0_32 = arith.constant 0 : index
    %48 = vector.load %arg7[%c1, %c0_31, %c0_32] : memref<4x8x1xf32, #tpu.memory_space<vmem>>, vector<1x8x1xf32>
    %49 = vector.shape_cast %48 : vector<1x8x1xf32> to vector<8x1xf32>
    %cst_33 = arith.constant dense<0xFF800000> : vector<8xf32>
    %50 = vector.multi_reduction <maximumf>, %47, %cst_33 [1] : vector<8x8xf32> to vector<8xf32>
    %51 = vector.shape_cast %50 : vector<8xf32> to vector<8x1xf32>
    %52 = arith.maximumf %49, %51 : vector<8x1xf32>
    %53 = arith.subf %49, %52 : vector<8x1xf32>
    %54 = math.exp %53 : vector<8x1xf32>
    %55 = vector.broadcast %52 : vector<8x1xf32> to vector<8x8xf32>
    %56 = arith.subf %47, %55 : vector<8x8xf32>
    %57 = math.exp %56 : vector<8x8xf32>
    %c1_34 = arith.constant 1 : index
    %c0_35 = arith.constant 0 : index
    %c0_36 = arith.constant 0 : index
    %58 = vector.load %arg8[%c1_34, %c0_35, %c0_36] : memref<4x8x1xf32, #tpu.memory_space<vmem>>, vector<1x8x1xf32>
    %59 = vector.shape_cast %58 : vector<1x8x1xf32> to vector<8x1xf32>
    %60 = arith.mulf %54, %59 : vector<8x1xf32>
    %cst_37 = arith.constant dense<0.000000e+00> : vector<8xf32>
    %61 = vector.multi_reduction <add>, %57, %cst_37 [1] : vector<8x8xf32> to vector<8xf32>
    %62 = vector.shape_cast %61 : vector<8xf32> to vector<8x1xf32>
    %63 = arith.addf %60, %62 : vector<8x1xf32>
    %c1_38 = arith.constant 1 : index
    %c0_39 = arith.constant 0 : index
    %c0_40 = arith.constant 0 : index
    %64 = vector.load %arg8[%c1_38, %c0_39, %c0_40] : memref<4x8x1xf32, #tpu.memory_space<vmem>>, vector<1x8x1xf32>
    %65 = vector.shape_cast %64 : vector<1x8x1xf32> to vector<8x1xf32>
    %66 = vector.shape_cast %63 : vector<8x1xf32> to vector<1x8x1xf32>
    tpu.vector_store %arg8[%c1_38, %c0_39, %c0_40], %66 {strides = array<i32>} : memref<4x8x1xf32, #tpu.memory_space<vmem>>, vector<1x8x1xf32>,
    %c1_41 = arith.constant 1 : index
    %c0_42 = arith.constant 0 : index
    %c0_43 = arith.constant 0 : index
    %67 = vector.load %arg9[%c1_41, %c0_42, %c0_43] : memref<4x8x8xf32, #tpu.memory_space<vmem>>, vector<1x8x8xf32>
    %68 = vector.shape_cast %67 : vector<1x8x8xf32> to vector<8x8xf32>
    %69 = vector.broadcast %54 : vector<8x1xf32> to vector<8x8xf32>
    %70 = arith.mulf %69, %68 : vector<8x8xf32>
    %71 = arith.truncf %57 : vector<8x8xf32> to vector<8x8xbf16>
    %72 = vector.extract_strided_slice %8 {offsets = [0, 8], sizes = [8, 8], strides = [1, 1]} : vector<8x32xbf16> to vector<8x8xbf16>
    %cst_44 = arith.constant dense<0.000000e+00> : vector<8x8xf32>
    %73 = tpu.matmul %71, %72, %cst_44 {dimension_numbers = #tpu.dot_dimension_numbers<[1], [0], [0], [1], [0, 0, 1, 1], [], []>} : vector<8x8xbf16>, vector<8x8xbf16>, vector<8x8xf32> -> vector<8x8xf32>
    %74 = arith.addf %70, %73 : vector<8x8xf32>
    %c1_45 = arith.constant 1 : index
    %c0_46 = arith.constant 0 : index
    %c0_47 = arith.constant 0 : index
    %75 = vector.load %arg9[%c1_45, %c0_46, %c0_47] : memref<4x8x8xf32, #tpu.memory_space<vmem>>, vector<1x8x8xf32>
    %76 = vector.shape_cast %75 : vector<1x8x8xf32> to vector<8x8xf32>
    %77 = vector.shape_cast %74 : vector<8x8xf32> to vector<1x8x8xf32>
    tpu.vector_store %arg9[%c1_45, %c0_46, %c0_47], %77 {strides = array<i32>} : memref<4x8x8xf32, #tpu.memory_space<vmem>>, vector<1x8x8xf32>,
    %c1_48 = arith.constant 1 : index
    %c0_49 = arith.constant 0 : index
    %c0_50 = arith.constant 0 : index
    %78 = vector.load %arg7[%c1_48, %c0_49, %c0_50] : memref<4x8x1xf32, #tpu.memory_space<vmem>>, vector<1x8x1xf32>
    %79 = vector.shape_cast %78 : vector<1x8x1xf32> to vector<8x1xf32>
    %80 = vector.shape_cast %52 : vector<8x1xf32> to vector<1x8x1xf32>
    tpu.vector_store %arg7[%c1_48, %c0_49, %c0_50], %80 {strides = array<i32>} : memref<4x8x1xf32, #tpu.memory_space<vmem>>, vector<1x8x1xf32>,
    %81 = vector.extract_strided_slice %4 {offsets = [0, 16], sizes = [8, 8], strides = [1, 1]} : vector<8x32xbf16> to vector<8x8xbf16>
    %82 = vector.extract_strided_slice %6 {offsets = [0, 16], sizes = [8, 8], strides = [1, 1]} : vector<8x32xbf16> to vector<8x8xbf16>
    %cst_51 = arith.constant dense<0.000000e+00> : vector<8x8xf32>
    %83 = tpu.matmul %81, %82, %cst_51 {dimension_numbers = #tpu.dot_dimension_numbers<[1], [1], [0], [0], [0, 0, 1, 0], [], []>} : vector<8x8xbf16>, vector<8x8xbf16>, vector<8x8xf32> -> vector<8x8xf32>
    %c2 = arith.constant 2 : index
    %c0_52 = arith.constant 0 : index
    %c0_53 = arith.constant 0 : index
    %84 = vector.load %arg7[%c2, %c0_52, %c0_53] : memref<4x8x1xf32, #tpu.memory_space<vmem>>, vector<1x8x1xf32>
    %85 = vector.shape_cast %84 : vector<1x8x1xf32> to vector<8x1xf32>
    %cst_54 = arith.constant dense<0xFF800000> : vector<8xf32>
    %86 = vector.multi_reduction <maximumf>, %83, %cst_54 [1] : vector<8x8xf32> to vector<8xf32>
    %87 = vector.shape_cast %86 : vector<8xf32> to vector<8x1xf32>
    %88 = arith.maximumf %85, %87 : vector<8x1xf32>
    %89 = arith.subf %85, %88 : vector<8x1xf32>
    %90 = math.exp %89 : vector<8x1xf32>
    %91 = vector.broadcast %88 : vector<8x1xf32> to vector<8x8xf32>
    %92 = arith.subf %83, %91 : vector<8x8xf32>
    %93 = math.exp %92 : vector<8x8xf32>
    %c2_55 = arith.constant 2 : index
    %c0_56 = arith.constant 0 : index
    %c0_57 = arith.constant 0 : index
    %94 = vector.load %arg8[%c2_55, %c0_56, %c0_57] : memref<4x8x1xf32, #tpu.memory_space<vmem>>, vector<1x8x1xf32>
    %95 = vector.shape_cast %94 : vector<1x8x1xf32> to vector<8x1xf32>
    %96 = arith.mulf %90, %95 : vector<8x1xf32>
    %cst_58 = arith.constant dense<0.000000e+00> : vector<8xf32>
    %97 = vector.multi_reduction <add>, %93, %cst_58 [1] : vector<8x8xf32> to vector<8xf32>
    %98 = vector.shape_cast %97 : vector<8xf32> to vector<8x1xf32>
    %99 = arith.addf %96, %98 : vector<8x1xf32>
    %c2_59 = arith.constant 2 : index
    %c0_60 = arith.constant 0 : index
    %c0_61 = arith.constant 0 : index
    %100 = vector.load %arg8[%c2_59, %c0_60, %c0_61] : memref<4x8x1xf32, #tpu.memory_space<vmem>>, vector<1x8x1xf32>
    %101 = vector.shape_cast %100 : vector<1x8x1xf32> to vector<8x1xf32>
    %102 = vector.shape_cast %99 : vector<8x1xf32> to vector<1x8x1xf32>
    tpu.vector_store %arg8[%c2_59, %c0_60, %c0_61], %102 {strides = array<i32>} : memref<4x8x1xf32, #tpu.memory_space<vmem>>, vector<1x8x1xf32>,
    %c2_62 = arith.constant 2 : index
    %c0_63 = arith.constant 0 : index
    %c0_64 = arith.constant 0 : index
    %103 = vector.load %arg9[%c2_62, %c0_63, %c0_64] : memref<4x8x8xf32, #tpu.memory_space<vmem>>, vector<1x8x8xf32>
    %104 = vector.shape_cast %103 : vector<1x8x8xf32> to vector<8x8xf32>
    %105 = vector.broadcast %90 : vector<8x1xf32> to vector<8x8xf32>
    %106 = arith.mulf %105, %104 : vector<8x8xf32>
    %107 = arith.truncf %93 : vector<8x8xf32> to vector<8x8xbf16>
    %108 = vector.extract_strided_slice %8 {offsets = [0, 16], sizes = [8, 8], strides = [1, 1]} : vector<8x32xbf16> to vector<8x8xbf16>
    %cst_65 = arith.constant dense<0.000000e+00> : vector<8x8xf32>
    %109 = tpu.matmul %107, %108, %cst_65 {dimension_numbers = #tpu.dot_dimension_numbers<[1], [0], [0], [1], [0, 0, 1, 1], [], []>} : vector<8x8xbf16>, vector<8x8xbf16>, vector<8x8xf32> -> vector<8x8xf32>
    %110 = arith.addf %106, %109 : vector<8x8xf32>
    %c2_66 = arith.constant 2 : index
    %c0_67 = arith.constant 0 : index
    %c0_68 = arith.constant 0 : index
    %111 = vector.load %arg9[%c2_66, %c0_67, %c0_68] : memref<4x8x8xf32, #tpu.memory_space<vmem>>, vector<1x8x8xf32>
    %112 = vector.shape_cast %111 : vector<1x8x8xf32> to vector<8x8xf32>
    %113 = vector.shape_cast %110 : vector<8x8xf32> to vector<1x8x8xf32>
    tpu.vector_store %arg9[%c2_66, %c0_67, %c0_68], %113 {strides = array<i32>} : memref<4x8x8xf32, #tpu.memory_space<vmem>>, vector<1x8x8xf32>,
    %c2_69 = arith.constant 2 : index
    %c0_70 = arith.constant 0 : index
    %c0_71 = arith.constant 0 : index
    %114 = vector.load %arg7[%c2_69, %c0_70, %c0_71] : memref<4x8x1xf32, #tpu.memory_space<vmem>>, vector<1x8x1xf32>
    %115 = vector.shape_cast %114 : vector<1x8x1xf32> to vector<8x1xf32>
    %116 = vector.shape_cast %88 : vector<8x1xf32> to vector<1x8x1xf32>
    tpu.vector_store %arg7[%c2_69, %c0_70, %c0_71], %116 {strides = array<i32>} : memref<4x8x1xf32, #tpu.memory_space<vmem>>, vector<1x8x1xf32>,
    %117 = vector.extract_strided_slice %4 {offsets = [0, 24], sizes = [8, 8], strides = [1, 1]} : vector<8x32xbf16> to vector<8x8xbf16>
    %118 = vector.extract_strided_slice %6 {offsets = [0, 24], sizes = [8, 8], strides = [1, 1]} : vector<8x32xbf16> to vector<8x8xbf16>
    %cst_72 = arith.constant dense<0.000000e+00> : vector<8x8xf32>
    %119 = tpu.matmul %117, %118, %cst_72 {dimension_numbers = #tpu.dot_dimension_numbers<[1], [1], [0], [0], [0, 0, 1, 0], [], []>} : vector<8x8xbf16>, vector<8x8xbf16>, vector<8x8xf32> -> vector<8x8xf32>
    %c3 = arith.constant 3 : index
    %c0_73 = arith.constant 0 : index
    %c0_74 = arith.constant 0 : index
    %120 = vector.load %arg7[%c3, %c0_73, %c0_74] : memref<4x8x1xf32, #tpu.memory_space<vmem>>, vector<1x8x1xf32>
    %121 = vector.shape_cast %120 : vector<1x8x1xf32> to vector<8x1xf32>
    %cst_75 = arith.constant dense<0xFF800000> : vector<8xf32>
    %122 = vector.multi_reduction <maximumf>, %119, %cst_75 [1] : vector<8x8xf32> to vector<8xf32>
    %123 = vector.shape_cast %122 : vector<8xf32> to vector<8x1xf32>
    %124 = arith.maximumf %121, %123 : vector<8x1xf32>
    %125 = arith.subf %121, %124 : vector<8x1xf32>
    %126 = math.exp %125 : vector<8x1xf32>
    %127 = vector.broadcast %124 : vector<8x1xf32> to vector<8x8xf32>
    %128 = arith.subf %119, %127 : vector<8x8xf32>
    %129 = math.exp %128 : vector<8x8xf32>
    %c3_76 = arith.constant 3 : index
    %c0_77 = arith.constant 0 : index
    %c0_78 = arith.constant 0 : index
    %130 = vector.load %arg8[%c3_76, %c0_77, %c0_78] : memref<4x8x1xf32, #tpu.memory_space<vmem>>, vector<1x8x1xf32>
    %131 = vector.shape_cast %130 : vector<1x8x1xf32> to vector<8x1xf32>
    %132 = arith.mulf %126, %131 : vector<8x1xf32>
    %cst_79 = arith.constant dense<0.000000e+00> : vector<8xf32>
    %133 = vector.multi_reduction <add>, %129, %cst_79 [1] : vector<8x8xf32> to vector<8xf32>
    %134 = vector.shape_cast %133 : vector<8xf32> to vector<8x1xf32>
    %135 = arith.addf %132, %134 : vector<8x1xf32>
    %c3_80 = arith.constant 3 : index
    %c0_81 = arith.constant 0 : index
    %c0_82 = arith.constant 0 : index
    %136 = vector.load %arg8[%c3_80, %c0_81, %c0_82] : memref<4x8x1xf32, #tpu.memory_space<vmem>>, vector<1x8x1xf32>
    %137 = vector.shape_cast %136 : vector<1x8x1xf32> to vector<8x1xf32>
    %138 = vector.shape_cast %135 : vector<8x1xf32> to vector<1x8x1xf32>
    tpu.vector_store %arg8[%c3_80, %c0_81, %c0_82], %138 {strides = array<i32>} : memref<4x8x1xf32, #tpu.memory_space<vmem>>, vector<1x8x1xf32>,
    %c3_83 = arith.constant 3 : index
    %c0_84 = arith.constant 0 : index
    %c0_85 = arith.constant 0 : index
    %139 = vector.load %arg9[%c3_83, %c0_84, %c0_85] : memref<4x8x8xf32, #tpu.memory_space<vmem>>, vector<1x8x8xf32>
    %140 = vector.shape_cast %139 : vector<1x8x8xf32> to vector<8x8xf32>
    %141 = vector.broadcast %126 : vector<8x1xf32> to vector<8x8xf32>
    %142 = arith.mulf %141, %140 : vector<8x8xf32>
    %143 = arith.truncf %129 : vector<8x8xf32> to vector<8x8xbf16>
    %144 = vector.extract_strided_slice %8 {offsets = [0, 24], sizes = [8, 8], strides = [1, 1]} : vector<8x32xbf16> to vector<8x8xbf16>
    %cst_86 = arith.constant dense<0.000000e+00> : vector<8x8xf32>
    %145 = tpu.matmul %143, %144, %cst_86 {dimension_numbers = #tpu.dot_dimension_numbers<[1], [0], [0], [1], [0, 0, 1, 1], [], []>} : vector<8x8xbf16>, vector<8x8xbf16>, vector<8x8xf32> -> vector<8x8xf32>
    %146 = arith.addf %142, %145 : vector<8x8xf32>
    %c3_87 = arith.constant 3 : index
    %c0_88 = arith.constant 0 : index
    %c0_89 = arith.constant 0 : index
    %147 = vector.load %arg9[%c3_87, %c0_88, %c0_89] : memref<4x8x8xf32, #tpu.memory_space<vmem>>, vector<1x8x8xf32>
    %148 = vector.shape_cast %147 : vector<1x8x8xf32> to vector<8x8xf32>
    %149 = vector.shape_cast %146 : vector<8x8xf32> to vector<1x8x8xf32>
    tpu.vector_store %arg9[%c3_87, %c0_88, %c0_89], %149 {strides = array<i32>} : memref<4x8x8xf32, #tpu.memory_space<vmem>>, vector<1x8x8xf32>,
    %c3_90 = arith.constant 3 : index
    %c0_91 = arith.constant 0 : index
    %c0_92 = arith.constant 0 : index
    %150 = vector.load %arg7[%c3_90, %c0_91, %c0_92] : memref<4x8x1xf32, #tpu.memory_space<vmem>>, vector<1x8x1xf32>
    %151 = vector.shape_cast %150 : vector<1x8x1xf32> to vector<8x1xf32>
    %152 = vector.shape_cast %124 : vector<8x1xf32> to vector<1x8x1xf32>
    tpu.vector_store %arg7[%c3_90, %c0_91, %c0_92], %152 {strides = array<i32>} : memref<4x8x1xf32, #tpu.memory_space<vmem>>, vector<1x8x1xf32>,
    %c0_i32_93 = arith.constant 0 : i32
    %153 = arith.cmpi eq, %arg2, %c0_i32_93 : i32
    %154 = arith.extui %153 : i1 to i32
    %c0_i32_94 = arith.constant 0 : i32
    %155 = arith.cmpi ne, %154, %c0_i32_94 : i32
    scf.if %155 {
      %c0_95 = arith.constant 0 : index
      %c0_96 = arith.constant 0 : index
      %c0_97 = arith.constant 0 : index
      %156 = vector.load %arg9[%c0_95, %c0_96, %c0_97] : memref<4x8x8xf32, #tpu.memory_space<vmem>>, vector<1x8x8xf32>
      %157 = vector.shape_cast %156 : vector<1x8x8xf32> to vector<8x8xf32>
      %c0_98 = arith.constant 0 : index
      %c0_99 = arith.constant 0 : index
      %c0_100 = arith.constant 0 : index
      %158 = vector.load %arg8[%c0_98, %c0_99, %c0_100] : memref<4x8x1xf32, #tpu.memory_space<vmem>>, vector<1x8x1xf32>
      %159 = vector.shape_cast %158 : vector<1x8x1xf32> to vector<8x1xf32>
      %160 = tpu.reciprocal %159 : vector<8x1xf32> -> vector<8x1xf32>
      %161 = vector.broadcast %160 : vector<8x1xf32> to vector<8x8xf32>
      %162 = arith.mulf %157, %161 : vector<8x8xf32>
      %c1_101 = arith.constant 1 : index
      %c0_102 = arith.constant 0 : index
      %c0_103 = arith.constant 0 : index
      %163 = vector.load %arg9[%c1_101, %c0_102, %c0_103] : memref<4x8x8xf32, #tpu.memory_space<vmem>>, vector<1x8x8xf32>
      %164 = vector.shape_cast %163 : vector<1x8x8xf32> to vector<8x8xf32>
      %c1_104 = arith.constant 1 : index
      %c0_105 = arith.constant 0 : index
      %c0_106 = arith.constant 0 : index
      %165 = vector.load %arg8[%c1_104, %c0_105, %c0_106] : memref<4x8x1xf32, #tpu.memory_space<vmem>>, vector<1x8x1xf32>
      %166 = vector.shape_cast %165 : vector<1x8x1xf32> to vector<8x1xf32>
      %167 = tpu.reciprocal %166 : vector<8x1xf32> -> vector<8x1xf32>
      %168 = vector.broadcast %167 : vector<8x1xf32> to vector<8x8xf32>
      %169 = arith.mulf %164, %168 : vector<8x8xf32>
      %c2_107 = arith.constant 2 : index
      %c0_108 = arith.constant 0 : index
      %c0_109 = arith.constant 0 : index
      %170 = vector.load %arg9[%c2_107, %c0_108, %c0_109] : memref<4x8x8xf32, #tpu.memory_space<vmem>>, vector<1x8x8xf32>
      %171 = vector.shape_cast %170 : vector<1x8x8xf32> to vector<8x8xf32>
      %c2_110 = arith.constant 2 : index
      %c0_111 = arith.constant 0 : index
      %c0_112 = arith.constant 0 : index
      %172 = vector.load %arg8[%c2_110, %c0_111, %c0_112] : memref<4x8x1xf32, #tpu.memory_space<vmem>>, vector<1x8x1xf32>
      %173 = vector.shape_cast %172 : vector<1x8x1xf32> to vector<8x1xf32>
      %174 = tpu.reciprocal %173 : vector<8x1xf32> -> vector<8x1xf32>
      %175 = vector.broadcast %174 : vector<8x1xf32> to vector<8x8xf32>
      %176 = arith.mulf %171, %175 : vector<8x8xf32>
      %c3_113 = arith.constant 3 : index
      %c0_114 = arith.constant 0 : index
      %c0_115 = arith.constant 0 : index
      %177 = vector.load %arg9[%c3_113, %c0_114, %c0_115] : memref<4x8x8xf32, #tpu.memory_space<vmem>>, vector<1x8x8xf32>
      %178 = vector.shape_cast %177 : vector<1x8x8xf32> to vector<8x8xf32>
      %c3_116 = arith.constant 3 : index
      %c0_117 = arith.constant 0 : index
      %c0_118 = arith.constant 0 : index
      %179 = vector.load %arg8[%c3_116, %c0_117, %c0_118] : memref<4x8x1xf32, #tpu.memory_space<vmem>>, vector<1x8x1xf32>
      %180 = vector.shape_cast %179 : vector<1x8x1xf32> to vector<8x1xf32>
      %181 = tpu.reciprocal %180 : vector<8x1xf32> -> vector<8x1xf32>
      %182 = vector.broadcast %181 : vector<8x1xf32> to vector<8x8xf32>
      %183 = arith.mulf %178, %182 : vector<8x8xf32>
      %184 = tpu.concatenate %162, %169, %176, %183 in 1 : vector<8x8xf32>, vector<8x8xf32>, vector<8x8xf32>, vector<8x8xf32> -> vector<8x32xf32>
      %185 = arith.truncf %184 : vector<8x32xf32> to vector<8x32xbf16>
      %c0_119 = arith.constant 0 : index
      %c0_120 = arith.constant 0 : index
      %c0_121 = arith.constant 0 : index
      %186 = vector.load %arg6[%c0_119, %c0_120, %c0_121] : memref<1x8x32xbf16, #tpu.memory_space<vmem>>, vector<1x8x32xbf16>
      %187 = vector.shape_cast %186 : vector<1x8x32xbf16> to vector<8x32xbf16>
      %188 = vector.shape_cast %185 : vector<8x32xbf16> to vector<1x8x32xbf16>
      tpu.vector_store %arg6[%c0_119, %c0_120, %c0_121], %188 {strides = array<i32>} : memref<1x8x32xbf16, #tpu.memory_space<vmem>>, vector<1x8x32xbf16>,
    } else {
    }
    return
  }
  func.func @transform_0(%arg0: i32, %arg1: i32, %arg2: i32) -> (i32, i32, i32) {
    %c0_i32 = arith.constant 0 : i32
    %c0_i32_0 = arith.constant 0 : i32
    return %arg0, %arg1, %c0_i32 : i32, i32, i32
  }
  func.func @transform_1(%arg0: i32, %arg1: i32, %arg2: i32) -> (i32, i32, i32) {
    %c0_i32 = arith.constant 0 : i32
    %c0_i32_0 = arith.constant 0 : i32
    return %arg0, %arg2, %c0_i32 : i32, i32, i32
  }
  func.func @transform_2(%arg0: i32, %arg1: i32, %arg2: i32) -> (i32, i32, i32) {
    %c0_i32 = arith.constant 0 : i32
    %c0_i32_0 = arith.constant 0 : i32
    return %arg0, %arg2, %c0_i32 : i32, i32, i32
  }
  func.func @transform_3(%arg0: i32, %arg1: i32, %arg2: i32) -> (i32, i32, i32) {
    %c0_i32 = arith.constant 0 : i32
    %c0_i32_0 = arith.constant 0 : i32
    return %arg0, %arg1, %c0_i32 : i32, i32, i32
  }
}

module attributes {stable_mosaic.version = 11 : i64} {
  func.func @_qkv_kernel(%arg0: i32, %arg1: i32, %arg2: memref<1x8x32xbf16, #tpu.memory_space<vmem>>, %arg3: memref<32x96xbf16, #tpu.memory_space<vmem>>, %arg4: memref<1x96xf32, #tpu.memory_space<vmem>>, %arg5: memref<1x8x32xbf16, #tpu.memory_space<vmem>>, %arg6: memref<1x8x32xbf16, #tpu.memory_space<vmem>>, %arg7: memref<1x8x32xbf16, #tpu.memory_space<vmem>>) attributes {dimension_semantics = [#tpu.dimension_semantics<parallel>, #tpu.dimension_semantics<parallel>], iteration_bounds = array<i64: 2, 1>, scalar_prefetch = 0 : i64, scratch_operands = 0 : i64, tpu.core_type = #tpu.core_type<tc>, window_params = [{transform_indices = @transform_0, window_bounds = array<i64: 1, 8, 32>}, {pipeline_mode = #tpu.pipeline_mode<synchronous>, transform_indices = @transform_1, window_bounds = array<i64: 32, 96>}, {pipeline_mode = #tpu.pipeline_mode<synchronous>, transform_indices = @transform_2, window_bounds = array<i64: 1, 96>}, {transform_indices = @transform_3, window_bounds = array<i64: 1, 8, 32>}, {transform_indices = @transform_4, window_bounds = array<i64: 1, 8, 32>}, {transform_indices = @transform_5, window_bounds = array<i64: 1, 8, 32>}]} {
    %c0 = arith.constant 0 : index
    %c0_0 = arith.constant 0 : index
    %c0_1 = arith.constant 0 : index
    %0 = vector.load %arg2[%c0, %c0_0, %c0_1] : memref<1x8x32xbf16, #tpu.memory_space<vmem>>, vector<1x8x32xbf16>
    %1 = vector.shape_cast %0 : vector<1x8x32xbf16> to vector<8x32xbf16>
    %c0_2 = arith.constant 0 : index
    %c0_3 = arith.constant 0 : index
    %2 = vector.load %arg3[%c0_2, %c0_3] : memref<32x96xbf16, #tpu.memory_space<vmem>>, vector<32x96xbf16>
    %cst = arith.constant dense<0.000000e+00> : vector<8x96xf32>
    %3 = tpu.matmul %1, %2, %cst {dimension_numbers = #tpu.dot_dimension_numbers<[1], [0], [0], [1], [0, 0, 1, 1], [], []>} : vector<8x32xbf16>, vector<32x96xbf16>, vector<8x96xf32> -> vector<8x96xf32>
    %c0_4 = arith.constant 0 : index
    %c0_5 = arith.constant 0 : index
    %4 = vector.load %arg4[%c0_4, %c0_5] : memref<1x96xf32, #tpu.memory_space<vmem>>, vector<1x96xf32>
    %5 = vector.broadcast %4 : vector<1x96xf32> to vector<8x96xf32>
    %6 = arith.addf %3, %5 : vector<8x96xf32>
    %7 = vector.extract_strided_slice %6 {offsets = [0, 0], sizes = [8, 32], strides = [1, 1]} : vector<8x96xf32> to vector<8x32xf32>
    %8 = arith.truncf %7 : vector<8x32xf32> to vector<8x32xbf16>
    %c0_6 = arith.constant 0 : index
    %c0_7 = arith.constant 0 : index
    %c0_8 = arith.constant 0 : index
    %9 = vector.load %arg5[%c0_6, %c0_7, %c0_8] : memref<1x8x32xbf16, #tpu.memory_space<vmem>>, vector<1x8x32xbf16>
    %10 = vector.shape_cast %9 : vector<1x8x32xbf16> to vector<8x32xbf16>
    %11 = vector.shape_cast %8 : vector<8x32xbf16> to vector<1x8x32xbf16>
    tpu.vector_store %arg5[%c0_6, %c0_7, %c0_8], %11 {strides = array<i32>} : memref<1x8x32xbf16, #tpu.memory_space<vmem>>, vector<1x8x32xbf16>,
    %12 = vector.extract_strided_slice %6 {offsets = [0, 32], sizes = [8, 32], strides = [1, 1]} : vector<8x96xf32> to vector<8x32xf32>
    %13 = arith.truncf %12 : vector<8x32xf32> to vector<8x32xbf16>
    %c0_9 = arith.constant 0 : index
    %c0_10 = arith.constant 0 : index
    %c0_11 = arith.constant 0 : index
    %14 = vector.load %arg6[%c0_9, %c0_10, %c0_11] : memref<1x8x32xbf16, #tpu.memory_space<vmem>>, vector<1x8x32xbf16>
    %15 = vector.shape_cast %14 : vector<1x8x32xbf16> to vector<8x32xbf16>
    %16 = vector.shape_cast %13 : vector<8x32xbf16> to vector<1x8x32xbf16>
    tpu.vector_store %arg6[%c0_9, %c0_10, %c0_11], %16 {strides = array<i32>} : memref<1x8x32xbf16, #tpu.memory_space<vmem>>, vector<1x8x32xbf16>,
    %17 = vector.extract_strided_slice %6 {offsets = [0, 64], sizes = [8, 32], strides = [1, 1]} : vector<8x96xf32> to vector<8x32xf32>
    %18 = arith.truncf %17 : vector<8x32xf32> to vector<8x32xbf16>
    %c0_12 = arith.constant 0 : index
    %c0_13 = arith.constant 0 : index
    %c0_14 = arith.constant 0 : index
    %19 = vector.load %arg7[%c0_12, %c0_13, %c0_14] : memref<1x8x32xbf16, #tpu.memory_space<vmem>>, vector<1x8x32xbf16>
    %20 = vector.shape_cast %19 : vector<1x8x32xbf16> to vector<8x32xbf16>
    %21 = vector.shape_cast %18 : vector<8x32xbf16> to vector<1x8x32xbf16>
    tpu.vector_store %arg7[%c0_12, %c0_13, %c0_14], %21 {strides = array<i32>} : memref<1x8x32xbf16, #tpu.memory_space<vmem>>, vector<1x8x32xbf16>,
    return
  }
  func.func @transform_0(%arg0: i32, %arg1: i32) -> (i32, i32, i32) {
    %c0_i32 = arith.constant 0 : i32
    %c0_i32_0 = arith.constant 0 : i32
    return %arg0, %arg1, %c0_i32 : i32, i32, i32
  }
  func.func @transform_1(%arg0: i32, %arg1: i32) -> (i32, i32) {
    %c0_i32 = arith.constant 0 : i32
    %c0_i32_0 = arith.constant 0 : i32
    %c0_i32_1 = arith.constant 0 : i32
    return %c0_i32, %c0_i32_0 : i32, i32
  }
  func.func @transform_2(%arg0: i32, %arg1: i32) -> (i32, i32) {
    %c0_i32 = arith.constant 0 : i32
    %c0_i32_0 = arith.constant 0 : i32
    %c0_i32_1 = arith.constant 0 : i32
    return %c0_i32, %c0_i32_0 : i32, i32
  }
  func.func @transform_3(%arg0: i32, %arg1: i32) -> (i32, i32, i32) {
    %c0_i32 = arith.constant 0 : i32
    %c0_i32_0 = arith.constant 0 : i32
    return %arg0, %arg1, %c0_i32 : i32, i32, i32
  }
  func.func @transform_4(%arg0: i32, %arg1: i32) -> (i32, i32, i32) {
    %c0_i32 = arith.constant 0 : i32
    %c0_i32_0 = arith.constant 0 : i32
    return %arg0, %arg1, %c0_i32 : i32, i32, i32
  }
  func.func @transform_5(%arg0: i32, %arg1: i32) -> (i32, i32, i32) {
    %c0_i32 = arith.constant 0 : i32
    %c0_i32_0 = arith.constant 0 : i32
    return %arg0, %arg1, %c0_i32 : i32, i32, i32
  }
}

module attributes {stable_mosaic.version = 11 : i64} {
  func.func @_mlp_block_kernel(%arg0: i32, %arg1: i32, %arg2: memref<8x32xbf16, #tpu.memory_space<vmem>>, %arg3: memref<8x32xbf16, #tpu.memory_space<vmem>>, %arg4: memref<32x32xbf16, #tpu.memory_space<vmem>>, %arg5: memref<1x32xf32, #tpu.memory_space<vmem>>, %arg6: memref<32x64xbf16, #tpu.memory_space<vmem>>, %arg7: memref<1x64xf32, #tpu.memory_space<vmem>>, %arg8: memref<64x32xbf16, #tpu.memory_space<vmem>>, %arg9: memref<1x32xf32, #tpu.memory_space<vmem>>, %arg10: memref<1x32xf32, #tpu.memory_space<vmem>>, %arg11: memref<1x32xf32, #tpu.memory_space<vmem>>, %arg12: memref<1x32xf32, #tpu.memory_space<vmem>>, %arg13: memref<1x32xf32, #tpu.memory_space<vmem>>, %arg14: memref<8x32xbf16, #tpu.memory_space<vmem>>, %arg15: memref<8x32xbf16, #tpu.memory_space<vmem>>, %arg16: memref<8x32xf32, #tpu.memory_space<vmem>>) attributes {dimension_semantics = [#tpu.dimension_semantics<parallel>, #tpu.dimension_semantics<arbitrary>], iteration_bounds = array<i64: 2, 1>, scalar_prefetch = 0 : i64, scratch_operands = 2 : i64, tpu.core_type = #tpu.core_type<tc>, window_params = [{transform_indices = @transform_0, window_bounds = array<i64: 8, 32>}, {transform_indices = @transform_1, window_bounds = array<i64: 8, 32>}, {pipeline_mode = #tpu.pipeline_mode<synchronous>, transform_indices = @transform_2, window_bounds = array<i64: 32, 32>}, {pipeline_mode = #tpu.pipeline_mode<synchronous>, transform_indices = @transform_3, window_bounds = array<i64: 1, 32>}, {transform_indices = @transform_4, window_bounds = array<i64: 32, 64>}, {transform_indices = @transform_5, window_bounds = array<i64: 1, 64>}, {transform_indices = @transform_6, window_bounds = array<i64: 64, 32>}, {pipeline_mode = #tpu.pipeline_mode<synchronous>, transform_indices = @transform_7, window_bounds = array<i64: 1, 32>}, {pipeline_mode = #tpu.pipeline_mode<synchronous>, transform_indices = @transform_8, window_bounds = array<i64: 1, 32>}, {pipeline_mode = #tpu.pipeline_mode<synchronous>, transform_indices = @transform_9, window_bounds = array<i64: 1, 32>}, {pipeline_mode = #tpu.pipeline_mode<synchronous>, transform_indices = @transform_10, window_bounds = array<i64: 1, 32>}, {pipeline_mode = #tpu.pipeline_mode<synchronous>, transform_indices = @transform_11, window_bounds = array<i64: 1, 32>}, {transform_indices = @transform_12, window_bounds = array<i64: 8, 32>}]} {
    %c0_i32 = arith.constant 0 : i32
    %0 = arith.cmpi eq, %arg1, %c0_i32 : i32
    %1 = arith.extui %0 : i1 to i32
    %c0_i32_0 = arith.constant 0 : i32
    %2 = arith.cmpi ne, %1, %c0_i32_0 : i32
    scf.if %2 {
      %c0_16 = arith.constant 0 : index
      %c0_17 = arith.constant 0 : index
      %20 = vector.load %arg2[%c0_16, %c0_17] : memref<8x32xbf16, #tpu.memory_space<vmem>>, vector<8x32xbf16>
      %c0_18 = arith.constant 0 : index
      %c0_19 = arith.constant 0 : index
      %21 = vector.load %arg4[%c0_18, %c0_19] : memref<32x32xbf16, #tpu.memory_space<vmem>>, vector<32x32xbf16>
      %cst_20 = arith.constant dense<0.000000e+00> : vector<8x32xf32>
      %22 = tpu.matmul %20, %21, %cst_20 {dimension_numbers = #tpu.dot_dimension_numbers<[1], [0], [0], [1], [0, 0, 1, 1], [], []>} : vector<8x32xbf16>, vector<32x32xbf16>, vector<8x32xf32> -> vector<8x32xf32>
      %c0_21 = arith.constant 0 : index
      %c0_22 = arith.constant 0 : index
      %23 = vector.load %arg5[%c0_21, %c0_22] : memref<1x32xf32, #tpu.memory_space<vmem>>, vector<1x32xf32>
      %24 = vector.broadcast %23 : vector<1x32xf32> to vector<8x32xf32>
      %25 = arith.addf %22, %24 : vector<8x32xf32>
      %c0_23 = arith.constant 0 : index
      %c0_24 = arith.constant 0 : index
      %26 = vector.load %arg3[%c0_23, %c0_24] : memref<8x32xbf16, #tpu.memory_space<vmem>>, vector<8x32xbf16>
      %27 = arith.extf %26 : vector<8x32xbf16> to vector<8x32xf32>
      %28 = arith.addf %25, %27 : vector<8x32xf32>
      %cst_25 = arith.constant dense<0.000000e+00> : vector<8xf32>
      %29 = vector.multi_reduction <add>, %28, %cst_25 [1] : vector<8x32xf32> to vector<8xf32>
      %30 = vector.shape_cast %29 : vector<8xf32> to vector<8x1xf32>
      %cst_26 = arith.constant 3.200000e+01 : f32
      %31 = vector.broadcast %cst_26 : f32 to vector<8x1xf32>
      %32 = arith.divf %30, %31 : vector<8x1xf32>
      %33 = vector.broadcast %32 : vector<8x1xf32> to vector<8x32xf32>
      %34 = arith.subf %28, %33 : vector<8x32xf32>
      %35 = arith.mulf %34, %34 : vector<8x32xf32>
      %cst_27 = arith.constant dense<0.000000e+00> : vector<8xf32>
      %36 = vector.multi_reduction <add>, %35, %cst_27 [1] : vector<8x32xf32> to vector<8xf32>
      %37 = vector.shape_cast %36 : vector<8xf32> to vector<8x1xf32>
      %cst_28 = arith.constant 3.200000e+01 : f32
      %38 = vector.broadcast %cst_28 : f32 to vector<8x1xf32>
      %39 = arith.divf %37, %38 : vector<8x1xf32>
      %40 = vector.broadcast %32 : vector<8x1xf32> to vector<8x32xf32>
      %41 = arith.subf %28, %40 : vector<8x32xf32>
      %cst_29 = arith.constant 9.99999974E-6 : f32
      %42 = vector.broadcast %cst_29 : f32 to vector<8x1xf32>
      %43 = arith.addf %39, %42 : vector<8x1xf32>
      %44 = math.rsqrt %43 : vector<8x1xf32>
      %45 = vector.broadcast %44 : vector<8x1xf32> to vector<8x32xf32>
      %46 = arith.mulf %41, %45 : vector<8x32xf32>
      %c0_30 = arith.constant 0 : index
      %c0_31 = arith.constant 0 : index
      %47 = vector.load %arg10[%c0_30, %c0_31] : memref<1x32xf32, #tpu.memory_space<vmem>>, vector<1x32xf32>
      %48 = vector.broadcast %47 : vector<1x32xf32> to vector<8x32xf32>
      %49 = arith.mulf %46, %48 : vector<8x32xf32>
      %c0_32 = arith.constant 0 : index
      %c0_33 = arith.constant 0 : index
      %50 = vector.load %arg11[%c0_32, %c0_33] : memref<1x32xf32, #tpu.memory_space<vmem>>, vector<1x32xf32>
      %51 = vector.broadcast %50 : vector<1x32xf32> to vector<8x32xf32>
      %52 = arith.addf %49, %51 : vector<8x32xf32>
      %53 = arith.truncf %52 : vector<8x32xf32> to vector<8x32xbf16>
      %c0_34 = arith.constant 0 : index
      %c0_35 = arith.constant 0 : index
      %54 = vector.load %arg15[%c0_34, %c0_35] : memref<8x32xbf16, #tpu.memory_space<vmem>>, vector<8x32xbf16>
      tpu.vector_store %arg15[%c0_34, %c0_35], %53 {strides = array<i32>} : memref<8x32xbf16, #tpu.memory_space<vmem>>, vector<8x32xbf16>,
      %cst_36 = arith.constant 0.000000e+00 : f32
      %55 = vector.broadcast %cst_36 : f32 to vector<8x32xf32>
      %c0_37 = arith.constant 0 : index
      %c0_38 = arith.constant 0 : index
      %56 = vector.load %arg16[%c0_37, %c0_38] : memref<8x32xf32, #tpu.memory_space<vmem>>, vector<8x32xf32>
      tpu.vector_store %arg16[%c0_37, %c0_38], %55 {strides = array<i32>} : memref<8x32xf32, #tpu.memory_space<vmem>>, vector<8x32xf32>,
    } else {
    }
    %c0 = arith.constant 0 : index
    %c0_1 = arith.constant 0 : index
    %3 = vector.load %arg15[%c0, %c0_1] : memref<8x32xbf16, #tpu.memory_space<vmem>>, vector<8x32xbf16>
    %c0_2 = arith.constant 0 : index
    %c0_3 = arith.constant 0 : index
    %4 = vector.load %arg6[%c0_2, %c0_3] : memref<32x64xbf16, #tpu.memory_space<vmem>>, vector<32x64xbf16>
    %cst = arith.constant dense<0.000000e+00> : vector<8x64xf32>
    %5 = tpu.matmul %3, %4, %cst {dimension_numbers = #tpu.dot_dimension_numbers<[1], [0], [0], [1], [0, 0, 1, 1], [], []>} : vector<8x32xbf16>, vector<32x64xbf16>, vector<8x64xf32> -> vector<8x64xf32>
    %c0_4 = arith.constant 0 : index
    %c0_5 = arith.constant 0 : index
    %6 = vector.load %arg7[%c0_4, %c0_5] : memref<1x64xf32, #tpu.memory_space<vmem>>, vector<1x64xf32>
    %7 = vector.broadcast %6 : vector<1x64xf32> to vector<8x64xf32>
    %8 = arith.addf %5, %7 : vector<8x64xf32>
    %cst_6 = arith.constant 0.000000e+00 : f32
    %9 = vector.broadcast %cst_6 : f32 to vector<8x64xf32>
    %10 = arith.maximumf %8, %9 : vector<8x64xf32>
    %11 = arith.truncf %10 : vector<8x64xf32> to vector<8x64xbf16>
    %c0_7 = arith.constant 0 : index
    %c0_8 = arith.constant 0 : index
    %12 = vector.load %arg16[%c0_7, %c0_8] : memref<8x32xf32, #tpu.memory_space<vmem>>, vector<8x32xf32>
    %c0_9 = arith.constant 0 : index
    %c0_10 = arith.constant 0 : index
    %13 = vector.load %arg8[%c0_9, %c0_10] : memref<64x32xbf16, #tpu.memory_space<vmem>>, vector<64x32xbf16>
    %cst_11 = arith.constant dense<0.000000e+00> : vector<8x32xf32>
    %14 = tpu.matmul %11, %13, %cst_11 {dimension_numbers = #tpu.dot_dimension_numbers<[1], [0], [0], [1], [0, 0, 1, 1], [], []>} : vector<8x64xbf16>, vector<64x32xbf16>, vector<8x32xf32> -> vector<8x32xf32>
    %15 = arith.addf %12, %14 : vector<8x32xf32>
    %c0_12 = arith.constant 0 : index
    %c0_13 = arith.constant 0 : index
    %16 = vector.load %arg16[%c0_12, %c0_13] : memref<8x32xf32, #tpu.memory_space<vmem>>, vector<8x32xf32>
    tpu.vector_store %arg16[%c0_12, %c0_13], %15 {strides = array<i32>} : memref<8x32xf32, #tpu.memory_space<vmem>>, vector<8x32xf32>,
    %c0_i32_14 = arith.constant 0 : i32
    %17 = arith.cmpi eq, %arg1, %c0_i32_14 : i32
    %18 = arith.extui %17 : i1 to i32
    %c0_i32_15 = arith.constant 0 : i32
    %19 = arith.cmpi ne, %18, %c0_i32_15 : i32
    scf.if %19 {
      %c0_16 = arith.constant 0 : index
      %c0_17 = arith.constant 0 : index
      %20 = vector.load %arg16[%c0_16, %c0_17] : memref<8x32xf32, #tpu.memory_space<vmem>>, vector<8x32xf32>
      %c0_18 = arith.constant 0 : index
      %c0_19 = arith.constant 0 : index
      %21 = vector.load %arg9[%c0_18, %c0_19] : memref<1x32xf32, #tpu.memory_space<vmem>>, vector<1x32xf32>
      %22 = vector.broadcast %21 : vector<1x32xf32> to vector<8x32xf32>
      %23 = arith.addf %20, %22 : vector<8x32xf32>
      %c0_20 = arith.constant 0 : index
      %c0_21 = arith.constant 0 : index
      %24 = vector.load %arg15[%c0_20, %c0_21] : memref<8x32xbf16, #tpu.memory_space<vmem>>, vector<8x32xbf16>
      %25 = arith.extf %24 : vector<8x32xbf16> to vector<8x32xf32>
      %26 = arith.addf %23, %25 : vector<8x32xf32>
      %cst_22 = arith.constant dense<0.000000e+00> : vector<8xf32>
      %27 = vector.multi_reduction <add>, %26, %cst_22 [1] : vector<8x32xf32> to vector<8xf32>
      %28 = vector.shape_cast %27 : vector<8xf32> to vector<8x1xf32>
      %cst_23 = arith.constant 3.200000e+01 : f32
      %29 = vector.broadcast %cst_23 : f32 to vector<8x1xf32>
      %30 = arith.divf %28, %29 : vector<8x1xf32>
      %31 = vector.broadcast %30 : vector<8x1xf32> to vector<8x32xf32>
      %32 = arith.subf %26, %31 : vector<8x32xf32>
      %33 = arith.mulf %32, %32 : vector<8x32xf32>
      %cst_24 = arith.constant dense<0.000000e+00> : vector<8xf32>
      %34 = vector.multi_reduction <add>, %33, %cst_24 [1] : vector<8x32xf32> to vector<8xf32>
      %35 = vector.shape_cast %34 : vector<8xf32> to vector<8x1xf32>
      %cst_25 = arith.constant 3.200000e+01 : f32
      %36 = vector.broadcast %cst_25 : f32 to vector<8x1xf32>
      %37 = arith.divf %35, %36 : vector<8x1xf32>
      %38 = vector.broadcast %30 : vector<8x1xf32> to vector<8x32xf32>
      %39 = arith.subf %26, %38 : vector<8x32xf32>
      %cst_26 = arith.constant 9.99999974E-6 : f32
      %40 = vector.broadcast %cst_26 : f32 to vector<8x1xf32>
      %41 = arith.addf %37, %40 : vector<8x1xf32>
      %42 = math.rsqrt %41 : vector<8x1xf32>
      %43 = vector.broadcast %42 : vector<8x1xf32> to vector<8x32xf32>
      %44 = arith.mulf %39, %43 : vector<8x32xf32>
      %c0_27 = arith.constant 0 : index
      %c0_28 = arith.constant 0 : index
      %45 = vector.load %arg12[%c0_27, %c0_28] : memref<1x32xf32, #tpu.memory_space<vmem>>, vector<1x32xf32>
      %46 = vector.broadcast %45 : vector<1x32xf32> to vector<8x32xf32>
      %47 = arith.mulf %44, %46 : vector<8x32xf32>
      %c0_29 = arith.constant 0 : index
      %c0_30 = arith.constant 0 : index
      %48 = vector.load %arg13[%c0_29, %c0_30] : memref<1x32xf32, #tpu.memory_space<vmem>>, vector<1x32xf32>
      %49 = vector.broadcast %48 : vector<1x32xf32> to vector<8x32xf32>
      %50 = arith.addf %47, %49 : vector<8x32xf32>
      %51 = arith.truncf %50 : vector<8x32xf32> to vector<8x32xbf16>
      %c0_31 = arith.constant 0 : index
      %c0_32 = arith.constant 0 : index
      %52 = vector.load %arg14[%c0_31, %c0_32] : memref<8x32xbf16, #tpu.memory_space<vmem>>, vector<8x32xbf16>
      tpu.vector_store %arg14[%c0_31, %c0_32], %51 {strides = array<i32>} : memref<8x32xbf16, #tpu.memory_space<vmem>>, vector<8x32xbf16>,
    } else {
    }
    return
  }
  func.func @transform_0(%arg0: i32, %arg1: i32) -> (i32, i32) {
    %c0_i32 = arith.constant 0 : i32
    %c0_i32_0 = arith.constant 0 : i32
    return %arg0, %c0_i32 : i32, i32
  }
  func.func @transform_1(%arg0: i32, %arg1: i32) -> (i32, i32) {
    %c0_i32 = arith.constant 0 : i32
    %c0_i32_0 = arith.constant 0 : i32
    return %arg0, %c0_i32 : i32, i32
  }
  func.func @transform_2(%arg0: i32, %arg1: i32) -> (i32, i32) {
    %c0_i32 = arith.constant 0 : i32
    %c0_i32_0 = arith.constant 0 : i32
    %c0_i32_1 = arith.constant 0 : i32
    return %c0_i32, %c0_i32_0 : i32, i32
  }
  func.func @transform_3(%arg0: i32, %arg1: i32) -> (i32, i32) {
    %c0_i32 = arith.constant 0 : i32
    %c0_i32_0 = arith.constant 0 : i32
    %c0_i32_1 = arith.constant 0 : i32
    return %c0_i32, %c0_i32_0 : i32, i32
  }
  func.func @transform_4(%arg0: i32, %arg1: i32) -> (i32, i32) {
    %c0_i32 = arith.constant 0 : i32
    %c0_i32_0 = arith.constant 0 : i32
    return %c0_i32, %arg1 : i32, i32
  }
  func.func @transform_5(%arg0: i32, %arg1: i32) -> (i32, i32) {
    %c0_i32 = arith.constant 0 : i32
    %c0_i32_0 = arith.constant 0 : i32
    return %c0_i32, %arg1 : i32, i32
  }
  func.func @transform_6(%arg0: i32, %arg1: i32) -> (i32, i32) {
    %c0_i32 = arith.constant 0 : i32
    %c0_i32_0 = arith.constant 0 : i32
    return %arg1, %c0_i32 : i32, i32
  }
  func.func @transform_7(%arg0: i32, %arg1: i32) -> (i32, i32) {
    %c0_i32 = arith.constant 0 : i32
    %c0_i32_0 = arith.constant 0 : i32
    %c0_i32_1 = arith.constant 0 : i32
    return %c0_i32, %c0_i32_0 : i32, i32
  }
  func.func @transform_8(%arg0: i32, %arg1: i32) -> (i32, i32) {
    %c0_i32 = arith.constant 0 : i32
    %c0_i32_0 = arith.constant 0 : i32
    %c0_i32_1 = arith.constant 0 : i32
    return %c0_i32, %c0_i32_0 : i32, i32
  }
  func.func @transform_9(%arg0: i32, %arg1: i32) -> (i32, i32) {
    %c0_i32 = arith.constant 0 : i32
    %c0_i32_0 = arith.constant 0 : i32
    %c0_i32_1 = arith.constant 0 : i32
    return %c0_i32, %c0_i32_0 : i32, i32
  }
  func.func @transform_10(%arg0: i32, %arg1: i32) -> (i32, i32) {
    %c0_i32 = arith.constant 0 : i32
    %c0_i32_0 = arith.constant 0 : i32
    %c0_i32_1 = arith.constant 0 : i32
    return %c0_i32, %c0_i32_0 : i32, i32
  }
  func.func @transform_11(%arg0: i32, %arg1: i32) -> (i32, i32) {
    %c0_i32 = arith.constant 0 : i32
    %c0_i32_0 = arith.constant 0 : i32
    %c0_i32_1 = arith.constant 0 : i32
    return %c0_i32, %c0_i32_0 : i32, i32
  }
  func.func @transform_12(%arg0: i32, %arg1: i32) -> (i32, i32) {
    %c0_i32 = arith.constant 0 : i32
    %c0_i32_0 = arith.constant 0 : i32
    return %arg0, %c0_i32 : i32, i32
  }
}

module attributes {stable_mosaic.version = 11 : i64} {
  func.func @_flash_attn_kernel(%arg0: i32, %arg1: i32, %arg2: i32, %arg3: memref<1x8x32xbf16, #tpu.memory_space<vmem>>, %arg4: memref<1x8x32xbf16, #tpu.memory_space<vmem>>, %arg5: memref<1x8x32xbf16, #tpu.memory_space<vmem>>, %arg6: memref<1x8x32xbf16, #tpu.memory_space<vmem>>, %arg7: memref<4x8x1xf32, #tpu.memory_space<vmem>>, %arg8: memref<4x8x1xf32, #tpu.memory_space<vmem>>, %arg9: memref<4x8x8xf32, #tpu.memory_space<vmem>>) attributes {dimension_semantics = [#tpu.dimension_semantics<parallel>, #tpu.dimension_semantics<parallel>, #tpu.dimension_semantics<arbitrary>], iteration_bounds = array<i64: 2, 1, 1>, scalar_prefetch = 0 : i64, scratch_operands = 3 : i64, tpu.core_type = #tpu.core_type<tc>, window_params = [{transform_indices = @transform_0, window_bounds = array<i64: 1, 8, 32>}, {transform_indices = @transform_1, window_bounds = array<i64: 1, 8, 32>}, {transform_indices = @transform_2, window_bounds = array<i64: 1, 8, 32>}, {transform_indices = @transform_3, window_bounds = array<i64: 1, 8, 32>}]} {
    %c0_i32 = arith.constant 0 : i32
    %0 = arith.cmpi eq, %arg2, %c0_i32 : i32
    %1 = arith.extui %0 : i1 to i32
    %c0_i32_0 = arith.constant 0 : i32
    %2 = arith.cmpi ne, %1, %c0_i32_0 : i32
    scf.if %2 {
      %cst_95 = arith.constant 0xFF800000 : f32
      %156 = vector.broadcast %cst_95 : f32 to vector<4x8x1xf32>
      %c0_96 = arith.constant 0 : index
      %c0_97 = arith.constant 0 : index
      %c0_98 = arith.constant 0 : index
      %157 = vector.load %arg7[%c0_96, %c0_97, %c0_98] : memref<4x8x1xf32, #tpu.memory_space<vmem>>, vector<4x8x1xf32>
      tpu.vector_store %arg7[%c0_96, %c0_97, %c0_98], %156 {strides = array<i32>} : memref<4x8x1xf32, #tpu.memory_space<vmem>>, vector<4x8x1xf32>,
      %cst_99 = arith.constant 0.000000e+00 : f32
      %158 = vector.broadcast %cst_99 : f32 to vector<4x8x1xf32>
      %c0_100 = arith.constant 0 : index
      %c0_101 = arith.constant 0 : index
      %c0_102 = arith.constant 0 : index
      %159 = vector.load %arg8[%c0_100, %c0_101, %c0_102] : memref<4x8x1xf32, #tpu.memory_space<vmem>>, vector<4x8x1xf32>
      tpu.vector_store %arg8[%c0_100, %c0_101, %c0_102], %158 {strides = array<i32>} : memref<4x8x1xf32, #tpu.memory_space<vmem>>, vector<4x8x1xf32>,
      %cst_103 = arith.constant 0.000000e+00 : f32
      %160 = vector.broadcast %cst_103 : f32 to vector<4x8x8xf32>
      %c0_104 = arith.constant 0 : index
      %c0_105 = arith.constant 0 : index
      %c0_106 = arith.constant 0 : index
      %161 = vector.load %arg9[%c0_104, %c0_105, %c0_106] : memref<4x8x8xf32, #tpu.memory_space<vmem>>, vector<4x8x8xf32>
      tpu.vector_store %arg9[%c0_104, %c0_105, %c0_106], %160 {strides = array<i32>} : memref<4x8x8xf32, #tpu.memory_space<vmem>>, vector<4x8x8xf32>,
    } else {
    }
    %c0 = arith.constant 0 : index
    %c0_1 = arith.constant 0 : index
    %c0_2 = arith.constant 0 : index
    %3 = vector.load %arg3[%c0, %c0_1, %c0_2] : memref<1x8x32xbf16, #tpu.memory_space<vmem>>, vector<1x8x32xbf16>
    %4 = vector.shape_cast %3 : vector<1x8x32xbf16> to vector<8x32xbf16>
    %c0_3 = arith.constant 0 : index
    %c0_4 = arith.constant 0 : index
    %c0_5 = arith.constant 0 : index
    %5 = vector.load %arg4[%c0_3, %c0_4, %c0_5] : memref<1x8x32xbf16, #tpu.memory_space<vmem>>, vector<1x8x32xbf16>
    %6 = vector.shape_cast %5 : vector<1x8x32xbf16> to vector<8x32xbf16>
    %c0_6 = arith.constant 0 : index
    %c0_7 = arith.constant 0 : index
    %c0_8 = arith.constant 0 : index
    %7 = vector.load %arg5[%c0_6, %c0_7, %c0_8] : memref<1x8x32xbf16, #tpu.memory_space<vmem>>, vector<1x8x32xbf16>
    %8 = vector.shape_cast %7 : vector<1x8x32xbf16> to vector<8x32xbf16>
    %9 = vector.extract_strided_slice %4 {offsets = [0, 0], sizes = [8, 8], strides = [1, 1]} : vector<8x32xbf16> to vector<8x8xbf16>
    %10 = vector.extract_strided_slice %6 {offsets = [0, 0], sizes = [8, 8], strides = [1, 1]} : vector<8x32xbf16> to vector<8x8xbf16>
    %cst = arith.constant dense<0.000000e+00> : vector<8x8xf32>
    %11 = tpu.matmul %9, %10, %cst {dimension_numbers = #tpu.dot_dimension_numbers<[1], [1], [0], [0], [0, 0, 1, 0], [], []>} : vector<8x8xbf16>, vector<8x8xbf16>, vector<8x8xf32> -> vector<8x8xf32>
    %c0_9 = arith.constant 0 : index
    %c0_10 = arith.constant 0 : index
    %c0_11 = arith.constant 0 : index
    %12 = vector.load %arg7[%c0_9, %c0_10, %c0_11] : memref<4x8x1xf32, #tpu.memory_space<vmem>>, vector<1x8x1xf32>
    %13 = vector.shape_cast %12 : vector<1x8x1xf32> to vector<8x1xf32>
    %cst_12 = arith.constant dense<0xFF800000> : vector<8xf32>
    %14 = vector.multi_reduction <maximumf>, %11, %cst_12 [1] : vector<8x8xf32> to vector<8xf32>
    %15 = vector.shape_cast %14 : vector<8xf32> to vector<8x1xf32>
    %16 = arith.maximumf %13, %15 : vector<8x1xf32>
    %17 = arith.subf %13, %16 : vector<8x1xf32>
    %18 = math.exp %17 : vector<8x1xf32>
    %19 = vector.broadcast %16 : vector<8x1xf32> to vector<8x8xf32>
    %20 = arith.subf %11, %19 : vector<8x8xf32>
    %21 = math.exp %20 : vector<8x8xf32>
    %c0_13 = arith.constant 0 : index
    %c0_14 = arith.constant 0 : index
    %c0_15 = arith.constant 0 : index
    %22 = vector.load %arg8[%c0_13, %c0_14, %c0_15] : memref<4x8x1xf32, #tpu.memory_space<vmem>>, vector<1x8x1xf32>
    %23 = vector.shape_cast %22 : vector<1x8x1xf32> to vector<8x1xf32>
    %24 = arith.mulf %18, %23 : vector<8x1xf32>
    %cst_16 = arith.constant dense<0.000000e+00> : vector<8xf32>
    %25 = vector.multi_reduction <add>, %21, %cst_16 [1] : vector<8x8xf32> to vector<8xf32>
    %26 = vector.shape_cast %25 : vector<8xf32> to vector<8x1xf32>
    %27 = arith.addf %24, %26 : vector<8x1xf32>
    %c0_17 = arith.constant 0 : index
    %c0_18 = arith.constant 0 : index
    %c0_19 = arith.constant 0 : index
    %28 = vector.load %arg8[%c0_17, %c0_18, %c0_19] : memref<4x8x1xf32, #tpu.memory_space<vmem>>, vector<1x8x1xf32>
    %29 = vector.shape_cast %28 : vector<1x8x1xf32> to vector<8x1xf32>
    %30 = vector.shape_cast %27 : vector<8x1xf32> to vector<1x8x1xf32>
    tpu.vector_store %arg8[%c0_17, %c0_18, %c0_19], %30 {strides = array<i32>} : memref<4x8x1xf32, #tpu.memory_space<vmem>>, vector<1x8x1xf32>,
    %c0_20 = arith.constant 0 : index
    %c0_21 = arith.constant 0 : index
    %c0_22 = arith.constant 0 : index
    %31 = vector.load %arg9[%c0_20, %c0_21, %c0_22] : memref<4x8x8xf32, #tpu.memory_space<vmem>>, vector<1x8x8xf32>
    %32 = vector.shape_cast %31 : vector<1x8x8xf32> to vector<8x8xf32>
    %33 = vector.broadcast %18 : vector<8x1xf32> to vector<8x8xf32>
    %34 = arith.mulf %33, %32 : vector<8x8xf32>
    %35 = arith.truncf %21 : vector<8x8xf32> to vector<8x8xbf16>
    %36 = vector.extract_strided_slice %8 {offsets = [0, 0], sizes = [8, 8], strides = [1, 1]} : vector<8x32xbf16> to vector<8x8xbf16>
    %cst_23 = arith.constant dense<0.000000e+00> : vector<8x8xf32>
    %37 = tpu.matmul %35, %36, %cst_23 {dimension_numbers = #tpu.dot_dimension_numbers<[1], [0], [0], [1], [0, 0, 1, 1], [], []>} : vector<8x8xbf16>, vector<8x8xbf16>, vector<8x8xf32> -> vector<8x8xf32>
    %38 = arith.addf %34, %37 : vector<8x8xf32>
    %c0_24 = arith.constant 0 : index
    %c0_25 = arith.constant 0 : index
    %c0_26 = arith.constant 0 : index
    %39 = vector.load %arg9[%c0_24, %c0_25, %c0_26] : memref<4x8x8xf32, #tpu.memory_space<vmem>>, vector<1x8x8xf32>
    %40 = vector.shape_cast %39 : vector<1x8x8xf32> to vector<8x8xf32>
    %41 = vector.shape_cast %38 : vector<8x8xf32> to vector<1x8x8xf32>
    tpu.vector_store %arg9[%c0_24, %c0_25, %c0_26], %41 {strides = array<i32>} : memref<4x8x8xf32, #tpu.memory_space<vmem>>, vector<1x8x8xf32>,
    %c0_27 = arith.constant 0 : index
    %c0_28 = arith.constant 0 : index
    %c0_29 = arith.constant 0 : index
    %42 = vector.load %arg7[%c0_27, %c0_28, %c0_29] : memref<4x8x1xf32, #tpu.memory_space<vmem>>, vector<1x8x1xf32>
    %43 = vector.shape_cast %42 : vector<1x8x1xf32> to vector<8x1xf32>
    %44 = vector.shape_cast %16 : vector<8x1xf32> to vector<1x8x1xf32>
    tpu.vector_store %arg7[%c0_27, %c0_28, %c0_29], %44 {strides = array<i32>} : memref<4x8x1xf32, #tpu.memory_space<vmem>>, vector<1x8x1xf32>,
    %45 = vector.extract_strided_slice %4 {offsets = [0, 8], sizes = [8, 8], strides = [1, 1]} : vector<8x32xbf16> to vector<8x8xbf16>
    %46 = vector.extract_strided_slice %6 {offsets = [0, 8], sizes = [8, 8], strides = [1, 1]} : vector<8x32xbf16> to vector<8x8xbf16>
    %cst_30 = arith.constant dense<0.000000e+00> : vector<8x8xf32>
    %47 = tpu.matmul %45, %46, %cst_30 {dimension_numbers = #tpu.dot_dimension_numbers<[1], [1], [0], [0], [0, 0, 1, 0], [], []>} : vector<8x8xbf16>, vector<8x8xbf16>, vector<8x8xf32> -> vector<8x8xf32>
    %c1 = arith.constant 1 : index
    %c0_31 = arith.constant 0 : index
    %c0_32 = arith.constant 0 : index
    %48 = vector.load %arg7[%c1, %c0_31, %c0_32] : memref<4x8x1xf32, #tpu.memory_space<vmem>>, vector<1x8x1xf32>
    %49 = vector.shape_cast %48 : vector<1x8x1xf32> to vector<8x1xf32>
    %cst_33 = arith.constant dense<0xFF800000> : vector<8xf32>
    %50 = vector.multi_reduction <maximumf>, %47, %cst_33 [1] : vector<8x8xf32> to vector<8xf32>
    %51 = vector.shape_cast %50 : vector<8xf32> to vector<8x1xf32>
    %52 = arith.maximumf %49, %51 : vector<8x1xf32>
    %53 = arith.subf %49, %52 : vector<8x1xf32>
    %54 = math.exp %53 : vector<8x1xf32>
    %55 = vector.broadcast %52 : vector<8x1xf32> to vector<8x8xf32>
    %56 = arith.subf %47, %55 : vector<8x8xf32>
    %57 = math.exp %56 : vector<8x8xf32>
    %c1_34 = arith.constant 1 : index
    %c0_35 = arith.constant 0 : index
    %c0_36 = arith.constant 0 : index
    %58 = vector.load %arg8[%c1_34, %c0_35, %c0_36] : memref<4x8x1xf32, #tpu.memory_space<vmem>>, vector<1x8x1xf32>
    %59 = vector.shape_cast %58 : vector<1x8x1xf32> to vector<8x1xf32>
    %60 = arith.mulf %54, %59 : vector<8x1xf32>
    %cst_37 = arith.constant dense<0.000000e+00> : vector<8xf32>
    %61 = vector.multi_reduction <add>, %57, %cst_37 [1] : vector<8x8xf32> to vector<8xf32>
    %62 = vector.shape_cast %61 : vector<8xf32> to vector<8x1xf32>
    %63 = arith.addf %60, %62 : vector<8x1xf32>
    %c1_38 = arith.constant 1 : index
    %c0_39 = arith.constant 0 : index
    %c0_40 = arith.constant 0 : index
    %64 = vector.load %arg8[%c1_38, %c0_39, %c0_40] : memref<4x8x1xf32, #tpu.memory_space<vmem>>, vector<1x8x1xf32>
    %65 = vector.shape_cast %64 : vector<1x8x1xf32> to vector<8x1xf32>
    %66 = vector.shape_cast %63 : vector<8x1xf32> to vector<1x8x1xf32>
    tpu.vector_store %arg8[%c1_38, %c0_39, %c0_40], %66 {strides = array<i32>} : memref<4x8x1xf32, #tpu.memory_space<vmem>>, vector<1x8x1xf32>,
    %c1_41 = arith.constant 1 : index
    %c0_42 = arith.constant 0 : index
    %c0_43 = arith.constant 0 : index
    %67 = vector.load %arg9[%c1_41, %c0_42, %c0_43] : memref<4x8x8xf32, #tpu.memory_space<vmem>>, vector<1x8x8xf32>
    %68 = vector.shape_cast %67 : vector<1x8x8xf32> to vector<8x8xf32>
    %69 = vector.broadcast %54 : vector<8x1xf32> to vector<8x8xf32>
    %70 = arith.mulf %69, %68 : vector<8x8xf32>
    %71 = arith.truncf %57 : vector<8x8xf32> to vector<8x8xbf16>
    %72 = vector.extract_strided_slice %8 {offsets = [0, 8], sizes = [8, 8], strides = [1, 1]} : vector<8x32xbf16> to vector<8x8xbf16>
    %cst_44 = arith.constant dense<0.000000e+00> : vector<8x8xf32>
    %73 = tpu.matmul %71, %72, %cst_44 {dimension_numbers = #tpu.dot_dimension_numbers<[1], [0], [0], [1], [0, 0, 1, 1], [], []>} : vector<8x8xbf16>, vector<8x8xbf16>, vector<8x8xf32> -> vector<8x8xf32>
    %74 = arith.addf %70, %73 : vector<8x8xf32>
    %c1_45 = arith.constant 1 : index
    %c0_46 = arith.constant 0 : index
    %c0_47 = arith.constant 0 : index
    %75 = vector.load %arg9[%c1_45, %c0_46, %c0_47] : memref<4x8x8xf32, #tpu.memory_space<vmem>>, vector<1x8x8xf32>
    %76 = vector.shape_cast %75 : vector<1x8x8xf32> to vector<8x8xf32>
    %77 = vector.shape_cast %74 : vector<8x8xf32> to vector<1x8x8xf32>
    tpu.vector_store %arg9[%c1_45, %c0_46, %c0_47], %77 {strides = array<i32>} : memref<4x8x8xf32, #tpu.memory_space<vmem>>, vector<1x8x8xf32>,
    %c1_48 = arith.constant 1 : index
    %c0_49 = arith.constant 0 : index
    %c0_50 = arith.constant 0 : index
    %78 = vector.load %arg7[%c1_48, %c0_49, %c0_50] : memref<4x8x1xf32, #tpu.memory_space<vmem>>, vector<1x8x1xf32>
    %79 = vector.shape_cast %78 : vector<1x8x1xf32> to vector<8x1xf32>
    %80 = vector.shape_cast %52 : vector<8x1xf32> to vector<1x8x1xf32>
    tpu.vector_store %arg7[%c1_48, %c0_49, %c0_50], %80 {strides = array<i32>} : memref<4x8x1xf32, #tpu.memory_space<vmem>>, vector<1x8x1xf32>,
    %81 = vector.extract_strided_slice %4 {offsets = [0, 16], sizes = [8, 8], strides = [1, 1]} : vector<8x32xbf16> to vector<8x8xbf16>
    %82 = vector.extract_strided_slice %6 {offsets = [0, 16], sizes = [8, 8], strides = [1, 1]} : vector<8x32xbf16> to vector<8x8xbf16>
    %cst_51 = arith.constant dense<0.000000e+00> : vector<8x8xf32>
    %83 = tpu.matmul %81, %82, %cst_51 {dimension_numbers = #tpu.dot_dimension_numbers<[1], [1], [0], [0], [0, 0, 1, 0], [], []>} : vector<8x8xbf16>, vector<8x8xbf16>, vector<8x8xf32> -> vector<8x8xf32>
    %c2 = arith.constant 2 : index
    %c0_52 = arith.constant 0 : index
    %c0_53 = arith.constant 0 : index
    %84 = vector.load %arg7[%c2, %c0_52, %c0_53] : memref<4x8x1xf32, #tpu.memory_space<vmem>>, vector<1x8x1xf32>
    %85 = vector.shape_cast %84 : vector<1x8x1xf32> to vector<8x1xf32>
    %cst_54 = arith.constant dense<0xFF800000> : vector<8xf32>
    %86 = vector.multi_reduction <maximumf>, %83, %cst_54 [1] : vector<8x8xf32> to vector<8xf32>
    %87 = vector.shape_cast %86 : vector<8xf32> to vector<8x1xf32>
    %88 = arith.maximumf %85, %87 : vector<8x1xf32>
    %89 = arith.subf %85, %88 : vector<8x1xf32>
    %90 = math.exp %89 : vector<8x1xf32>
    %91 = vector.broadcast %88 : vector<8x1xf32> to vector<8x8xf32>
    %92 = arith.subf %83, %91 : vector<8x8xf32>
    %93 = math.exp %92 : vector<8x8xf32>
    %c2_55 = arith.constant 2 : index
    %c0_56 = arith.constant 0 : index
    %c0_57 = arith.constant 0 : index
    %94 = vector.load %arg8[%c2_55, %c0_56, %c0_57] : memref<4x8x1xf32, #tpu.memory_space<vmem>>, vector<1x8x1xf32>
    %95 = vector.shape_cast %94 : vector<1x8x1xf32> to vector<8x1xf32>
    %96 = arith.mulf %90, %95 : vector<8x1xf32>
    %cst_58 = arith.constant dense<0.000000e+00> : vector<8xf32>
    %97 = vector.multi_reduction <add>, %93, %cst_58 [1] : vector<8x8xf32> to vector<8xf32>
    %98 = vector.shape_cast %97 : vector<8xf32> to vector<8x1xf32>
    %99 = arith.addf %96, %98 : vector<8x1xf32>
    %c2_59 = arith.constant 2 : index
    %c0_60 = arith.constant 0 : index
    %c0_61 = arith.constant 0 : index
    %100 = vector.load %arg8[%c2_59, %c0_60, %c0_61] : memref<4x8x1xf32, #tpu.memory_space<vmem>>, vector<1x8x1xf32>
    %101 = vector.shape_cast %100 : vector<1x8x1xf32> to vector<8x1xf32>
    %102 = vector.shape_cast %99 : vector<8x1xf32> to vector<1x8x1xf32>
    tpu.vector_store %arg8[%c2_59, %c0_60, %c0_61], %102 {strides = array<i32>} : memref<4x8x1xf32, #tpu.memory_space<vmem>>, vector<1x8x1xf32>,
    %c2_62 = arith.constant 2 : index
    %c0_63 = arith.constant 0 : index
    %c0_64 = arith.constant 0 : index
    %103 = vector.load %arg9[%c2_62, %c0_63, %c0_64] : memref<4x8x8xf32, #tpu.memory_space<vmem>>, vector<1x8x8xf32>
    %104 = vector.shape_cast %103 : vector<1x8x8xf32> to vector<8x8xf32>
    %105 = vector.broadcast %90 : vector<8x1xf32> to vector<8x8xf32>
    %106 = arith.mulf %105, %104 : vector<8x8xf32>
    %107 = arith.truncf %93 : vector<8x8xf32> to vector<8x8xbf16>
    %108 = vector.extract_strided_slice %8 {offsets = [0, 16], sizes = [8, 8], strides = [1, 1]} : vector<8x32xbf16> to vector<8x8xbf16>
    %cst_65 = arith.constant dense<0.000000e+00> : vector<8x8xf32>
    %109 = tpu.matmul %107, %108, %cst_65 {dimension_numbers = #tpu.dot_dimension_numbers<[1], [0], [0], [1], [0, 0, 1, 1], [], []>} : vector<8x8xbf16>, vector<8x8xbf16>, vector<8x8xf32> -> vector<8x8xf32>
    %110 = arith.addf %106, %109 : vector<8x8xf32>
    %c2_66 = arith.constant 2 : index
    %c0_67 = arith.constant 0 : index
    %c0_68 = arith.constant 0 : index
    %111 = vector.load %arg9[%c2_66, %c0_67, %c0_68] : memref<4x8x8xf32, #tpu.memory_space<vmem>>, vector<1x8x8xf32>
    %112 = vector.shape_cast %111 : vector<1x8x8xf32> to vector<8x8xf32>
    %113 = vector.shape_cast %110 : vector<8x8xf32> to vector<1x8x8xf32>
    tpu.vector_store %arg9[%c2_66, %c0_67, %c0_68], %113 {strides = array<i32>} : memref<4x8x8xf32, #tpu.memory_space<vmem>>, vector<1x8x8xf32>,
    %c2_69 = arith.constant 2 : index
    %c0_70 = arith.constant 0 : index
    %c0_71 = arith.constant 0 : index
    %114 = vector.load %arg7[%c2_69, %c0_70, %c0_71] : memref<4x8x1xf32, #tpu.memory_space<vmem>>, vector<1x8x1xf32>
    %115 = vector.shape_cast %114 : vector<1x8x1xf32> to vector<8x1xf32>
    %116 = vector.shape_cast %88 : vector<8x1xf32> to vector<1x8x1xf32>
    tpu.vector_store %arg7[%c2_69, %c0_70, %c0_71], %116 {strides = array<i32>} : memref<4x8x1xf32, #tpu.memory_space<vmem>>, vector<1x8x1xf32>,
    %117 = vector.extract_strided_slice %4 {offsets = [0, 24], sizes = [8, 8], strides = [1, 1]} : vector<8x32xbf16> to vector<8x8xbf16>
    %118 = vector.extract_strided_slice %6 {offsets = [0, 24], sizes = [8, 8], strides = [1, 1]} : vector<8x32xbf16> to vector<8x8xbf16>
    %cst_72 = arith.constant dense<0.000000e+00> : vector<8x8xf32>
    %119 = tpu.matmul %117, %118, %cst_72 {dimension_numbers = #tpu.dot_dimension_numbers<[1], [1], [0], [0], [0, 0, 1, 0], [], []>} : vector<8x8xbf16>, vector<8x8xbf16>, vector<8x8xf32> -> vector<8x8xf32>
    %c3 = arith.constant 3 : index
    %c0_73 = arith.constant 0 : index
    %c0_74 = arith.constant 0 : index
    %120 = vector.load %arg7[%c3, %c0_73, %c0_74] : memref<4x8x1xf32, #tpu.memory_space<vmem>>, vector<1x8x1xf32>
    %121 = vector.shape_cast %120 : vector<1x8x1xf32> to vector<8x1xf32>
    %cst_75 = arith.constant dense<0xFF800000> : vector<8xf32>
    %122 = vector.multi_reduction <maximumf>, %119, %cst_75 [1] : vector<8x8xf32> to vector<8xf32>
    %123 = vector.shape_cast %122 : vector<8xf32> to vector<8x1xf32>
    %124 = arith.maximumf %121, %123 : vector<8x1xf32>
    %125 = arith.subf %121, %124 : vector<8x1xf32>
    %126 = math.exp %125 : vector<8x1xf32>
    %127 = vector.broadcast %124 : vector<8x1xf32> to vector<8x8xf32>
    %128 = arith.subf %119, %127 : vector<8x8xf32>
    %129 = math.exp %128 : vector<8x8xf32>
    %c3_76 = arith.constant 3 : index
    %c0_77 = arith.constant 0 : index
    %c0_78 = arith.constant 0 : index
    %130 = vector.load %arg8[%c3_76, %c0_77, %c0_78] : memref<4x8x1xf32, #tpu.memory_space<vmem>>, vector<1x8x1xf32>
    %131 = vector.shape_cast %130 : vector<1x8x1xf32> to vector<8x1xf32>
    %132 = arith.mulf %126, %131 : vector<8x1xf32>
    %cst_79 = arith.constant dense<0.000000e+00> : vector<8xf32>
    %133 = vector.multi_reduction <add>, %129, %cst_79 [1] : vector<8x8xf32> to vector<8xf32>
    %134 = vector.shape_cast %133 : vector<8xf32> to vector<8x1xf32>
    %135 = arith.addf %132, %134 : vector<8x1xf32>
    %c3_80 = arith.constant 3 : index
    %c0_81 = arith.constant 0 : index
    %c0_82 = arith.constant 0 : index
    %136 = vector.load %arg8[%c3_80, %c0_81, %c0_82] : memref<4x8x1xf32, #tpu.memory_space<vmem>>, vector<1x8x1xf32>
    %137 = vector.shape_cast %136 : vector<1x8x1xf32> to vector<8x1xf32>
    %138 = vector.shape_cast %135 : vector<8x1xf32> to vector<1x8x1xf32>
    tpu.vector_store %arg8[%c3_80, %c0_81, %c0_82], %138 {strides = array<i32>} : memref<4x8x1xf32, #tpu.memory_space<vmem>>, vector<1x8x1xf32>,
    %c3_83 = arith.constant 3 : index
    %c0_84 = arith.constant 0 : index
    %c0_85 = arith.constant 0 : index
    %139 = vector.load %arg9[%c3_83, %c0_84, %c0_85] : memref<4x8x8xf32, #tpu.memory_space<vmem>>, vector<1x8x8xf32>
    %140 = vector.shape_cast %139 : vector<1x8x8xf32> to vector<8x8xf32>
    %141 = vector.broadcast %126 : vector<8x1xf32> to vector<8x8xf32>
    %142 = arith.mulf %141, %140 : vector<8x8xf32>
    %143 = arith.truncf %129 : vector<8x8xf32> to vector<8x8xbf16>
    %144 = vector.extract_strided_slice %8 {offsets = [0, 24], sizes = [8, 8], strides = [1, 1]} : vector<8x32xbf16> to vector<8x8xbf16>
    %cst_86 = arith.constant dense<0.000000e+00> : vector<8x8xf32>
    %145 = tpu.matmul %143, %144, %cst_86 {dimension_numbers = #tpu.dot_dimension_numbers<[1], [0], [0], [1], [0, 0, 1, 1], [], []>} : vector<8x8xbf16>, vector<8x8xbf16>, vector<8x8xf32> -> vector<8x8xf32>
    %146 = arith.addf %142, %145 : vector<8x8xf32>
    %c3_87 = arith.constant 3 : index
    %c0_88 = arith.constant 0 : index
    %c0_89 = arith.constant 0 : index
    %147 = vector.load %arg9[%c3_87, %c0_88, %c0_89] : memref<4x8x8xf32, #tpu.memory_space<vmem>>, vector<1x8x8xf32>
    %148 = vector.shape_cast %147 : vector<1x8x8xf32> to vector<8x8xf32>
    %149 = vector.shape_cast %146 : vector<8x8xf32> to vector<1x8x8xf32>
    tpu.vector_store %arg9[%c3_87, %c0_88, %c0_89], %149 {strides = array<i32>} : memref<4x8x8xf32, #tpu.memory_space<vmem>>, vector<1x8x8xf32>,
    %c3_90 = arith.constant 3 : index
    %c0_91 = arith.constant 0 : index
    %c0_92 = arith.constant 0 : index
    %150 = vector.load %arg7[%c3_90, %c0_91, %c0_92] : memref<4x8x1xf32, #tpu.memory_space<vmem>>, vector<1x8x1xf32>
    %151 = vector.shape_cast %150 : vector<1x8x1xf32> to vector<8x1xf32>
    %152 = vector.shape_cast %124 : vector<8x1xf32> to vector<1x8x1xf32>
    tpu.vector_store %arg7[%c3_90, %c0_91, %c0_92], %152 {strides = array<i32>} : memref<4x8x1xf32, #tpu.memory_space<vmem>>, vector<1x8x1xf32>,
    %c0_i32_93 = arith.constant 0 : i32
    %153 = arith.cmpi eq, %arg2, %c0_i32_93 : i32
    %154 = arith.extui %153 : i1 to i32
    %c0_i32_94 = arith.constant 0 : i32
    %155 = arith.cmpi ne, %154, %c0_i32_94 : i32
    scf.if %155 {
      %c0_95 = arith.constant 0 : index
      %c0_96 = arith.constant 0 : index
      %c0_97 = arith.constant 0 : index
      %156 = vector.load %arg9[%c0_95, %c0_96, %c0_97] : memref<4x8x8xf32, #tpu.memory_space<vmem>>, vector<1x8x8xf32>
      %157 = vector.shape_cast %156 : vector<1x8x8xf32> to vector<8x8xf32>
      %c0_98 = arith.constant 0 : index
      %c0_99 = arith.constant 0 : index
      %c0_100 = arith.constant 0 : index
      %158 = vector.load %arg8[%c0_98, %c0_99, %c0_100] : memref<4x8x1xf32, #tpu.memory_space<vmem>>, vector<1x8x1xf32>
      %159 = vector.shape_cast %158 : vector<1x8x1xf32> to vector<8x1xf32>
      %160 = tpu.reciprocal %159 : vector<8x1xf32> -> vector<8x1xf32>
      %161 = vector.broadcast %160 : vector<8x1xf32> to vector<8x8xf32>
      %162 = arith.mulf %157, %161 : vector<8x8xf32>
      %c1_101 = arith.constant 1 : index
      %c0_102 = arith.constant 0 : index
      %c0_103 = arith.constant 0 : index
      %163 = vector.load %arg9[%c1_101, %c0_102, %c0_103] : memref<4x8x8xf32, #tpu.memory_space<vmem>>, vector<1x8x8xf32>
      %164 = vector.shape_cast %163 : vector<1x8x8xf32> to vector<8x8xf32>
      %c1_104 = arith.constant 1 : index
      %c0_105 = arith.constant 0 : index
      %c0_106 = arith.constant 0 : index
      %165 = vector.load %arg8[%c1_104, %c0_105, %c0_106] : memref<4x8x1xf32, #tpu.memory_space<vmem>>, vector<1x8x1xf32>
      %166 = vector.shape_cast %165 : vector<1x8x1xf32> to vector<8x1xf32>
      %167 = tpu.reciprocal %166 : vector<8x1xf32> -> vector<8x1xf32>
      %168 = vector.broadcast %167 : vector<8x1xf32> to vector<8x8xf32>
      %169 = arith.mulf %164, %168 : vector<8x8xf32>
      %c2_107 = arith.constant 2 : index
      %c0_108 = arith.constant 0 : index
      %c0_109 = arith.constant 0 : index
      %170 = vector.load %arg9[%c2_107, %c0_108, %c0_109] : memref<4x8x8xf32, #tpu.memory_space<vmem>>, vector<1x8x8xf32>
      %171 = vector.shape_cast %170 : vector<1x8x8xf32> to vector<8x8xf32>
      %c2_110 = arith.constant 2 : index
      %c0_111 = arith.constant 0 : index
      %c0_112 = arith.constant 0 : index
      %172 = vector.load %arg8[%c2_110, %c0_111, %c0_112] : memref<4x8x1xf32, #tpu.memory_space<vmem>>, vector<1x8x1xf32>
      %173 = vector.shape_cast %172 : vector<1x8x1xf32> to vector<8x1xf32>
      %174 = tpu.reciprocal %173 : vector<8x1xf32> -> vector<8x1xf32>
      %175 = vector.broadcast %174 : vector<8x1xf32> to vector<8x8xf32>
      %176 = arith.mulf %171, %175 : vector<8x8xf32>
      %c3_113 = arith.constant 3 : index
      %c0_114 = arith.constant 0 : index
      %c0_115 = arith.constant 0 : index
      %177 = vector.load %arg9[%c3_113, %c0_114, %c0_115] : memref<4x8x8xf32, #tpu.memory_space<vmem>>, vector<1x8x8xf32>
      %178 = vector.shape_cast %177 : vector<1x8x8xf32> to vector<8x8xf32>
      %c3_116 = arith.constant 3 : index
      %c0_117 = arith.constant 0 : index
      %c0_118 = arith.constant 0 : index
      %179 = vector.load %arg8[%c3_116, %c0_117, %c0_118] : memref<4x8x1xf32, #tpu.memory_space<vmem>>, vector<1x8x1xf32>
      %180 = vector.shape_cast %179 : vector<1x8x1xf32> to vector<8x1xf32>
      %181 = tpu.reciprocal %180 : vector<8x1xf32> -> vector<8x1xf32>
      %182 = vector.broadcast %181 : vector<8x1xf32> to vector<8x8xf32>
      %183 = arith.mulf %178, %182 : vector<8x8xf32>
      %184 = tpu.concatenate %162, %169, %176, %183 in 1 : vector<8x8xf32>, vector<8x8xf32>, vector<8x8xf32>, vector<8x8xf32> -> vector<8x32xf32>
      %185 = arith.truncf %184 : vector<8x32xf32> to vector<8x32xbf16>
      %c0_119 = arith.constant 0 : index
      %c0_120 = arith.constant 0 : index
      %c0_121 = arith.constant 0 : index
      %186 = vector.load %arg6[%c0_119, %c0_120, %c0_121] : memref<1x8x32xbf16, #tpu.memory_space<vmem>>, vector<1x8x32xbf16>
      %187 = vector.shape_cast %186 : vector<1x8x32xbf16> to vector<8x32xbf16>
      %188 = vector.shape_cast %185 : vector<8x32xbf16> to vector<1x8x32xbf16>
      tpu.vector_store %arg6[%c0_119, %c0_120, %c0_121], %188 {strides = array<i32>} : memref<1x8x32xbf16, #tpu.memory_space<vmem>>, vector<1x8x32xbf16>,
    } else {
    }
    return
  }
  func.func @transform_0(%arg0: i32, %arg1: i32, %arg2: i32) -> (i32, i32, i32) {
    %c0_i32 = arith.constant 0 : i32
    %c0_i32_0 = arith.constant 0 : i32
    return %arg0, %arg1, %c0_i32 : i32, i32, i32
  }
  func.func @transform_1(%arg0: i32, %arg1: i32, %arg2: i32) -> (i32, i32, i32) {
    %c0_i32 = arith.constant 0 : i32
    %c0_i32_0 = arith.constant 0 : i32
    return %arg0, %arg2, %c0_i32 : i32, i32, i32
  }
  func.func @transform_2(%arg0: i32, %arg1: i32, %arg2: i32) -> (i32, i32, i32) {
    %c0_i32 = arith.constant 0 : i32
    %c0_i32_0 = arith.constant 0 : i32
    return %arg0, %arg2, %c0_i32 : i32, i32, i32
  }
  func.func @transform_3(%arg0: i32, %arg1: i32, %arg2: i32) -> (i32, i32, i32) {
    %c0_i32 = arith.constant 0 : i32
    %c0_i32_0 = arith.constant 0 : i32
    return %arg0, %arg1, %c0_i32 : i32, i32, i32
  }
}

</mosaic_0001>

<llo_original>
// kernel: transformer_model_forward.6
$region0: #{transformer_model_forward.6}
  #allocation0 [shape = 'u32[]', space=smem, size = 0x4, offset = 0x4, fixed_abs, tag = 'smem constant byte address 0x4 - core index']
  #allocation1 [shape = 'u32[144,128]{1,0:T(1,128)}', space=vmem, size = 0x12000, scoped, tag = 'internal scratch']
  %s0 = inlined_call_operand.vmem [shape: bf16[2,8,32], index: 0, kind: input, shape index: {}]
  %s1 = inlined_call_operand.vmem [shape: bf16[32,96], index: 1, kind: input, shape index: {}]
  %s2 = inlined_call_operand.vmem [shape: f32[1,96], index: 2, kind: input, shape index: {}]
  %s3 = inlined_call_operand.vmem [shape: bf16[2,8,32], index: 3, kind: output, shape index: {0}]
  %s4 = inlined_call_operand.vmem [shape: bf16[2,8,32], index: 4, kind: output, shape index: {1}]
  %s5 = inlined_call_operand.vmem [shape: bf16[2,8,32], index: 5, kind: output, shape index: {2}]
  %6 = xla_tuple %s3, %s4, %s5
  %s7 = sld [smem:[#allocation0]]
  $region61: #{transformer_model_forward.6} parent=0
    _
  %s9 = ssub.s32 1, %s7
  %s10 = scalar_select 0, %s9, %s7
  loop: start=0, step=1, limit=4
  $region2: #{transformer_model_forward.6} parent=0 // loop_pre_header
    _
  $region3: #{transformer_model_forward.6} parent=0 // loop_header
    %s12 = sphi 0, %s16
    %p13 = scmp.ge.s32.totalorder %s12, 4
    %s19 = sphi 0, %s31
    %s20 = sphi 0, %s27
    %s21 = sphi 0, %s19
    %s22 = sphi 0, %s20
    %s23 = sphi 0, %s21
    %s24 = sphi 0, %s22
    %s36 = sphi 0, %s38
    %s39 = sphi 0, %s36
    %s40 = sphi 0, %s39
    %s56 = sphi 0, %s40
    %s60 = sphi 0, %s60
    %s62 = sphi 0, %s60
    %s63 = sphi 0, %s62
    %s77 = sphi 0, %s63
    %s81 = sphi 0, %s81
    %s83 = sphi 0, %s81
    %s84 = sphi 0, %s83
    %s98 = sphi 0, %s84
    %s106 = sphi 0, %s108
    %s109 = sphi 0, %s106
    %s110 = sphi 0, %s109
    %s126 = sphi 0, %s110
    %s134 = sphi 0, %s136
    %s137 = sphi 0, %s134
    %s138 = sphi 0, %s137
    %s154 = sphi 0, %s138
    %s162 = sphi 0, %s164
    %s165 = sphi 0, %s162
    %s166 = sphi 0, %s165
    %s182 = sphi 0, %s166
  $region4: #{transformer_model_forward.6} parent=0 // loop_header_branch
    %15 = sbr.rel (%p13) target = $region8
  $region5: #{transformer_model_forward.6} parent=0 // loop_body
    %s17 = ssub.s32 %s12, 1
    %s18 = ssub.s32 %s12, 2
    %s25 = sadd.s32 1, %s20
    %p26 = scmp.ge.s32.totalorder %s25, 1
    %s27 = scalar_select %p26, 0, %s25
    %s28 = sadd.s32 1, %s19
    %s29 = scalar_select %p26, %s28, %s19
    %p30 = scmp.ge.s32.totalorder %s29, 2
    %s31 = scalar_select %p30, 0, %s29
    %s32 = ssub.s32 %s19, %s31
    %s33 = ssub.s32 %s20, %s27
    %s34 = sor.u32 %s32, %s33
    %p35 = scmp.eq.s32.totalorder %s34, 0
    %s37 = sadd.s32 %s36, 1
    %s38 = scalar_select %p35, %s36, %s37
    %p41 = pneg %p35
    %p42 = scmp.eq.s32.totalorder %s12, 1
    %p43 = por %p41, %p42
    %p44 = scmp.ne.s32.totalorder %s36, %s39
    %p45 = scmp.eq.s32.totalorder %s12, 0
    %p46 = por %p44, %p45
    %p47 = scmp.ne.s32.totalorder %s36, %s39
    %p48 = scmp.eq.s32.totalorder %s17, 1
    %p49 = por %p47, %p48
    %p50 = scmp.ne.s32.totalorder %s39, %s40
    %p51 = scmp.eq.s32.totalorder %s17, 0
    %p52 = por %p50, %p51
    %p53 = scmp.ne.s32.totalorder %s39, %s40
    %p54 = scmp.eq.s32.totalorder %s18, 1
    %p55 = por %p53, %p54
    %p57 = scmp.ne.s32.totalorder %s40, %s56
    %p58 = scmp.eq.s32.totalorder %s18, 0
    %p59 = por %p57, %p58
    %s61 = sadd.s32 %s60, 1
    %p64 = scmp.eq.s32.totalorder %s12, 1
    %p65 = scmp.ne.s32.totalorder %s60, %s62
    %p66 = scmp.eq.s32.totalorder %s12, 0
    %p67 = por %p65, %p66
    %p68 = scmp.ne.s32.totalorder %s60, %s62
    %p69 = scmp.eq.s32.totalorder %s17, 1
    %p70 = por %p68, %p69
    %p71 = scmp.ne.s32.totalorder %s62, %s63
    %p72 = scmp.eq.s32.totalorder %s17, 0
    %p73 = por %p71, %p72
    %p74 = scmp.ne.s32.totalorder %s62, %s63
    %p75 = scmp.eq.s32.totalorder %s18, 1
    %p76 = por %p74, %p75
    %p78 = scmp.ne.s32.totalorder %s63, %s77
    %p79 = scmp.eq.s32.totalorder %s18, 0
    %p80 = por %p78, %p79
    %s82 = sadd.s32 %s81, 1
    %p85 = scmp.eq.s32.totalorder %s12, 1
    %p86 = scmp.ne.s32.totalorder %s81, %s83
    %p87 = scmp.eq.s32.totalorder %s12, 0
    %p88 = por %p86, %p87
    %p89 = scmp.ne.s32.totalorder %s81, %s83
    %p90 = scmp.eq.s32.totalorder %s17, 1
    %p91 = por %p89, %p90
    %p92 = scmp.ne.s32.totalorder %s83, %s84
    %p93 = scmp.eq.s32.totalorder %s17, 0
    %p94 = por %p92, %p93
    %p95 = scmp.ne.s32.totalorder %s83, %s84
    %p96 = scmp.eq.s32.totalorder %s18, 1
    %p97 = por %p95, %p96
    %p99 = scmp.ne.s32.totalorder %s84, %s98
    %p100 = scmp.eq.s32.totalorder %s18, 0
    %p101 = por %p99, %p100
    %s102 = ssub.s32 %s19, %s31
    %s103 = ssub.s32 %s20, %s27
    %s104 = sor.u32 %s102, %s103
    %p105 = scmp.eq.s32.totalorder %s104, 0
    %s107 = sadd.s32 %s106, 1
    %s108 = scalar_select %p105, %s106, %s107
    %p111 = pneg %p105
    %p112 = scmp.eq.s32.totalorder %s12, 1
    %p113 = por %p111, %p112
    %p114 = scmp.ne.s32.totalorder %s106, %s109
    %p115 = scmp.eq.s32.totalorder %s12, 0
    %p116 = por %p114, %p115
    %p117 = scmp.ne.s32.totalorder %s106, %s109
    %p118 = scmp.eq.s32.totalorder %s17, 1
    %p119 = por %p117, %p118
    %p120 = scmp.ne.s32.totalorder %s109, %s110
    %p121 = scmp.eq.s32.totalorder %s17, 0
    %p122 = por %p120, %p121
    %p123 = scmp.ne.s32.totalorder %s109, %s110
    %p124 = scmp.eq.s32.totalorder %s18, 1
    %p125 = por %p123, %p124
    %p127 = scmp.ne.s32.totalorder %s110, %s126
    %p128 = scmp.eq.s32.totalorder %s18, 0
    %p129 = por %p127, %p128
    %s130 = ssub.s32 %s19, %s31
    %s131 = ssub.s32 %s20, %s27
    %s132 = sor.u32 %s130, %s131
    %p133 = scmp.eq.s32.totalorder %s132, 0
    %s135 = sadd.s32 %s134, 1
    %s136 = scalar_select %p133, %s134, %s135
    %p139 = pneg %p133
    %p140 = scmp.eq.s32.totalorder %s12, 1
    %p141 = por %p139, %p140
    %p142 = scmp.ne.s32.totalorder %s134, %s137
    %p143 = scmp.eq.s32.totalorder %s12, 0
    %p144 = por %p142, %p143
    %p145 = scmp.ne.s32.totalorder %s134, %s137
    %p146 = scmp.eq.s32.totalorder %s17, 1
    %p147 = por %p145, %p146
    %p148 = scmp.ne.s32.totalorder %s137, %s138
    %p149 = scmp.eq.s32.totalorder %s17, 0
    %p150 = por %p148, %p149
    %p151 = scmp.ne.s32.totalorder %s137, %s138
    %p152 = scmp.eq.s32.totalorder %s18, 1
    %p153 = por %p151, %p152
    %p155 = scmp.ne.s32.totalorder %s138, %s154
    %p156 = scmp.eq.s32.totalorder %s18, 0
    %p157 = por %p155, %p156
    %s158 = ssub.s32 %s19, %s31
    %s159 = ssub.s32 %s20, %s27
    %s160 = sor.u32 %s158, %s159
    %p161 = scmp.eq.s32.totalorder %s160, 0
    %s163 = sadd.s32 %s162, 1
    %s164 = scalar_select %p161, %s162, %s163
    %p167 = pneg %p161
    %p168 = scmp.eq.s32.totalorder %s12, 1
    %p169 = por %p167, %p168
    %p170 = scmp.ne.s32.totalorder %s162, %s165
    %p171 = scmp.eq.s32.totalorder %s12, 0
    %p172 = por %p170, %p171
    %p173 = scmp.ne.s32.totalorder %s162, %s165
    %p174 = scmp.eq.s32.totalorder %s17, 1
    %p175 = por %p173, %p174
    %p176 = scmp.ne.s32.totalorder %s165, %s166
    %p177 = scmp.eq.s32.totalorder %s17, 0
    %p178 = por %p176, %p177
    %p179 = scmp.ne.s32.totalorder %s165, %s166
    %p180 = scmp.eq.s32.totalorder %s18, 1
    %p181 = por %p179, %p180
    %p183 = scmp.ne.s32.totalorder %s166, %s182
    %p184 = scmp.eq.s32.totalorder %s18, 0
    %p185 = por %p183, %p184
    %p186 = scmp.le.s32.totalorder 1, %s12
    %p187 = scmp.lt.s32.totalorder %s12, 3
    %p188 = pnand %p186, %p187
    %p189 = pneg %p188
    // Predicated region
    $region9: #{transformer_model_forward.6} parent=5 // pred_check
      _
    $region10: #{transformer_model_forward.6} parent=5 // pred_check_branch
      %191 = sbr.rel (%p188) target = $region12
    $region11: #{transformer_model_forward.6} parent=5 // pred_region
      %s192 = ssub.s32 %s12, 1
      // Predicated region
      $region13: #{transformer_model_forward.6} parent=11 // pred_check
        %p193 = pneg %p73
      $region14: #{transformer_model_forward.6} parent=11 // pred_check_branch
        %195 = sbr.rel (%p193) target = $region16
      $region15: #{transformer_model_forward.6} parent=11 // pred_region
        _
      $region16: #{transformer_model_forward.6} parent=11 // pred_fallthru
        _
      // Predicated region
      $region17: #{transformer_model_forward.6} parent=11 // pred_check
        %p196 = pneg %p94
      $region18: #{transformer_model_forward.6} parent=11 // pred_check_branch
        %198 = sbr.rel (%p196) target = $region20
      $region19: #{transformer_model_forward.6} parent=11 // pred_region
        _
      $region20: #{transformer_model_forward.6} parent=11 // pred_fallthru
        _
    $region12: #{transformer_model_forward.6} parent=5 // pred_fallthru
      _
    %p199 = scmp.lt.s32.totalorder %s12, 2
    // Predicated region
    $region21: #{transformer_model_forward.6} parent=5 // pred_check
      %p200 = pneg %p199
    $region22: #{transformer_model_forward.6} parent=5 // pred_check_branch
      %202 = sbr.rel (%p200) target = $region24
    $region23: #{transformer_model_forward.6} parent=5 // pred_region
      // Predicated region
      $region25: #{transformer_model_forward.6} parent=23 // pred_check
        %p203 = pneg %p46
      $region26: #{transformer_model_forward.6} parent=23 // pred_check_branch
        %205 = sbr.rel (%p203) target = $region28
      $region27: #{transformer_model_forward.6} parent=23 // pred_region
        %p206 = scmp.lt.s32.totalorder %s19, 1
        %s207 = scalar_select %p206, %s19, 1
        %p208 = scmp.lt.s32.totalorder %s20, 0
        %s209 = scalar_select %p208, %s20, 0
        %s210 = sadd.s32 %s209, %s207
        %s211 = smul.addr %s210, 4
        %s212 = scalar_lea.vmem %s0, %s211
      $region28: #{transformer_model_forward.6} parent=23 // pred_fallthru
        _
    $region24: #{transformer_model_forward.6} parent=5 // pred_fallthru
      _
    %p213 = scmp.le.s32.totalorder 1, %s12
    %p214 = scmp.lt.s32.totalorder %s12, 3
    %p215 = pnand %p213, %p214
    %p216 = pneg %p215
    // Predicated region
    $region29: #{transformer_model_forward.6} parent=5 // pred_check
      _
    $region30: #{transformer_model_forward.6} parent=5 // pred_check_branch
      %218 = sbr.rel (%p215) target = $region32
    $region31: #{transformer_model_forward.6} parent=5 // pred_region
      %s219 = ssub.s32 %s12, 1
      %p220 = scmp.lt.s32.totalorder %s21, 1
      %s221 = scalar_select %p220, %s21, 1
      %p222 = scmp.lt.s32.totalorder %s22, 0
      %s223 = scalar_select %p222, %s22, 0
      %s224 = sadd.s32 %s223, %s221
      %s225 = smul.addr %s224, 4
      %s226 = scalar_lea.vmem %s0, %s225
      %p227 = pneg %p52
      %p228 = pneg %p49
      %p229 = pneg %p73
      %p230 = pneg %p70
      %p231 = pneg %p94
      %p232 = pneg %p91
      %p233 = pneg %p122
      %p234 = pneg %p119
      %p235 = scmp.lt.s32.totalorder %s21, 1
      %s236 = scalar_select %p235, %s21, 1
      %p237 = scmp.lt.s32.totalorder %s22, 0
      %s238 = scalar_select %p237, %s22, 0
      %s239 = sadd.s32 %s238, %s236
      %s240 = smul.addr %s239, 4
      %s241 = scalar_lea.vmem %s3, %s240
      %p242 = pneg %p150
      %p243 = pneg %p147
      %p244 = scmp.lt.s32.totalorder %s21, 1
      %s245 = scalar_select %p244, %s21, 1
      %p246 = scmp.lt.s32.totalorder %s22, 0
      %s247 = scalar_select %p246, %s22, 0
      %s248 = sadd.s32 %s247, %s245
      %s249 = smul.addr %s248, 4
      %s250 = scalar_lea.vmem %s4, %s249
      %p251 = pneg %p178
      %p252 = pneg %p175
      %p253 = scmp.lt.s32.totalorder %s21, 1
      %s254 = scalar_select %p253, %s21, 1
      %p255 = scmp.lt.s32.totalorder %s22, 0
      %s256 = scalar_select %p255, %s22, 0
      %s257 = sadd.s32 %s256, %s254
      %s258 = smul.addr %s257, 4
      %s259 = scalar_lea.vmem %s5, %s258
      %p260 = scmp.lt.s32.totalorder %s21, 1
      %s261 = scalar_select %p260, %s21, 1
      %p262 = scmp.lt.s32.totalorder %s22, 0
      %s263 = scalar_select %p262, %s22, 0
      %s264 = sadd.s32 %s263, %s261
      %s265 = smul.addr %s264, 4
      %s266 = scalar_lea.vmem %s0, %s265
      %p267 = scmp.lt.s32.totalorder %s21, 1
      %s268 = scalar_select %p267, %s21, 1
      %p269 = scmp.lt.s32.totalorder %s22, 0
      %s270 = scalar_select %p269, %s22, 0
      %s271 = sadd.s32 %s270, %s268
      %s272 = smul.addr %s271, 4
      %s273 = scalar_lea.vmem %s3, %s272
      %p274 = scmp.lt.s32.totalorder %s21, 1
      %s275 = scalar_select %p274, %s21, 1
      %p276 = scmp.lt.s32.totalorder %s22, 0
      %s277 = scalar_select %p276, %s22, 0
      %s278 = sadd.s32 %s277, %s275
      %s279 = smul.addr %s278, 4
      %s280 = scalar_lea.vmem %s4, %s279
      %p281 = scmp.lt.s32.totalorder %s21, 1
      %s282 = scalar_select %p281, %s21, 1
      %p283 = scmp.lt.s32.totalorder %s22, 0
      %s284 = scalar_select %p283, %s22, 0
      %s285 = sadd.s32 %s284, %s282
      %s286 = smul.addr %s285, 4
      %s287 = scalar_lea.vmem %s5, %s286
      %v289 = vld [vmem:[%s266] sm:$0xf]
      %v290 = vld [vmem:[%s1] sm:$0xf]
      %v291 = vld [vmem:[%s1 + $0x4] sm:$0xf]
      %v292 = vld [vmem:[%s1 + $0x8] sm:$0xf]
      %v293 = vld [vmem:[%s1 + $0xc] sm:$0xf]
      %v294 = vld [vmem:[%s2] sm:$0x1]
      %v296 = vlaneseq
      %v297 = vshrl.u32 %v296, 7
      %v298 = vsub.s32 0, %v297
      %v299 = vrot.slane %v294, %v298
      %v305 = vunpack.c.l.b16 %v290
      %v306 = vunpack.c.l.b16 %v291
      %v307 = vunpack.c.l.b16 %v292
      %v308 = vunpack.c.l.b16 %v293
      %v309 = vpack.c.b16 %v306, %v305
      %v310 = vpack.c.b16 %v308, %v307
      %vm313 = vcmask 261120
      %v315 = vsel %vm313, %v289, 0
      %317 = vmatprep.subr.bf16.mxu0 0
      %318 = vmatpush1.bf16.msra.mxu0 %v309
      %319 = vmatprep.subr.bf16.mxu0 0
      %320 = vmatpush1.bf16.msra.mxu0 %v310
      %321 = vmatprep.subr.bf16.mxu0 0
      %322 = vmatpush1.bf16.msra.mxu0 0
      %323 = vmatprep.subr.bf16.mxu0 0
      %324 = vmatpush1.bf16.msra.mxu0 0
      %325 = vmatprep.subr.bf16.mxu0 0
      %326 = vmatpush1.bf16.msra.mxu0 0
      %327 = vmatprep.subr.bf16.mxu0 0
      %328 = vmatpush1.bf16.msra.mxu0 0
      %329 = vmatprep.subr.bf16.mxu0 0
      %330 = vmatpush1.bf16.msra.mxu0 0
      %331 = vmatprep.subr.bf16.mxu0 0
      %332 = vmatpush1.bf16.msra.mxu0 0
      %333 = vmatprep.subr.bf16.mxu0 0
      %334 = vmatpush1.bf16.msra.mxu0 0
      %335 = vmatprep.subr.bf16.mxu0 0
      %336 = vmatpush1.bf16.msra.mxu0 0
      %337 = vmatprep.subr.bf16.mxu0 0
      %338 = vmatpush1.bf16.msra.mxu0 0
      %339 = vmatprep.subr.bf16.mxu0 0
      %340 = vmatpush1.bf16.msra.mxu0 0
      %341 = vmatprep.subr.bf16.mxu0 0
      %342 = vmatpush1.bf16.msra.mxu0 0
      %343 = vmatprep.subr.bf16.mxu0 0
      %344 = vmatpush1.bf16.msra.mxu0 0
      %345 = vmatprep.subr.bf16.mxu0 0
      %346 = vmatpush1.bf16.msra.mxu0 0
      %347 = vmatprep.subr.bf16.mxu0 0
      %348 = vmatpush1.bf16.msra.mxu0 0
      %349 = vmatprep.mubr.bf16.mxu0 0
      %350 = vmatmul.mubr.bf16.gmra.mrb[0].mxu0 %v315
      %v351 = vpop.f32.mrb[0].mxu0
      %v352 = vadd.f32 %v299, %v351
      %v353 = vpop.f32.mrb[0].mxu0
      %v354 = vpop.f32.mrb[0].mxu0
      %v355 = vpop.f32.mrb[0].mxu0
      %356 = vdwg.mxu0
      %v357 = vpack.c.bf16 %v352, %v352
      %vm358 = vcmask 257024
      %359 = vst.msk [vmem:[%s273] sm:$0xf] %vm358, %v357
      %v361 = vunpack.c.l.b16 %v357
      %v362 = vpack.c.b16 %v361, %v361
      %363 = vrot.lane.b32.xlu0 %v362, 96
      %v364 = vpop.permute.xlu0 %363
      %366 = vst.msk [vmem:[%s280] sm:$0xf] %vm358, %v364
      %367 = vrot.lane.b32.xlu0 %v362, 64
      %v368 = vpop.permute.xlu0 %367
      %370 = vst.msk [vmem:[%s287] sm:$0xf] %vm358, %v368
      %p371 = scmp.lt.s32.totalorder %s21, 1
      %s372 = scalar_select %p371, %s21, 1
      %p373 = scmp.lt.s32.totalorder %s22, 0
      %s374 = scalar_select %p373, %s22, 0
      %s375 = sadd.s32 %s374, %s372
      %s376 = smul.addr %s375, 4
      %s377 = scalar_lea.vmem %s3, %s376
      %p378 = scmp.lt.s32.totalorder %s21, 1
      %s379 = scalar_select %p378, %s21, 1
      %p380 = scmp.lt.s32.totalorder %s22, 0
      %s381 = scalar_select %p380, %s22, 0
      %s382 = sadd.s32 %s381, %s379
      %s383 = smul.addr %s382, 4
      %s384 = scalar_lea.vmem %s4, %s383
      %p385 = scmp.lt.s32.totalorder %s21, 1
      %s386 = scalar_select %p385, %s21, 1
      %p387 = scmp.lt.s32.totalorder %s22, 0
      %s388 = scalar_select %p387, %s22, 0
      %s389 = sadd.s32 %s388, %s386
      %s390 = smul.addr %s389, 4
      %s391 = scalar_lea.vmem %s5, %s390
      // Predicated region
      $region33: #{transformer_model_forward.6} parent=31 // pred_check
        %p392 = pneg %p119
      $region34: #{transformer_model_forward.6} parent=31 // pred_check_branch
        %394 = sbr.rel (%p392) target = $region36
      $region35: #{transformer_model_forward.6} parent=31 // pred_region
        _
      $region36: #{transformer_model_forward.6} parent=31 // pred_fallthru
        _
      // Predicated region
      $region37: #{transformer_model_forward.6} parent=31 // pred_check
        %p395 = pneg %p147
      $region38: #{transformer_model_forward.6} parent=31 // pred_check_branch
        %397 = sbr.rel (%p395) target = $region40
      $region39: #{transformer_model_forward.6} parent=31 // pred_region
        _
      $region40: #{transformer_model_forward.6} parent=31 // pred_fallthru
        _
      // Predicated region
      $region41: #{transformer_model_forward.6} parent=31 // pred_check
        %p398 = pneg %p175
      $region42: #{transformer_model_forward.6} parent=31 // pred_check_branch
        %400 = sbr.rel (%p398) target = $region44
      $region43: #{transformer_model_forward.6} parent=31 // pred_region
        _
      $region44: #{transformer_model_forward.6} parent=31 // pred_fallthru
        _
    $region32: #{transformer_model_forward.6} parent=5 // pred_fallthru
      _
    %p401 = scmp.le.s32.totalorder 2, %s12
    // Predicated region
    $region45: #{transformer_model_forward.6} parent=5 // pred_check
      %p402 = pneg %p401
    $region46: #{transformer_model_forward.6} parent=5 // pred_check_branch
      %404 = sbr.rel (%p402) target = $region48
    $region47: #{transformer_model_forward.6} parent=5 // pred_region
      %s405 = ssub.s32 %s12, 2
      // Predicated region
      $region49: #{transformer_model_forward.6} parent=47 // pred_check
        %p406 = pneg %p125
      $region50: #{transformer_model_forward.6} parent=47 // pred_check_branch
        %408 = sbr.rel (%p406) target = $region52
      $region51: #{transformer_model_forward.6} parent=47 // pred_region
        %p409 = scmp.lt.s32.totalorder %s23, 1
        %s410 = scalar_select %p409, %s23, 1
        %p411 = scmp.lt.s32.totalorder %s24, 0
        %s412 = scalar_select %p411, %s24, 0
        %s413 = sadd.s32 %s412, %s410
        %s414 = smul.addr %s413, 4
        %s415 = scalar_lea.vmem %s3, %s414
      $region52: #{transformer_model_forward.6} parent=47 // pred_fallthru
        _
      // Predicated region
      $region53: #{transformer_model_forward.6} parent=47 // pred_check
        %p416 = pneg %p153
      $region54: #{transformer_model_forward.6} parent=47 // pred_check_branch
        %418 = sbr.rel (%p416) target = $region56
      $region55: #{transformer_model_forward.6} parent=47 // pred_region
        %p419 = scmp.lt.s32.totalorder %s23, 1
        %s420 = scalar_select %p419, %s23, 1
        %p421 = scmp.lt.s32.totalorder %s24, 0
        %s422 = scalar_select %p421, %s24, 0
        %s423 = sadd.s32 %s422, %s420
        %s424 = smul.addr %s423, 4
        %s425 = scalar_lea.vmem %s4, %s424
      $region56: #{transformer_model_forward.6} parent=47 // pred_fallthru
        _
      // Predicated region
      $region57: #{transformer_model_forward.6} parent=47 // pred_check
        %p426 = pneg %p181
      $region58: #{transformer_model_forward.6} parent=47 // pred_check_branch
        %428 = sbr.rel (%p426) target = $region60
      $region59: #{transformer_model_forward.6} parent=47 // pred_region
        %p429 = scmp.lt.s32.totalorder %s23, 1
        %s430 = scalar_select %p429, %s23, 1
        %p431 = scmp.lt.s32.totalorder %s24, 0
        %s432 = scalar_select %p431, %s24, 0
        %s433 = sadd.s32 %s432, %s430
        %s434 = smul.addr %s433, 4
        %s435 = scalar_lea.vmem %s5, %s434
      $region60: #{transformer_model_forward.6} parent=47 // pred_fallthru
        _
    $region48: #{transformer_model_forward.6} parent=5 // pred_fallthru
      _
  $region6: #{transformer_model_forward.6} parent=0 // loop_footer
    %s16 = sadd.s32 1, %s12
  $region7: #{transformer_model_forward.6} parent=0 // loop_footer_branch
    %11 = sbr.rel target = $region3
  $region8: #{transformer_model_forward.6} parent=0 // loop_exit
    _

// kernel: transformer_model_forward.8
$region0: #{transformer_model_forward.8}
  #allocation0 [shape = 'u32[]', space=smem, size = 0x4, offset = 0x4, fixed_abs, tag = 'smem constant byte address 0x4 - core index']
  #allocation1 [shape = 'u32[144,128]{1,0:T(1,128)}', space=vmem, size = 0x12000, scoped, tag = 'internal scratch']
  #allocation2 [shape = 'bf16[8,32]{1,0:T(8,128)(2,1)}', space=vmem, size = 0x800, scoped, tag = 'scratch operand']
  #allocation3 [shape = 'f32[8,32]{1,0:T(8,128)}', space=vmem, size = 0x1000, scoped, tag = 'scratch operand']
  %s0 = inlined_call_operand.vmem [shape: bf16[16,32], index: 0, kind: input, shape index: {}]
  %s1 = inlined_call_operand.vmem [shape: bf16[16,32], index: 1, kind: input, shape index: {}]
  %s2 = inlined_call_operand.vmem [shape: bf16[32,32], index: 2, kind: input, shape index: {}]
  %s3 = inlined_call_operand.vmem [shape: f32[1,32], index: 3, kind: input, shape index: {}]
  %s4 = inlined_call_operand.vmem [shape: bf16[32,64], index: 4, kind: input, shape index: {}]
  %s5 = inlined_call_operand.vmem [shape: f32[1,64], index: 5, kind: input, shape index: {}]
  %s6 = inlined_call_operand.vmem [shape: bf16[64,32], index: 6, kind: input, shape index: {}]
  %s7 = inlined_call_operand.vmem [shape: f32[1,32], index: 7, kind: input, shape index: {}]
  %s8 = inlined_call_operand.vmem [shape: f32[1,32], index: 8, kind: input, shape index: {}]
  %s9 = inlined_call_operand.vmem [shape: f32[1,32], index: 9, kind: input, shape index: {}]
  %s10 = inlined_call_operand.vmem [shape: f32[1,32], index: 10, kind: input, shape index: {}]
  %s11 = inlined_call_operand.vmem [shape: f32[1,32], index: 11, kind: input, shape index: {}]
  %s12 = inlined_call_operand.vmem [shape: bf16[16,32], index: 12, kind: output, shape index: {}]
  %s13 = sld [smem:[#allocation0]]
  $region89: #{transformer_model_forward.8} parent=0
    _
  %s15 = ssub.s32 1, %s13
  %s16 = scalar_select 0, %s15, %s13
  loop: start=0, step=1, limit=4
  $region2: #{transformer_model_forward.8} parent=0 // loop_pre_header
    _
  $region3: #{transformer_model_forward.8} parent=0 // loop_header
    %s18 = sphi 0, %s22
    %p19 = scmp.ge.s32.totalorder %s18, 4
    %s25 = sphi 0, %s37
    %s26 = sphi 0, %s33
    %s27 = sphi 0, %s25
    %s28 = sphi 0, %s26
    %s29 = sphi 0, %s27
    %s30 = sphi 0, %s28
    %s40 = sphi 0, %s42
    %s43 = sphi 0, %s40
    %s44 = sphi 0, %s43
    %s60 = sphi 0, %s44
    %s66 = sphi 0, %s68
    %s69 = sphi 0, %s66
    %s70 = sphi 0, %s69
    %s86 = sphi 0, %s70
    %s90 = sphi 0, %s90
    %s92 = sphi 0, %s90
    %s93 = sphi 0, %s92
    %s107 = sphi 0, %s93
    %s111 = sphi 0, %s111
    %s113 = sphi 0, %s111
    %s114 = sphi 0, %s113
    %s128 = sphi 0, %s114
    %s134 = sphi 0, %s136
    %s137 = sphi 0, %s134
    %s138 = sphi 0, %s137
    %s154 = sphi 0, %s138
    %s160 = sphi 0, %s162
    %s163 = sphi 0, %s160
    %s164 = sphi 0, %s163
    %s180 = sphi 0, %s164
    %s186 = sphi 0, %s188
    %s189 = sphi 0, %s186
    %s190 = sphi 0, %s189
    %s206 = sphi 0, %s190
    %s210 = sphi 0, %s210
    %s212 = sphi 0, %s210
    %s213 = sphi 0, %s212
    %s227 = sphi 0, %s213
    %s231 = sphi 0, %s231
    %s233 = sphi 0, %s231
    %s234 = sphi 0, %s233
    %s248 = sphi 0, %s234
    %s252 = sphi 0, %s252
    %s254 = sphi 0, %s252
    %s255 = sphi 0, %s254
    %s269 = sphi 0, %s255
    %s273 = sphi 0, %s273
    %s275 = sphi 0, %s273
    %s276 = sphi 0, %s275
    %s290 = sphi 0, %s276
    %s294 = sphi 0, %s294
    %s296 = sphi 0, %s294
    %s297 = sphi 0, %s296
    %s311 = sphi 0, %s297
    %s317 = sphi 0, %s319
    %s320 = sphi 0, %s317
    %s321 = sphi 0, %s320
    %s337 = sphi 0, %s321
  $region4: #{transformer_model_forward.8} parent=0 // loop_header_branch
    %21 = sbr.rel (%p19) target = $region8
  $region5: #{transformer_model_forward.8} parent=0 // loop_body
    %s23 = ssub.s32 %s18, 1
    %s24 = ssub.s32 %s18, 2
    %s31 = sadd.s32 1, %s26
    %p32 = scmp.ge.s32.totalorder %s31, 1
    %s33 = scalar_select %p32, 0, %s31
    %s34 = sadd.s32 1, %s25
    %s35 = scalar_select %p32, %s34, %s25
    %p36 = scmp.ge.s32.totalorder %s35, 2
    %s37 = scalar_select %p36, 0, %s35
    %s38 = ssub.s32 %s25, %s37
    %p39 = scmp.eq.s32.totalorder %s38, 0
    %s41 = sadd.s32 %s40, 1
    %s42 = scalar_select %p39, %s40, %s41
    %p45 = pneg %p39
    %p46 = scmp.eq.s32.totalorder %s18, 1
    %p47 = por %p45, %p46
    %p48 = scmp.ne.s32.totalorder %s40, %s43
    %p49 = scmp.eq.s32.totalorder %s18, 0
    %p50 = por %p48, %p49
    %p51 = scmp.ne.s32.totalorder %s40, %s43
    %p52 = scmp.eq.s32.totalorder %s23, 1
    %p53 = por %p51, %p52
    %p54 = scmp.ne.s32.totalorder %s43, %s44
    %p55 = scmp.eq.s32.totalorder %s23, 0
    %p56 = por %p54, %p55
    %p57 = scmp.ne.s32.totalorder %s43, %s44
    %p58 = scmp.eq.s32.totalorder %s24, 1
    %p59 = por %p57, %p58
    %p61 = scmp.ne.s32.totalorder %s44, %s60
    %p62 = scmp.eq.s32.totalorder %s24, 0
    %p63 = por %p61, %p62
    %s64 = ssub.s32 %s25, %s37
    %p65 = scmp.eq.s32.totalorder %s64, 0
    %s67 = sadd.s32 %s66, 1
    %s68 = scalar_select %p65, %s66, %s67
    %p71 = pneg %p65
    %p72 = scmp.eq.s32.totalorder %s18, 1
    %p73 = por %p71, %p72
    %p74 = scmp.ne.s32.totalorder %s66, %s69
    %p75 = scmp.eq.s32.totalorder %s18, 0
    %p76 = por %p74, %p75
    %p77 = scmp.ne.s32.totalorder %s66, %s69
    %p78 = scmp.eq.s32.totalorder %s23, 1
    %p79 = por %p77, %p78
    %p80 = scmp.ne.s32.totalorder %s69, %s70
    %p81 = scmp.eq.s32.totalorder %s23, 0
    %p82 = por %p80, %p81
    %p83 = scmp.ne.s32.totalorder %s69, %s70
    %p84 = scmp.eq.s32.totalorder %s24, 1
    %p85 = por %p83, %p84
    %p87 = scmp.ne.s32.totalorder %s70, %s86
    %p88 = scmp.eq.s32.totalorder %s24, 0
    %p89 = por %p87, %p88
    %s91 = sadd.s32 %s90, 1
    %p94 = scmp.eq.s32.totalorder %s18, 1
    %p95 = scmp.ne.s32.totalorder %s90, %s92
    %p96 = scmp.eq.s32.totalorder %s18, 0
    %p97 = por %p95, %p96
    %p98 = scmp.ne.s32.totalorder %s90, %s92
    %p99 = scmp.eq.s32.totalorder %s23, 1
    %p100 = por %p98, %p99
    %p101 = scmp.ne.s32.totalorder %s92, %s93
    %p102 = scmp.eq.s32.totalorder %s23, 0
    %p103 = por %p101, %p102
    %p104 = scmp.ne.s32.totalorder %s92, %s93
    %p105 = scmp.eq.s32.totalorder %s24, 1
    %p106 = por %p104, %p105
    %p108 = scmp.ne.s32.totalorder %s93, %s107
    %p109 = scmp.eq.s32.totalorder %s24, 0
    %p110 = por %p108, %p109
    %s112 = sadd.s32 %s111, 1
    %p115 = scmp.eq.s32.totalorder %s18, 1
    %p116 = scmp.ne.s32.totalorder %s111, %s113
    %p117 = scmp.eq.s32.totalorder %s18, 0
    %p118 = por %p116, %p117
    %p119 = scmp.ne.s32.totalorder %s111, %s113
    %p120 = scmp.eq.s32.totalorder %s23, 1
    %p121 = por %p119, %p120
    %p122 = scmp.ne.s32.totalorder %s113, %s114
    %p123 = scmp.eq.s32.totalorder %s23, 0
    %p124 = por %p122, %p123
    %p125 = scmp.ne.s32.totalorder %s113, %s114
    %p126 = scmp.eq.s32.totalorder %s24, 1
    %p127 = por %p125, %p126
    %p129 = scmp.ne.s32.totalorder %s114, %s128
    %p130 = scmp.eq.s32.totalorder %s24, 0
    %p131 = por %p129, %p130
    %s132 = ssub.s32 %s26, %s33
    %p133 = scmp.eq.s32.totalorder %s132, 0
    %s135 = sadd.s32 %s134, 1
    %s136 = scalar_select %p133, %s134, %s135
    %p139 = pneg %p133
    %p140 = scmp.eq.s32.totalorder %s18, 1
    %p141 = por %p139, %p140
    %p142 = scmp.ne.s32.totalorder %s134, %s137
    %p143 = scmp.eq.s32.totalorder %s18, 0
    %p144 = por %p142, %p143
    %p145 = scmp.ne.s32.totalorder %s134, %s137
    %p146 = scmp.eq.s32.totalorder %s23, 1
    %p147 = por %p145, %p146
    %p148 = scmp.ne.s32.totalorder %s137, %s138
    %p149 = scmp.eq.s32.totalorder %s23, 0
    %p150 = por %p148, %p149
    %p151 = scmp.ne.s32.totalorder %s137, %s138
    %p152 = scmp.eq.s32.totalorder %s24, 1
    %p153 = por %p151, %p152
    %p155 = scmp.ne.s32.totalorder %s138, %s154
    %p156 = scmp.eq.s32.totalorder %s24, 0
    %p157 = por %p155, %p156
    %s158 = ssub.s32 %s26, %s33
    %p159 = scmp.eq.s32.totalorder %s158, 0
    %s161 = sadd.s32 %s160, 1
    %s162 = scalar_select %p159, %s160, %s161
    %p165 = pneg %p159
    %p166 = scmp.eq.s32.totalorder %s18, 1
    %p167 = por %p165, %p166
    %p168 = scmp.ne.s32.totalorder %s160, %s163
    %p169 = scmp.eq.s32.totalorder %s18, 0
    %p170 = por %p168, %p169
    %p171 = scmp.ne.s32.totalorder %s160, %s163
    %p172 = scmp.eq.s32.totalorder %s23, 1
    %p173 = por %p171, %p172
    %p174 = scmp.ne.s32.totalorder %s163, %s164
    %p175 = scmp.eq.s32.totalorder %s23, 0
    %p176 = por %p174, %p175
    %p177 = scmp.ne.s32.totalorder %s163, %s164
    %p178 = scmp.eq.s32.totalorder %s24, 1
    %p179 = por %p177, %p178
    %p181 = scmp.ne.s32.totalorder %s164, %s180
    %p182 = scmp.eq.s32.totalorder %s24, 0
    %p183 = por %p181, %p182
    %s184 = ssub.s32 %s26, %s33
    %p185 = scmp.eq.s32.totalorder %s184, 0
    %s187 = sadd.s32 %s186, 1
    %s188 = scalar_select %p185, %s186, %s187
    %p191 = pneg %p185
    %p192 = scmp.eq.s32.totalorder %s18, 1
    %p193 = por %p191, %p192
    %p194 = scmp.ne.s32.totalorder %s186, %s189
    %p195 = scmp.eq.s32.totalorder %s18, 0
    %p196 = por %p194, %p195
    %p197 = scmp.ne.s32.totalorder %s186, %s189
    %p198 = scmp.eq.s32.totalorder %s23, 1
    %p199 = por %p197, %p198
    %p200 = scmp.ne.s32.totalorder %s189, %s190
    %p201 = scmp.eq.s32.totalorder %s23, 0
    %p202 = por %p200, %p201
    %p203 = scmp.ne.s32.totalorder %s189, %s190
    %p204 = scmp.eq.s32.totalorder %s24, 1
    %p205 = por %p203, %p204
    %p207 = scmp.ne.s32.totalorder %s190, %s206
    %p208 = scmp.eq.s32.totalorder %s24, 0
    %p209 = por %p207, %p208
    %s211 = sadd.s32 %s210, 1
    %p214 = scmp.eq.s32.totalorder %s18, 1
    %p215 = scmp.ne.s32.totalorder %s210, %s212
    %p216 = scmp.eq.s32.totalorder %s18, 0
    %p217 = por %p215, %p216
    %p218 = scmp.ne.s32.totalorder %s210, %s212
    %p219 = scmp.eq.s32.totalorder %s23, 1
    %p220 = por %p218, %p219
    %p221 = scmp.ne.s32.totalorder %s212, %s213
    %p222 = scmp.eq.s32.totalorder %s23, 0
    %p223 = por %p221, %p222
    %p224 = scmp.ne.s32.totalorder %s212, %s213
    %p225 = scmp.eq.s32.totalorder %s24, 1
    %p226 = por %p224, %p225
    %p228 = scmp.ne.s32.totalorder %s213, %s227
    %p229 = scmp.eq.s32.totalorder %s24, 0
    %p230 = por %p228, %p229
    %s232 = sadd.s32 %s231, 1
    %p235 = scmp.eq.s32.totalorder %s18, 1
    %p236 = scmp.ne.s32.totalorder %s231, %s233
    %p237 = scmp.eq.s32.totalorder %s18, 0
    %p238 = por %p236, %p237
    %p239 = scmp.ne.s32.totalorder %s231, %s233
    %p240 = scmp.eq.s32.totalorder %s23, 1
    %p241 = por %p239, %p240
    %p242 = scmp.ne.s32.totalorder %s233, %s234
    %p243 = scmp.eq.s32.totalorder %s23, 0
    %p244 = por %p242, %p243
    %p245 = scmp.ne.s32.totalorder %s233, %s234
    %p246 = scmp.eq.s32.totalorder %s24, 1
    %p247 = por %p245, %p246
    %p249 = scmp.ne.s32.totalorder %s234, %s248
    %p250 = scmp.eq.s32.totalorder %s24, 0
    %p251 = por %p249, %p250
    %s253 = sadd.s32 %s252, 1
    %p256 = scmp.eq.s32.totalorder %s18, 1
    %p257 = scmp.ne.s32.totalorder %s252, %s254
    %p258 = scmp.eq.s32.totalorder %s18, 0
    %p259 = por %p257, %p258
    %p260 = scmp.ne.s32.totalorder %s252, %s254
    %p261 = scmp.eq.s32.totalorder %s23, 1
    %p262 = por %p260, %p261
    %p263 = scmp.ne.s32.totalorder %s254, %s255
    %p264 = scmp.eq.s32.totalorder %s23, 0
    %p265 = por %p263, %p264
    %p266 = scmp.ne.s32.totalorder %s254, %s255
    %p267 = scmp.eq.s32.totalorder %s24, 1
    %p268 = por %p266, %p267
    %p270 = scmp.ne.s32.totalorder %s255, %s269
    %p271 = scmp.eq.s32.totalorder %s24, 0
    %p272 = por %p270, %p271
    %s274 = sadd.s32 %s273, 1
    %p277 = scmp.eq.s32.totalorder %s18, 1
    %p278 = scmp.ne.s32.totalorder %s273, %s275
    %p279 = scmp.eq.s32.totalorder %s18, 0
    %p280 = por %p278, %p279
    %p281 = scmp.ne.s32.totalorder %s273, %s275
    %p282 = scmp.eq.s32.totalorder %s23, 1
    %p283 = por %p281, %p282
    %p284 = scmp.ne.s32.totalorder %s275, %s276
    %p285 = scmp.eq.s32.totalorder %s23, 0
    %p286 = por %p284, %p285
    %p287 = scmp.ne.s32.totalorder %s275, %s276
    %p288 = scmp.eq.s32.totalorder %s24, 1
    %p289 = por %p287, %p288
    %p291 = scmp.ne.s32.totalorder %s276, %s290
    %p292 = scmp.eq.s32.totalorder %s24, 0
    %p293 = por %p291, %p292
    %s295 = sadd.s32 %s294, 1
    %p298 = scmp.eq.s32.totalorder %s18, 1
    %p299 = scmp.ne.s32.totalorder %s294, %s296
    %p300 = scmp.eq.s32.totalorder %s18, 0
    %p301 = por %p299, %p300
    %p302 = scmp.ne.s32.totalorder %s294, %s296
    %p303 = scmp.eq.s32.totalorder %s23, 1
    %p304 = por %p302, %p303
    %p305 = scmp.ne.s32.totalorder %s296, %s297
    %p306 = scmp.eq.s32.totalorder %s23, 0
    %p307 = por %p305, %p306
    %p308 = scmp.ne.s32.totalorder %s296, %s297
    %p309 = scmp.eq.s32.totalorder %s24, 1
    %p310 = por %p308, %p309
    %p312 = scmp.ne.s32.totalorder %s297, %s311
    %p313 = scmp.eq.s32.totalorder %s24, 0
    %p314 = por %p312, %p313
    %s315 = ssub.s32 %s25, %s37
    %p316 = scmp.eq.s32.totalorder %s315, 0
    %s318 = sadd.s32 %s317, 1
    %s319 = scalar_select %p316, %s317, %s318
    %p322 = pneg %p316
    %p323 = scmp.eq.s32.totalorder %s18, 1
    %p324 = por %p322, %p323
    %p325 = scmp.ne.s32.totalorder %s317, %s320
    %p326 = scmp.eq.s32.totalorder %s18, 0
    %p327 = por %p325, %p326
    %p328 = scmp.ne.s32.totalorder %s317, %s320
    %p329 = scmp.eq.s32.totalorder %s23, 1
    %p330 = por %p328, %p329
    %p331 = scmp.ne.s32.totalorder %s320, %s321
    %p332 = scmp.eq.s32.totalorder %s23, 0
    %p333 = por %p331, %p332
    %p334 = scmp.ne.s32.totalorder %s320, %s321
    %p335 = scmp.eq.s32.totalorder %s24, 1
    %p336 = por %p334, %p335
    %p338 = scmp.ne.s32.totalorder %s321, %s337
    %p339 = scmp.eq.s32.totalorder %s24, 0
    %p340 = por %p338, %p339
    %p341 = scmp.le.s32.totalorder 1, %s18
    %p342 = scmp.lt.s32.totalorder %s18, 3
    %p343 = pnand %p341, %p342
    %p344 = pneg %p343
    // Predicated region
    $region9: #{transformer_model_forward.8} parent=5 // pred_check
      _
    $region10: #{transformer_model_forward.8} parent=5 // pred_check_branch
      %346 = sbr.rel (%p343) target = $region12
    $region11: #{transformer_model_forward.8} parent=5 // pred_region
      %s347 = ssub.s32 %s18, 1
      // Predicated region
      $region13: #{transformer_model_forward.8} parent=11 // pred_check
        %p348 = pneg %p103
      $region14: #{transformer_model_forward.8} parent=11 // pred_check_branch
        %350 = sbr.rel (%p348) target = $region16
      $region15: #{transformer_model_forward.8} parent=11 // pred_region
        _
      $region16: #{transformer_model_forward.8} parent=11 // pred_fallthru
        _
      // Predicated region
      $region17: #{transformer_model_forward.8} parent=11 // pred_check
        %p351 = pneg %p124
      $region18: #{transformer_model_forward.8} parent=11 // pred_check_branch
        %353 = sbr.rel (%p351) target = $region20
      $region19: #{transformer_model_forward.8} parent=11 // pred_region
        _
      $region20: #{transformer_model_forward.8} parent=11 // pred_fallthru
        _
      // Predicated region
      $region21: #{transformer_model_forward.8} parent=11 // pred_check
        %p354 = pneg %p150
      $region22: #{transformer_model_forward.8} parent=11 // pred_check_branch
        %356 = sbr.rel (%p354) target = $region24
      $region23: #{transformer_model_forward.8} parent=11 // pred_region
        %p357 = scmp.lt.s32.totalorder %s28, 0
        %s358 = scalar_select %p357, %s28, 0
        %s359 = smul.addr %s358, 4
        %s360 = scalar_lea.vmem %s4, %s359
      $region24: #{transformer_model_forward.8} parent=11 // pred_fallthru
        _
      // Predicated region
      $region25: #{transformer_model_forward.8} parent=11 // pred_check
        %p361 = pneg %p176
      $region26: #{transformer_model_forward.8} parent=11 // pred_check_branch
        %363 = sbr.rel (%p361) target = $region28
      $region27: #{transformer_model_forward.8} parent=11 // pred_region
        %p364 = scmp.lt.s32.totalorder %s28, 0
        %s365 = scalar_select %p364, %s28, 0
        %s366 = scalar_lea.vmem %s5, %s365
      $region28: #{transformer_model_forward.8} parent=11 // pred_fallthru
        _
      // Predicated region
      $region29: #{transformer_model_forward.8} parent=11 // pred_check
        %p367 = pneg %p202
      $region30: #{transformer_model_forward.8} parent=11 // pred_check_branch
        %369 = sbr.rel (%p367) target = $region32
      $region31: #{transformer_model_forward.8} parent=11 // pred_region
        %s370 = smul.u32 8, %s28
        %p371 = scmp.lt.s32.totalorder %s370, 7
        %s372 = scalar_select %p371, %s370, 7
        %s373 = smul.addr %s372, 4
        %s374 = scalar_lea.vmem %s6, %s373
        %s375 = smul.u32 8, %s28
      $region32: #{transformer_model_forward.8} parent=11 // pred_fallthru
        _
      // Predicated region
      $region33: #{transformer_model_forward.8} parent=11 // pred_check
        %p376 = pneg %p223
      $region34: #{transformer_model_forward.8} parent=11 // pred_check_branch
        %378 = sbr.rel (%p376) target = $region36
      $region35: #{transformer_model_forward.8} parent=11 // pred_region
        _
      $region36: #{transformer_model_forward.8} parent=11 // pred_fallthru
        _
      // Predicated region
      $region37: #{transformer_model_forward.8} parent=11 // pred_check
        %p379 = pneg %p244
      $region38: #{transformer_model_forward.8} parent=11 // pred_check_branch
        %381 = sbr.rel (%p379) target = $region40
      $region39: #{transformer_model_forward.8} parent=11 // pred_region
        _
      $region40: #{transformer_model_forward.8} parent=11 // pred_fallthru
        _
      // Predicated region
      $region41: #{transformer_model_forward.8} parent=11 // pred_check
        %p382 = pneg %p265
      $region42: #{transformer_model_forward.8} parent=11 // pred_check_branch
        %384 = sbr.rel (%p382) target = $region44
      $region43: #{transformer_model_forward.8} parent=11 // pred_region
        _
      $region44: #{transformer_model_forward.8} parent=11 // pred_fallthru
        _
      // Predicated region
      $region45: #{transformer_model_forward.8} parent=11 // pred_check
        %p385 = pneg %p286
      $region46: #{transformer_model_forward.8} parent=11 // pred_check_branch
        %387 = sbr.rel (%p385) target = $region48
      $region47: #{transformer_model_forward.8} parent=11 // pred_region
        _
      $region48: #{transformer_model_forward.8} parent=11 // pred_fallthru
        _
      // Predicated region
      $region49: #{transformer_model_forward.8} parent=11 // pred_check
        %p388 = pneg %p307
      $region50: #{transformer_model_forward.8} parent=11 // pred_check_branch
        %390 = sbr.rel (%p388) target = $region52
      $region51: #{transformer_model_forward.8} parent=11 // pred_region
        _
      $region52: #{transformer_model_forward.8} parent=11 // pred_fallthru
        _
    $region12: #{transformer_model_forward.8} parent=5 // pred_fallthru
      _
    %p391 = scmp.lt.s32.totalorder %s18, 2
    // Predicated region
    $region53: #{transformer_model_forward.8} parent=5 // pred_check
      %p392 = pneg %p391
    $region54: #{transformer_model_forward.8} parent=5 // pred_check_branch
      %394 = sbr.rel (%p392) target = $region56
    $region55: #{transformer_model_forward.8} parent=5 // pred_region
      // Predicated region
      $region57: #{transformer_model_forward.8} parent=55 // pred_check
        %p395 = pneg %p50
      $region58: #{transformer_model_forward.8} parent=55 // pred_check_branch
        %397 = sbr.rel (%p395) target = $region60
      $region59: #{transformer_model_forward.8} parent=55 // pred_region
        %p398 = scmp.lt.s32.totalorder %s25, 1
        %s399 = scalar_select %p398, %s25, 1
        %s400 = smul.addr %s399, 4
        %s401 = scalar_lea.vmem %s0, %s400
      $region60: #{transformer_model_forward.8} parent=55 // pred_fallthru
        _
      // Predicated region
      $region61: #{transformer_model_forward.8} parent=55 // pred_check
        %p402 = pneg %p76
      $region62: #{transformer_model_forward.8} parent=55 // pred_check_branch
        %404 = sbr.rel (%p402) target = $region64
      $region63: #{transformer_model_forward.8} parent=55 // pred_region
        %p405 = scmp.lt.s32.totalorder %s25, 1
        %s406 = scalar_select %p405, %s25, 1
        %s407 = smul.addr %s406, 4
        %s408 = scalar_lea.vmem %s1, %s407
      $region64: #{transformer_model_forward.8} parent=55 // pred_fallthru
        _
    $region56: #{transformer_model_forward.8} parent=5 // pred_fallthru
      _
    %p409 = scmp.le.s32.totalorder 1, %s18
    %p410 = scmp.lt.s32.totalorder %s18, 3
    %p411 = pnand %p409, %p410
    %p412 = pneg %p411
    // Predicated region
    $region65: #{transformer_model_forward.8} parent=5 // pred_check
      _
    $region66: #{transformer_model_forward.8} parent=5 // pred_check_branch
      %414 = sbr.rel (%p411) target = $region68
    $region67: #{transformer_model_forward.8} parent=5 // pred_region
      %s415 = ssub.s32 %s18, 1
      %p416 = scmp.lt.s32.totalorder %s27, 1
      %s417 = scalar_select %p416, %s27, 1
      %s418 = smul.addr %s417, 4
      %s419 = scalar_lea.vmem %s0, %s418
      %p420 = pneg %p56
      %p421 = pneg %p53
      %p422 = scmp.lt.s32.totalorder %s27, 1
      %s423 = scalar_select %p422, %s27, 1
      %s424 = smul.addr %s423, 4
      %s425 = scalar_lea.vmem %s1, %s424
      %p426 = pneg %p82
      %p427 = pneg %p79
      %p428 = pneg %p103
      %p429 = pneg %p100
      %p430 = pneg %p124
      %p431 = pneg %p121
      %p432 = scmp.lt.s32.totalorder %s28, 0
      %s433 = scalar_select %p432, %s28, 0
      %s434 = smul.addr %s433, 4
      %s435 = scalar_lea.vmem %s4, %s434
      %p436 = pneg %p150
      %p437 = pneg %p147
      %p438 = scmp.lt.s32.totalorder %s28, 0
      %s439 = scalar_select %p438, %s28, 0
      %s440 = scalar_lea.vmem %s5, %s439
      %p441 = pneg %p176
      %p442 = pneg %p173
      %s443 = smul.u32 8, %s28
      %p444 = scmp.lt.s32.totalorder %s443, 7
      %s445 = scalar_select %p444, %s443, 7
      %s446 = smul.addr %s445, 4
      %s447 = scalar_lea.vmem %s6, %s446
      %p448 = pneg %p202
      %p449 = pneg %p199
      %p450 = pneg %p223
      %p451 = pneg %p220
      %p452 = pneg %p244
      %p453 = pneg %p241
      %p454 = pneg %p265
      %p455 = pneg %p262
      %p456 = pneg %p286
      %p457 = pneg %p283
      %p458 = pneg %p307
      %p459 = pneg %p304
      %p460 = pneg %p333
      %p461 = pneg %p330
      %p462 = scmp.lt.s32.totalorder %s27, 1
      %s463 = scalar_select %p462, %s27, 1
      %s464 = smul.addr %s463, 4
      %s465 = scalar_lea.vmem %s12, %s464
      %p466 = scmp.lt.s32.totalorder %s27, 1
      %s467 = scalar_select %p466, %s27, 1
      %s468 = smul.addr %s467, 4
      %s469 = scalar_lea.vmem %s0, %s468
      %p470 = scmp.lt.s32.totalorder %s27, 1
      %s471 = scalar_select %p470, %s27, 1
      %s472 = smul.addr %s471, 4
      %s473 = scalar_lea.vmem %s1, %s472
      %p474 = scmp.lt.s32.totalorder %s28, 0
      %s475 = scalar_select %p474, %s28, 0
      %s476 = smul.addr %s475, 4
      %s477 = scalar_lea.vmem %s4, %s476
      %p478 = scmp.lt.s32.totalorder %s28, 0
      %s479 = scalar_select %p478, %s28, 0
      %s480 = scalar_lea.vmem %s5, %s479
      %s481 = smul.u32 8, %s28
      %p482 = scmp.lt.s32.totalorder %s481, 7
      %s483 = scalar_select %p482, %s481, 7
      %s484 = smul.addr %s483, 4
      %s485 = scalar_lea.vmem %s6, %s484
      %s486 = smul.u32 8, %s28
      %p487 = scmp.lt.s32.totalorder %s27, 1
      %s488 = scalar_select %p487, %s27, 1
      %s489 = smul.addr %s488, 4
      %s490 = scalar_lea.vmem %s12, %s489
      %p492 = scmp.eq.s32.totalorder %s28, 0
      // Predicated region
      $region69: #{transformer_model_forward.8} parent=67 // pred_check
        %p493 = pneg %p492
      $region70: #{transformer_model_forward.8} parent=67 // pred_check_branch
        %495 = sbr.rel (%p493) target = $region72
      $region71: #{transformer_model_forward.8} parent=67 // pred_region
        %v496 = vld [vmem:[%s469] sm:$0xf]
        %v497 = vld [vmem:[%s2] sm:$0xf]
        %v498 = vld [vmem:[%s2 + $0x4] sm:$0xf]
        %v499 = vld [vmem:[%s2 + $0x8] sm:$0xf]
        %v500 = vld [vmem:[%s2 + $0xc] sm:$0xf]
        %v501 = vld [vmem:[%s3] sm:$0x1]
        %v503 = vlaneseq
        %v504 = vshrl.u32 %v503, 7
        %v505 = vsub.s32 0, %v504
        %v506 = vrot.slane %v501, %v505
        %v512 = vunpack.c.l.b16 %v497
        %v513 = vunpack.c.l.b16 %v498
        %v514 = vunpack.c.l.b16 %v499
        %v515 = vunpack.c.l.b16 %v500
        %v516 = vpack.c.b16 %v513, %v512
        %v517 = vpack.c.b16 %v515, %v514
        %vm520 = vcmask 261120
        %v522 = vsel %vm520, %v496, 0
        %524 = vmatprep.subr.bf16.mxu0 0
        %525 = vmatpush1.bf16.msra.mxu0 %v516
        %526 = vmatprep.subr.bf16.mxu0 0
        %527 = vmatpush1.bf16.msra.mxu0 %v517
        %528 = vmatprep.subr.bf16.mxu0 0
        %529 = vmatpush1.bf16.msra.mxu0 0
        %530 = vmatprep.subr.bf16.mxu0 0
        %531 = vmatpush1.bf16.msra.mxu0 0
        %532 = vmatprep.subr.bf16.mxu0 0
        %533 = vmatpush1.bf16.msra.mxu0 0
        %534 = vmatprep.subr.bf16.mxu0 0
        %535 = vmatpush1.bf16.msra.mxu0 0
        %536 = vmatprep.subr.bf16.mxu0 0
        %537 = vmatpush1.bf16.msra.mxu0 0
        %538 = vmatprep.subr.bf16.mxu0 0
        %539 = vmatpush1.bf16.msra.mxu0 0
        %540 = vmatprep.subr.bf16.mxu0 0
        %541 = vmatpush1.bf16.msra.mxu0 0
        %542 = vmatprep.subr.bf16.mxu0 0
        %543 = vmatpush1.bf16.msra.mxu0 0
        %544 = vmatprep.subr.bf16.mxu0 0
        %545 = vmatpush1.bf16.msra.mxu0 0
        %546 = vmatprep.subr.bf16.mxu0 0
        %547 = vmatpush1.bf16.msra.mxu0 0
        %548 = vmatprep.subr.bf16.mxu0 0
        %549 = vmatpush1.bf16.msra.mxu0 0
        %550 = vmatprep.subr.bf16.mxu0 0
        %551 = vmatpush1.bf16.msra.mxu0 0
        %552 = vmatprep.subr.bf16.mxu0 0
        %553 = vmatpush1.bf16.msra.mxu0 0
        %554 = vmatprep.subr.bf16.mxu0 0
        %555 = vmatpush1.bf16.msra.mxu0 0
        %556 = vmatprep.mubr.bf16.mxu0 0
        %557 = vmatmul.mubr.bf16.gmra.mrb[0].mxu0 %v522
        %v558 = vpop.f32.mrb[0].mxu0
        %v559 = vadd.f32 %v506, %v558
        %v560 = vpop.f32.mrb[0].mxu0
        %v561 = vpop.f32.mrb[0].mxu0
        %v562 = vpop.f32.mrb[0].mxu0
        %563 = vdwg.mxu0
        %v564 = vld [vmem:[%s473] sm:$0xf]
        %v565 = vunpack.c.l.bf16 %v564
        %v566 = vadd.f32 %v559, %v565
        %v567 = vsel %vm520, %v566, 0.0
        %568 = vadd.xlane.f32.xlu0 %v567
        %v569 = vpop.xlane.xlu0 %568
        %v570 = vrcp.pop 32.0
        %v571 = vmul.f32 %v569, %v570
        %v572 = vsub.f32 %v566, %v571
        %v573 = vmul.f32 %v572, %v572
        %v574 = vsel %vm520, %v573, 0.0
        %575 = vadd.xlane.f32.xlu0 %v574
        %v576 = vpop.xlane.xlu0 %575
        %v577 = vmul.f32 %v576, %v570
        %v578 = vadd.f32 %v577, 1e-05
        %v579 = vrsqrt.pop %v578
        %v580 = vmul.f32 %v572, %v579
        %v581 = vld [vmem:[%s8] sm:$0x1]
        %v583 = vlaneseq
        %v584 = vshrl.u32 %v583, 7
        %v585 = vsub.s32 0, %v584
        %v586 = vrot.slane %v581, %v585
        %v588 = vmul.f32 %v580, %v586
        %v589 = vld [vmem:[%s9] sm:$0x1]
        %v591 = vlaneseq
        %v592 = vshrl.u32 %v591, 7
        %v593 = vsub.s32 0, %v592
        %v594 = vrot.slane %v589, %v593
        %v596 = vadd.f32 %v588, %v594
        %v597 = vpack.c.bf16 %v596, %v596
        %vm598 = vcmask 257024
        %599 = vst.msk [vmem:[#allocation2] sm:$0xf] %vm598, %v597
        %600 = vst.msk [vmem:[#allocation3] sm:$0xff] %vm520, 0.0
      $region72: #{transformer_model_forward.8} parent=67 // pred_fallthru
        _
      %v601 = vld [vmem:[#allocation2] sm:$0xf]
      %v602 = vld [vmem:[%s477] sm:$0xf]
      %v603 = vld [vmem:[%s477 + $0x4] sm:$0xf]
      %v604 = vld [vmem:[%s477 + $0x8] sm:$0xf]
      %v605 = vld [vmem:[%s477 + $0xc] sm:$0xf]
      %v606 = vld [vmem:[%s480] sm:$0x1]
      %v608 = vlaneseq
      %v609 = vshrl.u32 %v608, 7
      %v610 = vsub.s32 0, %v609
      %v611 = vrot.slane %v606, %v610
      %v617 = vunpack.c.l.b16 %v602
      %v618 = vunpack.c.l.b16 %v603
      %v619 = vunpack.c.l.b16 %v604
      %v620 = vunpack.c.l.b16 %v605
      %v621 = vpack.c.b16 %v618, %v617
      %v622 = vpack.c.b16 %v620, %v619
      %vm625 = vcmask 261120
      %v627 = vsel %vm625, %v601, 0
      %629 = vmatprep.subr.bf16.mxu0 0
      %630 = vmatpush1.bf16.msra.mxu0 %v621
      %631 = vmatprep.subr.bf16.mxu0 0
      %632 = vmatpush1.bf16.msra.mxu0 %v622
      %633 = vmatprep.subr.bf16.mxu0 0
      %634 = vmatpush1.bf16.msra.mxu0 0
      %635 = vmatprep.subr.bf16.mxu0 0
      %636 = vmatpush1.bf16.msra.mxu0 0
      %637 = vmatprep.subr.bf16.mxu0 0
      %638 = vmatpush1.bf16.msra.mxu0 0
      %639 = vmatprep.subr.bf16.mxu0 0
      %640 = vmatpush1.bf16.msra.mxu0 0
      %641 = vmatprep.subr.bf16.mxu0 0
      %642 = vmatpush1.bf16.msra.mxu0 0
      %643 = vmatprep.subr.bf16.mxu0 0
      %644 = vmatpush1.bf16.msra.mxu0 0
      %645 = vmatprep.subr.bf16.mxu0 0
      %646 = vmatpush1.bf16.msra.mxu0 0
      %647 = vmatprep.subr.bf16.mxu0 0
      %648 = vmatpush1.bf16.msra.mxu0 0
      %649 = vmatprep.subr.bf16.mxu0 0
      %650 = vmatpush1.bf16.msra.mxu0 0
      %651 = vmatprep.subr.bf16.mxu0 0
      %652 = vmatpush1.bf16.msra.mxu0 0
      %653 = vmatprep.subr.bf16.mxu0 0
      %654 = vmatpush1.bf16.msra.mxu0 0
      %655 = vmatprep.subr.bf16.mxu0 0
      %656 = vmatpush1.bf16.msra.mxu0 0
      %657 = vmatprep.subr.bf16.mxu0 0
      %658 = vmatpush1.bf16.msra.mxu0 0
      %659 = vmatprep.subr.bf16.mxu0 0
      %660 = vmatpush1.bf16.msra.mxu0 0
      %661 = vmatprep.mubr.bf16.mxu0 0
      %662 = vmatmul.mubr.bf16.gmra.mrb[0].mxu0 %v627
      %v663 = vpop.f32.mrb[0].mxu0
      %v664 = vadd.f32 %v611, %v663
      %v665 = vpop.f32.mrb[0].mxu0
      %v666 = vpop.f32.mrb[0].mxu0
      %v667 = vpop.f32.mrb[0].mxu0
      %668 = vdwg.mxu0
      %v669 = vmax.f32 %v664, 0.0
      %v670 = vpack.c.bf16 %v669, %v669
      %v671 = vld [vmem:[#allocation3] sm:$0xff]
      %v672 = vld [vmem:[%s485] sm:$0xf]
      %v673 = vld [vmem:[%s485 + $0x4] sm:$0xf]
      %v674 = vld [vmem:[%s485 + $0x8] sm:$0xf]
      %v675 = vld [vmem:[%s485 + $0xc] sm:$0xf]
      %v676 = vld [vmem:[%s485 + $0x10] sm:$0xf]
      %v677 = vld [vmem:[%s485 + $0x14] sm:$0xf]
      %v678 = vld [vmem:[%s485 + $0x18] sm:$0xf]
      %v679 = vld [vmem:[%s485 + $0x1c] sm:$0xf]
      %v688 = vunpack.c.l.b16 %v672
      %v689 = vunpack.c.l.b16 %v673
      %v690 = vunpack.c.l.b16 %v674
      %v691 = vunpack.c.l.b16 %v675
      %v692 = vunpack.c.l.b16 %v676
      %v693 = vunpack.c.l.b16 %v677
      %v694 = vunpack.c.l.b16 %v678
      %v695 = vunpack.c.l.b16 %v679
      %v696 = vpack.c.b16 %v689, %v688
      %v697 = vpack.c.b16 %v691, %v690
      %v698 = vpack.c.b16 %v693, %v692
      %v699 = vpack.c.b16 %v695, %v694
      %vm704 = vcmask 523264
      %v706 = vsel %vm704, %v670, 0
      %708 = vmatprep.subr.bf16.mxu0 0
      %709 = vmatpush1.bf16.msra.mxu0 %v696
      %710 = vmatprep.subr.bf16.mxu0 0
      %711 = vmatpush1.bf16.msra.mxu0 %v697
      %712 = vmatprep.subr.bf16.mxu0 0
      %713 = vmatpush1.bf16.msra.mxu0 %v698
      %714 = vmatprep.subr.bf16.mxu0 0
      %715 = vmatpush1.bf16.msra.mxu0 %v699
      %716 = vmatprep.subr.bf16.mxu0 0
      %717 = vmatpush1.bf16.msra.mxu0 0
      %718 = vmatprep.subr.bf16.mxu0 0
      %719 = vmatpush1.bf16.msra.mxu0 0
      %720 = vmatprep.subr.bf16.mxu0 0
      %721 = vmatpush1.bf16.msra.mxu0 0
      %722 = vmatprep.subr.bf16.mxu0 0
      %723 = vmatpush1.bf16.msra.mxu0 0
      %724 = vmatprep.subr.bf16.mxu0 0
      %725 = vmatpush1.bf16.msra.mxu0 0
      %726 = vmatprep.subr.bf16.mxu0 0
      %727 = vmatpush1.bf16.msra.mxu0 0
      %728 = vmatprep.subr.bf16.mxu0 0
      %729 = vmatpush1.bf16.msra.mxu0 0
      %730 = vmatprep.subr.bf16.mxu0 0
      %731 = vmatpush1.bf16.msra.mxu0 0
      %732 = vmatprep.subr.bf16.mxu0 0
      %733 = vmatpush1.bf16.msra.mxu0 0
      %734 = vmatprep.subr.bf16.mxu0 0
      %735 = vmatpush1.bf16.msra.mxu0 0
      %736 = vmatprep.subr.bf16.mxu0 0
      %737 = vmatpush1.bf16.msra.mxu0 0
      %738 = vmatprep.subr.bf16.mxu0 0
      %739 = vmatpush1.bf16.msra.mxu0 0
      %740 = vmatprep.mubr.bf16.mxu0 0
      %741 = vmatmul.mubr.bf16.gmra.mrb[0].mxu0 %v706
      %v742 = vpop.f32.mrb[0].mxu0
      %v743 = vadd.f32 0.0, %v742
      %v744 = vpop.f32.mrb[0].mxu0
      %v745 = vpop.f32.mrb[0].mxu0
      %v746 = vpop.f32.mrb[0].mxu0
      %747 = vdwg.mxu0
      %v748 = vadd.f32 %v671, %v743
      %749 = vst.msk [vmem:[#allocation3] sm:$0xff] %vm625, %v748
      // Predicated region
      $region73: #{transformer_model_forward.8} parent=67 // pred_check
        %p750 = pneg %p492
      $region74: #{transformer_model_forward.8} parent=67 // pred_check_branch
        %752 = sbr.rel (%p750) target = $region76
      $region75: #{transformer_model_forward.8} parent=67 // pred_region
        %v753 = vld [vmem:[#allocation3] sm:$0xff]
        %v754 = vld [vmem:[%s7] sm:$0x1]
        %v756 = vlaneseq
        %v757 = vshrl.u32 %v756, 7
        %v758 = vsub.s32 0, %v757
        %v759 = vrot.slane %v754, %v758
        %v761 = vadd.f32 %v753, %v759
        %v762 = vld [vmem:[#allocation2] sm:$0xf]
        %v763 = vunpack.c.l.bf16 %v762
        %v764 = vadd.f32 %v761, %v763
        %v765 = vsel %vm625, %v764, 0.0
        %766 = vadd.xlane.f32.xlu0 %v765
        %v767 = vpop.xlane.xlu0 %766
        %v768 = vrcp.pop 32.0
        %v769 = vmul.f32 %v767, %v768
        %v770 = vsub.f32 %v764, %v769
        %v771 = vmul.f32 %v770, %v770
        %v772 = vsel %vm625, %v771, 0.0
        %773 = vadd.xlane.f32.xlu0 %v772
        %v774 = vpop.xlane.xlu0 %773
        %v775 = vmul.f32 %v774, %v768
        %v776 = vadd.f32 %v775, 1e-05
        %v777 = vrsqrt.pop %v776
        %v778 = vmul.f32 %v770, %v777
        %v779 = vld [vmem:[%s10] sm:$0x1]
        %v781 = vlaneseq
        %v782 = vshrl.u32 %v781, 7
        %v783 = vsub.s32 0, %v782
        %v784 = vrot.slane %v779, %v783
        %v786 = vmul.f32 %v778, %v784
        %v787 = vld [vmem:[%s11] sm:$0x1]
        %v789 = vlaneseq
        %v790 = vshrl.u32 %v789, 7
        %v791 = vsub.s32 0, %v790
        %v792 = vrot.slane %v787, %v791
        %v794 = vadd.f32 %v786, %v792
        %v795 = vpack.c.bf16 %v794, %v794
        %vm796 = vcmask 257024
        %797 = vst.msk [vmem:[%s490] sm:$0xf] %vm796, %v795
      $region76: #{transformer_model_forward.8} parent=67 // pred_fallthru
        _
      %p798 = scmp.lt.s32.totalorder %s27, 1
      %s799 = scalar_select %p798, %s27, 1
      %s800 = smul.addr %s799, 4
      %s801 = scalar_lea.vmem %s12, %s800
      // Predicated region
      $region77: #{transformer_model_forward.8} parent=67 // pred_check
        %p802 = pneg %p330
      $region78: #{transformer_model_forward.8} parent=67 // pred_check_branch
        %804 = sbr.rel (%p802) target = $region80
      $region79: #{transformer_model_forward.8} parent=67 // pred_region
        _
      $region80: #{transformer_model_forward.8} parent=67 // pred_fallthru
        _
    $region68: #{transformer_model_forward.8} parent=5 // pred_fallthru
      _
    %p805 = scmp.le.s32.totalorder 2, %s18
    // Predicated region
    $region81: #{transformer_model_forward.8} parent=5 // pred_check
      %p806 = pneg %p805
    $region82: #{transformer_model_forward.8} parent=5 // pred_check_branch
      %808 = sbr.rel (%p806) target = $region84
    $region83: #{transformer_model_forward.8} parent=5 // pred_region
      %s809 = ssub.s32 %s18, 2
      // Predicated region
      $region85: #{transformer_model_forward.8} parent=83 // pred_check
        %p810 = pneg %p336
      $region86: #{transformer_model_forward.8} parent=83 // pred_check_branch
        %812 = sbr.rel (%p810) target = $region88
      $region87: #{transformer_model_forward.8} parent=83 // pred_region
        %p813 = scmp.lt.s32.totalorder %s29, 1
        %s814 = scalar_select %p813, %s29, 1
        %s815 = smul.addr %s814, 4
        %s816 = scalar_lea.vmem %s12, %s815
      $region88: #{transformer_model_forward.8} parent=83 // pred_fallthru
        _
    $region84: #{transformer_model_forward.8} parent=5 // pred_fallthru
      _
  $region6: #{transformer_model_forward.8} parent=0 // loop_footer
    %s22 = sadd.s32 1, %s18
  $region7: #{transformer_model_forward.8} parent=0 // loop_footer_branch
    %17 = sbr.rel target = $region3
  $region8: #{transformer_model_forward.8} parent=0 // loop_exit
    _

// kernel: transformer_model_forward.7
$region0: #{transformer_model_forward.7}
  #allocation0 [shape = 'u32[]', space=smem, size = 0x4, offset = 0x4, fixed_abs, tag = 'smem constant byte address 0x4 - core index']
  #allocation1 [shape = 'u32[144,128]{1,0:T(1,128)}', space=vmem, size = 0x12000, scoped, tag = 'internal scratch']
  #allocation2 [shape = 'f32[4,8,1]{2,1,0:T(8,128)}', space=vmem, size = 0x4000, scoped, tag = 'scratch operand']
  #allocation3 [shape = 'f32[4,8,1]{2,1,0:T(8,128)}', space=vmem, size = 0x4000, scoped, tag = 'scratch operand']
  #allocation4 [shape = 'f32[4,8,8]{2,1,0:T(8,128)}', space=vmem, size = 0x4000, scoped, tag = 'scratch operand']
  %s0 = inlined_call_operand.vmem [shape: bf16[2,8,32], index: 0, kind: input, shape index: {}]
  %s1 = inlined_call_operand.vmem [shape: bf16[2,8,32], index: 1, kind: input, shape index: {}]
  %s2 = inlined_call_operand.vmem [shape: bf16[2,8,32], index: 2, kind: input, shape index: {}]
  %s3 = inlined_call_operand.vmem [shape: bf16[2,8,32], index: 3, kind: output, shape index: {}]
  %s4 = sld [smem:[#allocation0]]
  $region53: #{transformer_model_forward.7} parent=0
    _
  %s6 = ssub.s32 1, %s4
  %s7 = scalar_select 0, %s6, %s4
  loop: start=0, step=1, limit=4
  $region2: #{transformer_model_forward.7} parent=0 // loop_pre_header
    _
  $region3: #{transformer_model_forward.7} parent=0 // loop_header
    %s9 = sphi 0, %s13
    %p10 = scmp.ge.s32.totalorder %s9, 4
    %s16 = sphi 0, %s35
    %s17 = sphi 0, %s31
    %s18 = sphi 0, %s27
    %s19 = sphi 0, %s16
    %s20 = sphi 0, %s17
    %s21 = sphi 0, %s18
    %s22 = sphi 0, %s19
    %s23 = sphi 0, %s20
    %s24 = sphi 0, %s21
    %s40 = sphi 0, %s42
    %s43 = sphi 0, %s40
    %s44 = sphi 0, %s43
    %s60 = sphi 0, %s44
    %s68 = sphi 0, %s70
    %s71 = sphi 0, %s68
    %s72 = sphi 0, %s71
    %s88 = sphi 0, %s72
    %s96 = sphi 0, %s98
    %s99 = sphi 0, %s96
    %s100 = sphi 0, %s99
    %s116 = sphi 0, %s100
    %s124 = sphi 0, %s126
    %s127 = sphi 0, %s124
    %s128 = sphi 0, %s127
    %s144 = sphi 0, %s128
  $region4: #{transformer_model_forward.7} parent=0 // loop_header_branch
    %12 = sbr.rel (%p10) target = $region8
  $region5: #{transformer_model_forward.7} parent=0 // loop_body
    %s14 = ssub.s32 %s9, 1
    %s15 = ssub.s32 %s9, 2
    %s25 = sadd.s32 1, %s18
    %p26 = scmp.ge.s32.totalorder %s25, 1
    %s27 = scalar_select %p26, 0, %s25
    %s28 = sadd.s32 1, %s17
    %s29 = scalar_select %p26, %s28, %s17
    %p30 = scmp.ge.s32.totalorder %s29, 1
    %s31 = scalar_select %p30, 0, %s29
    %s32 = sadd.s32 1, %s16
    %s33 = scalar_select %p30, %s32, %s16
    %p34 = scmp.ge.s32.totalorder %s33, 2
    %s35 = scalar_select %p34, 0, %s33
    %s36 = ssub.s32 %s16, %s35
    %s37 = ssub.s32 %s17, %s31
    %s38 = sor.u32 %s36, %s37
    %p39 = scmp.eq.s32.totalorder %s38, 0
    %s41 = sadd.s32 %s40, 1
    %s42 = scalar_select %p39, %s40, %s41
    %p45 = pneg %p39
    %p46 = scmp.eq.s32.totalorder %s9, 1
    %p47 = por %p45, %p46
    %p48 = scmp.ne.s32.totalorder %s40, %s43
    %p49 = scmp.eq.s32.totalorder %s9, 0
    %p50 = por %p48, %p49
    %p51 = scmp.ne.s32.totalorder %s40, %s43
    %p52 = scmp.eq.s32.totalorder %s14, 1
    %p53 = por %p51, %p52
    %p54 = scmp.ne.s32.totalorder %s43, %s44
    %p55 = scmp.eq.s32.totalorder %s14, 0
    %p56 = por %p54, %p55
    %p57 = scmp.ne.s32.totalorder %s43, %s44
    %p58 = scmp.eq.s32.totalorder %s15, 1
    %p59 = por %p57, %p58
    %p61 = scmp.ne.s32.totalorder %s44, %s60
    %p62 = scmp.eq.s32.totalorder %s15, 0
    %p63 = por %p61, %p62
    %s64 = ssub.s32 %s16, %s35
    %s65 = ssub.s32 %s18, %s27
    %s66 = sor.u32 %s64, %s65
    %p67 = scmp.eq.s32.totalorder %s66, 0
    %s69 = sadd.s32 %s68, 1
    %s70 = scalar_select %p67, %s68, %s69
    %p73 = pneg %p67
    %p74 = scmp.eq.s32.totalorder %s9, 1
    %p75 = por %p73, %p74
    %p76 = scmp.ne.s32.totalorder %s68, %s71
    %p77 = scmp.eq.s32.totalorder %s9, 0
    %p78 = por %p76, %p77
    %p79 = scmp.ne.s32.totalorder %s68, %s71
    %p80 = scmp.eq.s32.totalorder %s14, 1
    %p81 = por %p79, %p80
    %p82 = scmp.ne.s32.totalorder %s71, %s72
    %p83 = scmp.eq.s32.totalorder %s14, 0
    %p84 = por %p82, %p83
    %p85 = scmp.ne.s32.totalorder %s71, %s72
    %p86 = scmp.eq.s32.totalorder %s15, 1
    %p87 = por %p85, %p86
    %p89 = scmp.ne.s32.totalorder %s72, %s88
    %p90 = scmp.eq.s32.totalorder %s15, 0
    %p91 = por %p89, %p90
    %s92 = ssub.s32 %s16, %s35
    %s93 = ssub.s32 %s18, %s27
    %s94 = sor.u32 %s92, %s93
    %p95 = scmp.eq.s32.totalorder %s94, 0
    %s97 = sadd.s32 %s96, 1
    %s98 = scalar_select %p95, %s96, %s97
    %p101 = pneg %p95
    %p102 = scmp.eq.s32.totalorder %s9, 1
    %p103 = por %p101, %p102
    %p104 = scmp.ne.s32.totalorder %s96, %s99
    %p105 = scmp.eq.s32.totalorder %s9, 0
    %p106 = por %p104, %p105
    %p107 = scmp.ne.s32.totalorder %s96, %s99
    %p108 = scmp.eq.s32.totalorder %s14, 1
    %p109 = por %p107, %p108
    %p110 = scmp.ne.s32.totalorder %s99, %s100
    %p111 = scmp.eq.s32.totalorder %s14, 0
    %p112 = por %p110, %p111
    %p113 = scmp.ne.s32.totalorder %s99, %s100
    %p114 = scmp.eq.s32.totalorder %s15, 1
    %p115 = por %p113, %p114
    %p117 = scmp.ne.s32.totalorder %s100, %s116
    %p118 = scmp.eq.s32.totalorder %s15, 0
    %p119 = por %p117, %p118
    %s120 = ssub.s32 %s16, %s35
    %s121 = ssub.s32 %s17, %s31
    %s122 = sor.u32 %s120, %s121
    %p123 = scmp.eq.s32.totalorder %s122, 0
    %s125 = sadd.s32 %s124, 1
    %s126 = scalar_select %p123, %s124, %s125
    %p129 = pneg %p123
    %p130 = scmp.eq.s32.totalorder %s9, 1
    %p131 = por %p129, %p130
    %p132 = scmp.ne.s32.totalorder %s124, %s127
    %p133 = scmp.eq.s32.totalorder %s9, 0
    %p134 = por %p132, %p133
    %p135 = scmp.ne.s32.totalorder %s124, %s127
    %p136 = scmp.eq.s32.totalorder %s14, 1
    %p137 = por %p135, %p136
    %p138 = scmp.ne.s32.totalorder %s127, %s128
    %p139 = scmp.eq.s32.totalorder %s14, 0
    %p140 = por %p138, %p139
    %p141 = scmp.ne.s32.totalorder %s127, %s128
    %p142 = scmp.eq.s32.totalorder %s15, 1
    %p143 = por %p141, %p142
    %p145 = scmp.ne.s32.totalorder %s128, %s144
    %p146 = scmp.eq.s32.totalorder %s15, 0
    %p147 = por %p145, %p146
    %p148 = scmp.le.s32.totalorder 1, %s9
    %p149 = scmp.lt.s32.totalorder %s9, 3
    %p150 = pnand %p148, %p149
    %p151 = pneg %p150
    // Predicated region
    $region9: #{transformer_model_forward.7} parent=5 // pred_check
      _
    $region10: #{transformer_model_forward.7} parent=5 // pred_check_branch
      %153 = sbr.rel (%p150) target = $region12
    $region11: #{transformer_model_forward.7} parent=5 // pred_region
      %s154 = ssub.s32 %s9, 1
    $region12: #{transformer_model_forward.7} parent=5 // pred_fallthru
      _
    %p155 = scmp.lt.s32.totalorder %s9, 2
    // Predicated region
    $region13: #{transformer_model_forward.7} parent=5 // pred_check
      %p156 = pneg %p155
    $region14: #{transformer_model_forward.7} parent=5 // pred_check_branch
      %158 = sbr.rel (%p156) target = $region16
    $region15: #{transformer_model_forward.7} parent=5 // pred_region
      // Predicated region
      $region17: #{transformer_model_forward.7} parent=15 // pred_check
        %p159 = pneg %p50
      $region18: #{transformer_model_forward.7} parent=15 // pred_check_branch
        %161 = sbr.rel (%p159) target = $region20
      $region19: #{transformer_model_forward.7} parent=15 // pred_region
        %p162 = scmp.lt.s32.totalorder %s16, 1
        %s163 = scalar_select %p162, %s16, 1
        %p164 = scmp.lt.s32.totalorder %s17, 0
        %s165 = scalar_select %p164, %s17, 0
        %s166 = sadd.s32 %s165, %s163
        %s167 = smul.addr %s166, 4
        %s168 = scalar_lea.vmem %s0, %s167
      $region20: #{transformer_model_forward.7} parent=15 // pred_fallthru
        _
      // Predicated region
      $region21: #{transformer_model_forward.7} parent=15 // pred_check
        %p169 = pneg %p78
      $region22: #{transformer_model_forward.7} parent=15 // pred_check_branch
        %171 = sbr.rel (%p169) target = $region24
      $region23: #{transformer_model_forward.7} parent=15 // pred_region
        %p172 = scmp.lt.s32.totalorder %s16, 1
        %s173 = scalar_select %p172, %s16, 1
        %p174 = scmp.lt.s32.totalorder %s18, 0
        %s175 = scalar_select %p174, %s18, 0
        %s176 = sadd.s32 %s175, %s173
        %s177 = smul.addr %s176, 4
        %s178 = scalar_lea.vmem %s1, %s177
      $region24: #{transformer_model_forward.7} parent=15 // pred_fallthru
        _
      // Predicated region
      $region25: #{transformer_model_forward.7} parent=15 // pred_check
        %p179 = pneg %p106
      $region26: #{transformer_model_forward.7} parent=15 // pred_check_branch
        %181 = sbr.rel (%p179) target = $region28
      $region27: #{transformer_model_forward.7} parent=15 // pred_region
        %p182 = scmp.lt.s32.totalorder %s16, 1
        %s183 = scalar_select %p182, %s16, 1
        %p184 = scmp.lt.s32.totalorder %s18, 0
        %s185 = scalar_select %p184, %s18, 0
        %s186 = sadd.s32 %s185, %s183
        %s187 = smul.addr %s186, 4
        %s188 = scalar_lea.vmem %s2, %s187
      $region28: #{transformer_model_forward.7} parent=15 // pred_fallthru
        _
    $region16: #{transformer_model_forward.7} parent=5 // pred_fallthru
      _
    %p189 = scmp.le.s32.totalorder 1, %s9
    %p190 = scmp.lt.s32.totalorder %s9, 3
    %p191 = pnand %p189, %p190
    %p192 = pneg %p191
    // Predicated region
    $region29: #{transformer_model_forward.7} parent=5 // pred_check
      _
    $region30: #{transformer_model_forward.7} parent=5 // pred_check_branch
      %194 = sbr.rel (%p191) target = $region32
    $region31: #{transformer_model_forward.7} parent=5 // pred_region
      %s195 = ssub.s32 %s9, 1
      %p196 = scmp.lt.s32.totalorder %s19, 1
      %s197 = scalar_select %p196, %s19, 1
      %p198 = scmp.lt.s32.totalorder %s20, 0
      %s199 = scalar_select %p198, %s20, 0
      %s200 = sadd.s32 %s199, %s197
      %s201 = smul.addr %s200, 4
      %s202 = scalar_lea.vmem %s0, %s201
      %p203 = pneg %p56
      %p204 = pneg %p53
      %p205 = scmp.lt.s32.totalorder %s19, 1
      %s206 = scalar_select %p205, %s19, 1
      %p207 = scmp.lt.s32.totalorder %s21, 0
      %s208 = scalar_select %p207, %s21, 0
      %s209 = sadd.s32 %s208, %s206
      %s210 = smul.addr %s209, 4
      %s211 = scalar_lea.vmem %s1, %s210
      %p212 = pneg %p84
      %p213 = pneg %p81
      %p214 = scmp.lt.s32.totalorder %s19, 1
      %s215 = scalar_select %p214, %s19, 1
      %p216 = scmp.lt.s32.totalorder %s21, 0
      %s217 = scalar_select %p216, %s21, 0
      %s218 = sadd.s32 %s217, %s215
      %s219 = smul.addr %s218, 4
      %s220 = scalar_lea.vmem %s2, %s219
      %p221 = pneg %p112
      %p222 = pneg %p109
      %p223 = pneg %p140
      %p224 = pneg %p137
      %p225 = scmp.lt.s32.totalorder %s19, 1
      %s226 = scalar_select %p225, %s19, 1
      %p227 = scmp.lt.s32.totalorder %s20, 0
      %s228 = scalar_select %p227, %s20, 0
      %s229 = sadd.s32 %s228, %s226
      %s230 = smul.addr %s229, 4
      %s231 = scalar_lea.vmem %s3, %s230
      %p232 = scmp.lt.s32.totalorder %s19, 1
      %s233 = scalar_select %p232, %s19, 1
      %p234 = scmp.lt.s32.totalorder %s20, 0
      %s235 = scalar_select %p234, %s20, 0
      %s236 = sadd.s32 %s235, %s233
      %s237 = smul.addr %s236, 4
      %s238 = scalar_lea.vmem %s0, %s237
      %p239 = scmp.lt.s32.totalorder %s19, 1
      %s240 = scalar_select %p239, %s19, 1
      %p241 = scmp.lt.s32.totalorder %s21, 0
      %s242 = scalar_select %p241, %s21, 0
      %s243 = sadd.s32 %s242, %s240
      %s244 = smul.addr %s243, 4
      %s245 = scalar_lea.vmem %s1, %s244
      %p246 = scmp.lt.s32.totalorder %s19, 1
      %s247 = scalar_select %p246, %s19, 1
      %p248 = scmp.lt.s32.totalorder %s21, 0
      %s249 = scalar_select %p248, %s21, 0
      %s250 = sadd.s32 %s249, %s247
      %s251 = smul.addr %s250, 4
      %s252 = scalar_lea.vmem %s2, %s251
      %p253 = scmp.lt.s32.totalorder %s19, 1
      %s254 = scalar_select %p253, %s19, 1
      %p255 = scmp.lt.s32.totalorder %s20, 0
      %s256 = scalar_select %p255, %s20, 0
      %s257 = sadd.s32 %s256, %s254
      %s258 = smul.addr %s257, 4
      %s259 = scalar_lea.vmem %s3, %s258
      %p261 = scmp.eq.s32.totalorder %s21, 0
      // Predicated region
      $region33: #{transformer_model_forward.7} parent=31 // pred_check
        %p262 = pneg %p261
      $region34: #{transformer_model_forward.7} parent=31 // pred_check_branch
        %264 = sbr.rel (%p262) target = $region36
      $region35: #{transformer_model_forward.7} parent=31 // pred_region
        %vm265 = vcmask 7168
        %266 = vst.msk [vmem:[#allocation2] sm:$0xff] %vm265, -inf
        %267 = vst.msk [vmem:[#allocation2 + $0x8] sm:$0xff] %vm265, -inf
        %268 = vst.msk [vmem:[#allocation2 + $0x10] sm:$0xff] %vm265, -inf
        %269 = vst.msk [vmem:[#allocation2 + $0x18] sm:$0xff] %vm265, -inf
        %270 = vst.msk [vmem:[#allocation3] sm:$0xff] %vm265, 0.0
        %271 = vst.msk [vmem:[#allocation3 + $0x8] sm:$0xff] %vm265, 0.0
        %272 = vst.msk [vmem:[#allocation3 + $0x10] sm:$0xff] %vm265, 0.0
        %273 = vst.msk [vmem:[#allocation3 + $0x18] sm:$0xff] %vm265, 0.0
        %vm274 = vcmask 64512
        %275 = vst.msk [vmem:[#allocation4] sm:$0xff] %vm274, 0.0
        %276 = vst.msk [vmem:[#allocation4 + $0x8] sm:$0xff] %vm274, 0.0
        %277 = vst.msk [vmem:[#allocation4 + $0x10] sm:$0xff] %vm274, 0.0
        %278 = vst.msk [vmem:[#allocation4 + $0x18] sm:$0xff] %vm274, 0.0
      $region36: #{transformer_model_forward.7} parent=31 // pred_fallthru
        _
      %v279 = vld [vmem:[%s238] sm:$0xf]
      %v280 = vld [vmem:[%s245] sm:$0xf]
      %v281 = vld [vmem:[%s252] sm:$0xf]
      %vm282 = vcmask 64512
      %v284 = vsel %vm282, %v279, 0
      %v287 = vsel %vm282, %v280, 0
      %289 = vmatprep.subr.bf16.mxu0 0
      %290 = vmatpush1.bf16.xpose.msra.mxu0 %v287
      %291 = vmatprep.subr.bf16.mxu0 0
      %292 = vmatpush1.bf16.xpose.msra.mxu0 0
      %293 = vmatprep.subr.bf16.mxu0 0
      %294 = vmatpush1.bf16.xpose.msra.mxu0 0
      %295 = vmatprep.subr.bf16.mxu0 0
      %296 = vmatpush1.bf16.xpose.msra.mxu0 0
      %297 = vmatprep.subr.bf16.mxu0 0
      %298 = vmatpush1.bf16.xpose.msra.mxu0 0
      %299 = vmatprep.subr.bf16.mxu0 0
      %300 = vmatpush1.bf16.xpose.msra.mxu0 0
      %301 = vmatprep.subr.bf16.mxu0 0
      %302 = vmatpush1.bf16.xpose.msra.mxu0 0
      %303 = vmatprep.subr.bf16.mxu0 0
      %304 = vmatpush1.bf16.xpose.msra.mxu0 0
      %305 = vmatprep.subr.bf16.mxu0 0
      %306 = vmatpush1.bf16.xpose.msra.mxu0 0
      %307 = vmatprep.subr.bf16.mxu0 0
      %308 = vmatpush1.bf16.xpose.msra.mxu0 0
      %309 = vmatprep.subr.bf16.mxu0 0
      %310 = vmatpush1.bf16.xpose.msra.mxu0 0
      %311 = vmatprep.subr.bf16.mxu0 0
      %312 = vmatpush1.bf16.xpose.msra.mxu0 0
      %313 = vmatprep.subr.bf16.mxu0 0
      %314 = vmatpush1.bf16.xpose.msra.mxu0 0
      %315 = vmatprep.subr.bf16.mxu0 0
      %316 = vmatpush1.bf16.xpose.msra.mxu0 0
      %317 = vmatprep.subr.bf16.mxu0 0
      %318 = vmatpush1.bf16.xpose.msra.mxu0 0
      %319 = vmatprep.subr.bf16.mxu0 0
      %320 = vmatpush1.bf16.xpose.msra.mxu0 0
      %321 = vmatprep.mubr.bf16.mxu0 0
      %322 = vmatmul.mubr.bf16.gmra.mrb[0].mxu0 %v284
      %v323 = vpop.f32.mrb[0].mxu0
      %v324 = vadd.f32 0.0, %v323
      %v325 = vpop.f32.mrb[0].mxu0
      %v326 = vpop.f32.mrb[0].mxu0
      %v327 = vpop.f32.mrb[0].mxu0
      %328 = vdwg.mxu0
      %v329 = vld [vmem:[#allocation2] sm:$0xff]
      %v330 = vsel %vm282, %v324, -inf
      %331 = vmax.xlane.f32.xlu0 %v330
      %v332 = vpop.xlane.xlu0 %331
      %v333 = vmax.f32 %v329, %v332
      %v334 = vsub.f32 %v329, %v333
      %v335 = vmul.f32 %v334, 1.442695
      %v336 = vpow.pop %v335
      %338 = vset.pattern.permute.xlu0 0
      %339 = vperm.xlu0 %338, %v333
      %v340 = vpop.permute.xlu0 %339
      %v342 = vsub.f32 %v324, %v340
      %v343 = vmul.f32 %v342, 1.442695
      %v344 = vpow.pop %v343
      %v345 = vld [vmem:[#allocation3] sm:$0xff]
      %v346 = vmul.f32 %v336, %v345
      %v347 = vsel %vm282, %v344, 0.0
      %348 = vadd.xlane.f32.xlu0 %v347
      %v349 = vpop.xlane.xlu0 %348
      %v350 = vadd.f32 %v346, %v349
      %vm351 = vcmask 7168
      %352 = vst.msk [vmem:[#allocation3] sm:$0xff] %vm351, %v350
      %v353 = vld [vmem:[#allocation4] sm:$0xff]
      %355 = vset.pattern.permute.xlu0 0
      %356 = vperm.xlu0 %355, %v336
      %v357 = vpop.permute.xlu0 %356
      %v359 = vmul.f32 %v357, %v353
      %v360 = vpack.c.bf16 %v344, %v344
      %v362 = vsel %vm282, %v360, 0
      %vm364 = vcmask 1043456
      %v366 = vsel %vm364, %v281, 0
      %368 = vmatprep.subr.bf16.mxu0 0
      %369 = vmatpush1.bf16.msra.mxu0 %v366
      %370 = vmatprep.subr.bf16.mxu0 0
      %371 = vmatpush1.bf16.msra.mxu0 0
      %372 = vmatprep.subr.bf16.mxu0 0
      %373 = vmatpush1.bf16.msra.mxu0 0
      %374 = vmatprep.subr.bf16.mxu0 0
      %375 = vmatpush1.bf16.msra.mxu0 0
      %376 = vmatprep.subr.bf16.mxu0 0
      %377 = vmatpush1.bf16.msra.mxu0 0
      %378 = vmatprep.subr.bf16.mxu0 0
      %379 = vmatpush1.bf16.msra.mxu0 0
      %380 = vmatprep.subr.bf16.mxu0 0
      %381 = vmatpush1.bf16.msra.mxu0 0
      %382 = vmatprep.subr.bf16.mxu0 0
      %383 = vmatpush1.bf16.msra.mxu0 0
      %384 = vmatprep.subr.bf16.mxu0 0
      %385 = vmatpush1.bf16.msra.mxu0 0
      %386 = vmatprep.subr.bf16.mxu0 0
      %387 = vmatpush1.bf16.msra.mxu0 0
      %388 = vmatprep.subr.bf16.mxu0 0
      %389 = vmatpush1.bf16.msra.mxu0 0
      %390 = vmatprep.subr.bf16.mxu0 0
      %391 = vmatpush1.bf16.msra.mxu0 0
      %392 = vmatprep.subr.bf16.mxu0 0
      %393 = vmatpush1.bf16.msra.mxu0 0
      %394 = vmatprep.subr.bf16.mxu0 0
      %395 = vmatpush1.bf16.msra.mxu0 0
      %396 = vmatprep.subr.bf16.mxu0 0
      %397 = vmatpush1.bf16.msra.mxu0 0
      %398 = vmatprep.subr.bf16.mxu0 0
      %399 = vmatpush1.bf16.msra.mxu0 0
      %400 = vmatprep.mubr.bf16.mxu0 0
      %401 = vmatmul.mubr.bf16.gmra.mrb[0].mxu0 %v362
      %v402 = vpop.f32.mrb[0].mxu0
      %v403 = vadd.f32 0.0, %v402
      %v404 = vpop.f32.mrb[0].mxu0
      %v405 = vpop.f32.mrb[0].mxu0
      %v406 = vpop.f32.mrb[0].mxu0
      %407 = vdwg.mxu0
      %v408 = vadd.f32 %v359, %v403
      %409 = vst.msk [vmem:[#allocation4] sm:$0xff] %vm282, %v408
      %410 = vst.msk [vmem:[#allocation2] sm:$0xff] %vm351, %v333
      %v412 = vunpack.c.l.b16 %v279
      %v413 = vpack.c.b16 %v412, %v412
      %414 = vrot.lane.b32.xlu0 %v413, 120
      %v415 = vpop.permute.xlu0 %414
      %v417 = vunpack.c.l.b16 %v280
      %v418 = vpack.c.b16 %v417, %v417
      %419 = vrot.lane.b32.xlu0 %v418, 120
      %v420 = vpop.permute.xlu0 %419
      %v422 = vsel %vm282, %v415, 0
      %v425 = vsel %vm282, %v420, 0
      %427 = vmatprep.subr.bf16.mxu0 0
      %428 = vmatpush1.bf16.xpose.msra.mxu0 %v425
      %429 = vmatprep.subr.bf16.mxu0 0
      %430 = vmatpush1.bf16.xpose.msra.mxu0 0
      %431 = vmatprep.subr.bf16.mxu0 0
      %432 = vmatpush1.bf16.xpose.msra.mxu0 0
      %433 = vmatprep.subr.bf16.mxu0 0
      %434 = vmatpush1.bf16.xpose.msra.mxu0 0
      %435 = vmatprep.subr.bf16.mxu0 0
      %436 = vmatpush1.bf16.xpose.msra.mxu0 0
      %437 = vmatprep.subr.bf16.mxu0 0
      %438 = vmatpush1.bf16.xpose.msra.mxu0 0
      %439 = vmatprep.subr.bf16.mxu0 0
      %440 = vmatpush1.bf16.xpose.msra.mxu0 0
      %441 = vmatprep.subr.bf16.mxu0 0
      %442 = vmatpush1.bf16.xpose.msra.mxu0 0
      %443 = vmatprep.subr.bf16.mxu0 0
      %444 = vmatpush1.bf16.xpose.msra.mxu0 0
      %445 = vmatprep.subr.bf16.mxu0 0
      %446 = vmatpush1.bf16.xpose.msra.mxu0 0
      %447 = vmatprep.subr.bf16.mxu0 0
      %448 = vmatpush1.bf16.xpose.msra.mxu0 0
      %449 = vmatprep.subr.bf16.mxu0 0
      %450 = vmatpush1.bf16.xpose.msra.mxu0 0
      %451 = vmatprep.subr.bf16.mxu0 0
      %452 = vmatpush1.bf16.xpose.msra.mxu0 0
      %453 = vmatprep.subr.bf16.mxu0 0
      %454 = vmatpush1.bf16.xpose.msra.mxu0 0
      %455 = vmatprep.subr.bf16.mxu0 0
      %456 = vmatpush1.bf16.xpose.msra.mxu0 0
      %457 = vmatprep.subr.bf16.mxu0 0
      %458 = vmatpush1.bf16.xpose.msra.mxu0 0
      %459 = vmatprep.mubr.bf16.mxu0 0
      %460 = vmatmul.mubr.bf16.gmra.mrb[0].mxu0 %v422
      %v461 = vpop.f32.mrb[0].mxu0
      %v462 = vadd.f32 0.0, %v461
      %v463 = vpop.f32.mrb[0].mxu0
      %v464 = vpop.f32.mrb[0].mxu0
      %v465 = vpop.f32.mrb[0].mxu0
      %466 = vdwg.mxu0
      %s467 = scalar_lea.vmem [#allocation2], 8
      %v468 = vld [vmem:[%s467] sm:$0xff]
      %v469 = vsel %vm282, %v462, -inf
      %470 = vmax.xlane.f32.xlu0 %v469
      %v471 = vpop.xlane.xlu0 %470
      %v472 = vmax.f32 %v468, %v471
      %v473 = vsub.f32 %v468, %v472
      %v474 = vmul.f32 %v473, 1.442695
      %v475 = vpow.pop %v474
      %477 = vset.pattern.permute.xlu0 0
      %478 = vperm.xlu0 %477, %v472
      %v479 = vpop.permute.xlu0 %478
      %v481 = vsub.f32 %v462, %v479
      %v482 = vmul.f32 %v481, 1.442695
      %v483 = vpow.pop %v482
      %s484 = scalar_lea.vmem [#allocation3], 8
      %v485 = vld [vmem:[%s484] sm:$0xff]
      %v486 = vmul.f32 %v475, %v485
      %v487 = vsel %vm282, %v483, 0.0
      %488 = vadd.xlane.f32.xlu0 %v487
      %v489 = vpop.xlane.xlu0 %488
      %v490 = vadd.f32 %v486, %v489
      %491 = vst.msk [vmem:[%s484] sm:$0xff] %vm351, %v490
      %s492 = scalar_lea.vmem [#allocation4], 8
      %v493 = vld [vmem:[%s492] sm:$0xff]
      %495 = vset.pattern.permute.xlu0 0
      %496 = vperm.xlu0 %495, %v475
      %v497 = vpop.permute.xlu0 %496
      %v499 = vmul.f32 %v497, %v493
      %v500 = vpack.c.bf16 %v483, %v483
      %v502 = vunpack.c.l.b16 %v281
      %v503 = vpack.c.b16 %v502, %v502
      %504 = vrot.lane.b32.xlu0 %v503, 120
      %v505 = vpop.permute.xlu0 %504
      %v507 = vsel %vm282, %v500, 0
      %v510 = vsel %vm364, %v505, 0
      %512 = vmatprep.subr.bf16.mxu0 0
      %513 = vmatpush1.bf16.msra.mxu0 %v510
      %514 = vmatprep.subr.bf16.mxu0 0
      %515 = vmatpush1.bf16.msra.mxu0 0
      %516 = vmatprep.subr.bf16.mxu0 0
      %517 = vmatpush1.bf16.msra.mxu0 0
      %518 = vmatprep.subr.bf16.mxu0 0
      %519 = vmatpush1.bf16.msra.mxu0 0
      %520 = vmatprep.subr.bf16.mxu0 0
      %521 = vmatpush1.bf16.msra.mxu0 0
      %522 = vmatprep.subr.bf16.mxu0 0
      %523 = vmatpush1.bf16.msra.mxu0 0
      %524 = vmatprep.subr.bf16.mxu0 0
      %525 = vmatpush1.bf16.msra.mxu0 0
      %526 = vmatprep.subr.bf16.mxu0 0
      %527 = vmatpush1.bf16.msra.mxu0 0
      %528 = vmatprep.subr.bf16.mxu0 0
      %529 = vmatpush1.bf16.msra.mxu0 0
      %530 = vmatprep.subr.bf16.mxu0 0
      %531 = vmatpush1.bf16.msra.mxu0 0
      %532 = vmatprep.subr.bf16.mxu0 0
      %533 = vmatpush1.bf16.msra.mxu0 0
      %534 = vmatprep.subr.bf16.mxu0 0
      %535 = vmatpush1.bf16.msra.mxu0 0
      %536 = vmatprep.subr.bf16.mxu0 0
      %537 = vmatpush1.bf16.msra.mxu0 0
      %538 = vmatprep.subr.bf16.mxu0 0
      %539 = vmatpush1.bf16.msra.mxu0 0
      %540 = vmatprep.subr.bf16.mxu0 0
      %541 = vmatpush1.bf16.msra.mxu0 0
      %542 = vmatprep.subr.bf16.mxu0 0
      %543 = vmatpush1.bf16.msra.mxu0 0
      %544 = vmatprep.mubr.bf16.mxu0 0
      %545 = vmatmul.mubr.bf16.gmra.mrb[0].mxu0 %v507
      %v546 = vpop.f32.mrb[0].mxu0
      %v547 = vadd.f32 0.0, %v546
      %v548 = vpop.f32.mrb[0].mxu0
      %v549 = vpop.f32.mrb[0].mxu0
      %v550 = vpop.f32.mrb[0].mxu0
      %551 = vdwg.mxu0
      %v552 = vadd.f32 %v499, %v547
      %553 = vst.msk [vmem:[%s492] sm:$0xff] %vm282, %v552
      %554 = vst.msk [vmem:[%s467] sm:$0xff] %vm351, %v472
      %555 = vrot.lane.b32.xlu0 %v413, 112
      %v556 = vpop.permute.xlu0 %555
      %557 = vrot.lane.b32.xlu0 %v418, 112
      %v558 = vpop.permute.xlu0 %557
      %v560 = vsel %vm282, %v556, 0
      %v563 = vsel %vm282, %v558, 0
      %565 = vmatprep.subr.bf16.mxu0 0
      %566 = vmatpush1.bf16.xpose.msra.mxu0 %v563
      %567 = vmatprep.subr.bf16.mxu0 0
      %568 = vmatpush1.bf16.xpose.msra.mxu0 0
      %569 = vmatprep.subr.bf16.mxu0 0
      %570 = vmatpush1.bf16.xpose.msra.mxu0 0
      %571 = vmatprep.subr.bf16.mxu0 0
      %572 = vmatpush1.bf16.xpose.msra.mxu0 0
      %573 = vmatprep.subr.bf16.mxu0 0
      %574 = vmatpush1.bf16.xpose.msra.mxu0 0
      %575 = vmatprep.subr.bf16.mxu0 0
      %576 = vmatpush1.bf16.xpose.msra.mxu0 0
      %577 = vmatprep.subr.bf16.mxu0 0
      %578 = vmatpush1.bf16.xpose.msra.mxu0 0
      %579 = vmatprep.subr.bf16.mxu0 0
      %580 = vmatpush1.bf16.xpose.msra.mxu0 0
      %581 = vmatprep.subr.bf16.mxu0 0
      %582 = vmatpush1.bf16.xpose.msra.mxu0 0
      %583 = vmatprep.subr.bf16.mxu0 0
      %584 = vmatpush1.bf16.xpose.msra.mxu0 0
      %585 = vmatprep.subr.bf16.mxu0 0
      %586 = vmatpush1.bf16.xpose.msra.mxu0 0
      %587 = vmatprep.subr.bf16.mxu0 0
      %588 = vmatpush1.bf16.xpose.msra.mxu0 0
      %589 = vmatprep.subr.bf16.mxu0 0
      %590 = vmatpush1.bf16.xpose.msra.mxu0 0
      %591 = vmatprep.subr.bf16.mxu0 0
      %592 = vmatpush1.bf16.xpose.msra.mxu0 0
      %593 = vmatprep.subr.bf16.mxu0 0
      %594 = vmatpush1.bf16.xpose.msra.mxu0 0
      %595 = vmatprep.subr.bf16.mxu0 0
      %596 = vmatpush1.bf16.xpose.msra.mxu0 0
      %597 = vmatprep.mubr.bf16.mxu0 0
      %598 = vmatmul.mubr.bf16.gmra.mrb[0].mxu0 %v560
      %v599 = vpop.f32.mrb[0].mxu0
      %v600 = vadd.f32 0.0, %v599
      %v601 = vpop.f32.mrb[0].mxu0
      %v602 = vpop.f32.mrb[0].mxu0
      %v603 = vpop.f32.mrb[0].mxu0
      %604 = vdwg.mxu0
      %s605 = scalar_lea.vmem [#allocation2], 16
      %v606 = vld [vmem:[%s605] sm:$0xff]
      %v607 = vsel %vm282, %v600, -inf
      %608 = vmax.xlane.f32.xlu0 %v607
      %v609 = vpop.xlane.xlu0 %608
      %v610 = vmax.f32 %v606, %v609
      %v611 = vsub.f32 %v606, %v610
      %v612 = vmul.f32 %v611, 1.442695
      %v613 = vpow.pop %v612
      %615 = vset.pattern.permute.xlu0 0
      %616 = vperm.xlu0 %615, %v610
      %v617 = vpop.permute.xlu0 %616
      %v619 = vsub.f32 %v600, %v617
      %v620 = vmul.f32 %v619, 1.442695
      %v621 = vpow.pop %v620
      %s622 = scalar_lea.vmem [#allocation3], 16
      %v623 = vld [vmem:[%s622] sm:$0xff]
      %v624 = vmul.f32 %v613, %v623
      %v625 = vsel %vm282, %v621, 0.0
      %626 = vadd.xlane.f32.xlu0 %v625
      %v627 = vpop.xlane.xlu0 %626
      %v628 = vadd.f32 %v624, %v627
      %629 = vst.msk [vmem:[%s622] sm:$0xff] %vm351, %v628
      %s630 = scalar_lea.vmem [#allocation4], 16
      %v631 = vld [vmem:[%s630] sm:$0xff]
      %633 = vset.pattern.permute.xlu0 0
      %634 = vperm.xlu0 %633, %v613
      %v635 = vpop.permute.xlu0 %634
      %v637 = vmul.f32 %v635, %v631
      %v638 = vpack.c.bf16 %v621, %v621
      %639 = vrot.lane.b32.xlu0 %v503, 112
      %v640 = vpop.permute.xlu0 %639
      %v642 = vsel %vm282, %v638, 0
      %v645 = vsel %vm364, %v640, 0
      %647 = vmatprep.subr.bf16.mxu0 0
      %648 = vmatpush1.bf16.msra.mxu0 %v645
      %649 = vmatprep.subr.bf16.mxu0 0
      %650 = vmatpush1.bf16.msra.mxu0 0
      %651 = vmatprep.subr.bf16.mxu0 0
      %652 = vmatpush1.bf16.msra.mxu0 0
      %653 = vmatprep.subr.bf16.mxu0 0
      %654 = vmatpush1.bf16.msra.mxu0 0
      %655 = vmatprep.subr.bf16.mxu0 0
      %656 = vmatpush1.bf16.msra.mxu0 0
      %657 = vmatprep.subr.bf16.mxu0 0
      %658 = vmatpush1.bf16.msra.mxu0 0
      %659 = vmatprep.subr.bf16.mxu0 0
      %660 = vmatpush1.bf16.msra.mxu0 0
      %661 = vmatprep.subr.bf16.mxu0 0
      %662 = vmatpush1.bf16.msra.mxu0 0
      %663 = vmatprep.subr.bf16.mxu0 0
      %664 = vmatpush1.bf16.msra.mxu0 0
      %665 = vmatprep.subr.bf16.mxu0 0
      %666 = vmatpush1.bf16.msra.mxu0 0
      %667 = vmatprep.subr.bf16.mxu0 0
      %668 = vmatpush1.bf16.msra.mxu0 0
      %669 = vmatprep.subr.bf16.mxu0 0
      %670 = vmatpush1.bf16.msra.mxu0 0
      %671 = vmatprep.subr.bf16.mxu0 0
      %672 = vmatpush1.bf16.msra.mxu0 0
      %673 = vmatprep.subr.bf16.mxu0 0
      %674 = vmatpush1.bf16.msra.mxu0 0
      %675 = vmatprep.subr.bf16.mxu0 0
      %676 = vmatpush1.bf16.msra.mxu0 0
      %677 = vmatprep.subr.bf16.mxu0 0
      %678 = vmatpush1.bf16.msra.mxu0 0
      %679 = vmatprep.mubr.bf16.mxu0 0
      %680 = vmatmul.mubr.bf16.gmra.mrb[0].mxu0 %v642
      %v681 = vpop.f32.mrb[0].mxu0
      %v682 = vadd.f32 0.0, %v681
      %v683 = vpop.f32.mrb[0].mxu0
      %v684 = vpop.f32.mrb[0].mxu0
      %v685 = vpop.f32.mrb[0].mxu0
      %686 = vdwg.mxu0
      %v687 = vadd.f32 %v637, %v682
      %688 = vst.msk [vmem:[%s630] sm:$0xff] %vm282, %v687
      %689 = vst.msk [vmem:[%s605] sm:$0xff] %vm351, %v610
      %690 = vrot.lane.b32.xlu0 %v413, 104
      %v691 = vpop.permute.xlu0 %690
      %692 = vrot.lane.b32.xlu0 %v418, 104
      %v693 = vpop.permute.xlu0 %692
      %v695 = vsel %vm282, %v691, 0
      %v698 = vsel %vm282, %v693, 0
      %700 = vmatprep.subr.bf16.mxu0 0
      %701 = vmatpush1.bf16.xpose.msra.mxu0 %v698
      %702 = vmatprep.subr.bf16.mxu0 0
      %703 = vmatpush1.bf16.xpose.msra.mxu0 0
      %704 = vmatprep.subr.bf16.mxu0 0
      %705 = vmatpush1.bf16.xpose.msra.mxu0 0
      %706 = vmatprep.subr.bf16.mxu0 0
      %707 = vmatpush1.bf16.xpose.msra.mxu0 0
      %708 = vmatprep.subr.bf16.mxu0 0
      %709 = vmatpush1.bf16.xpose.msra.mxu0 0
      %710 = vmatprep.subr.bf16.mxu0 0
      %711 = vmatpush1.bf16.xpose.msra.mxu0 0
      %712 = vmatprep.subr.bf16.mxu0 0
      %713 = vmatpush1.bf16.xpose.msra.mxu0 0
      %714 = vmatprep.subr.bf16.mxu0 0
      %715 = vmatpush1.bf16.xpose.msra.mxu0 0
      %716 = vmatprep.subr.bf16.mxu0 0
      %717 = vmatpush1.bf16.xpose.msra.mxu0 0
      %718 = vmatprep.subr.bf16.mxu0 0
      %719 = vmatpush1.bf16.xpose.msra.mxu0 0
      %720 = vmatprep.subr.bf16.mxu0 0
      %721 = vmatpush1.bf16.xpose.msra.mxu0 0
      %722 = vmatprep.subr.bf16.mxu0 0
      %723 = vmatpush1.bf16.xpose.msra.mxu0 0
      %724 = vmatprep.subr.bf16.mxu0 0
      %725 = vmatpush1.bf16.xpose.msra.mxu0 0
      %726 = vmatprep.subr.bf16.mxu0 0
      %727 = vmatpush1.bf16.xpose.msra.mxu0 0
      %728 = vmatprep.subr.bf16.mxu0 0
      %729 = vmatpush1.bf16.xpose.msra.mxu0 0
      %730 = vmatprep.subr.bf16.mxu0 0
      %731 = vmatpush1.bf16.xpose.msra.mxu0 0
      %732 = vmatprep.mubr.bf16.mxu0 0
      %733 = vmatmul.mubr.bf16.gmra.mrb[0].mxu0 %v695
      %v734 = vpop.f32.mrb[0].mxu0
      %v735 = vadd.f32 0.0, %v734
      %v736 = vpop.f32.mrb[0].mxu0
      %v737 = vpop.f32.mrb[0].mxu0
      %v738 = vpop.f32.mrb[0].mxu0
      %739 = vdwg.mxu0
      %s740 = scalar_lea.vmem [#allocation2], 24
      %v741 = vld [vmem:[%s740] sm:$0xff]
      %v742 = vsel %vm282, %v735, -inf
      %743 = vmax.xlane.f32.xlu0 %v742
      %v744 = vpop.xlane.xlu0 %743
      %v745 = vmax.f32 %v741, %v744
      %v746 = vsub.f32 %v741, %v745
      %v747 = vmul.f32 %v746, 1.442695
      %v748 = vpow.pop %v747
      %750 = vset.pattern.permute.xlu0 0
      %751 = vperm.xlu0 %750, %v745
      %v752 = vpop.permute.xlu0 %751
      %v754 = vsub.f32 %v735, %v752
      %v755 = vmul.f32 %v754, 1.442695
      %v756 = vpow.pop %v755
      %s757 = scalar_lea.vmem [#allocation3], 24
      %v758 = vld [vmem:[%s757] sm:$0xff]
      %v759 = vmul.f32 %v748, %v758
      %v760 = vsel %vm282, %v756, 0.0
      %761 = vadd.xlane.f32.xlu0 %v760
      %v762 = vpop.xlane.xlu0 %761
      %v763 = vadd.f32 %v759, %v762
      %764 = vst.msk [vmem:[%s757] sm:$0xff] %vm351, %v763
      %s765 = scalar_lea.vmem [#allocation4], 24
      %v766 = vld [vmem:[%s765] sm:$0xff]
      %768 = vset.pattern.permute.xlu0 0
      %769 = vperm.xlu0 %768, %v748
      %v770 = vpop.permute.xlu0 %769
      %v772 = vmul.f32 %v770, %v766
      %v773 = vpack.c.bf16 %v756, %v756
      %774 = vrot.lane.b32.xlu0 %v503, 104
      %v775 = vpop.permute.xlu0 %774
      %v777 = vsel %vm282, %v773, 0
      %v780 = vsel %vm364, %v775, 0
      %782 = vmatprep.subr.bf16.mxu0 0
      %783 = vmatpush1.bf16.msra.mxu0 %v780
      %784 = vmatprep.subr.bf16.mxu0 0
      %785 = vmatpush1.bf16.msra.mxu0 0
      %786 = vmatprep.subr.bf16.mxu0 0
      %787 = vmatpush1.bf16.msra.mxu0 0
      %788 = vmatprep.subr.bf16.mxu0 0
      %789 = vmatpush1.bf16.msra.mxu0 0
      %790 = vmatprep.subr.bf16.mxu0 0
      %791 = vmatpush1.bf16.msra.mxu0 0
      %792 = vmatprep.subr.bf16.mxu0 0
      %793 = vmatpush1.bf16.msra.mxu0 0
      %794 = vmatprep.subr.bf16.mxu0 0
      %795 = vmatpush1.bf16.msra.mxu0 0
      %796 = vmatprep.subr.bf16.mxu0 0
      %797 = vmatpush1.bf16.msra.mxu0 0
      %798 = vmatprep.subr.bf16.mxu0 0
      %799 = vmatpush1.bf16.msra.mxu0 0
      %800 = vmatprep.subr.bf16.mxu0 0
      %801 = vmatpush1.bf16.msra.mxu0 0
      %802 = vmatprep.subr.bf16.mxu0 0
      %803 = vmatpush1.bf16.msra.mxu0 0
      %804 = vmatprep.subr.bf16.mxu0 0
      %805 = vmatpush1.bf16.msra.mxu0 0
      %806 = vmatprep.subr.bf16.mxu0 0
      %807 = vmatpush1.bf16.msra.mxu0 0
      %808 = vmatprep.subr.bf16.mxu0 0
      %809 = vmatpush1.bf16.msra.mxu0 0
      %810 = vmatprep.subr.bf16.mxu0 0
      %811 = vmatpush1.bf16.msra.mxu0 0
      %812 = vmatprep.subr.bf16.mxu0 0
      %813 = vmatpush1.bf16.msra.mxu0 0
      %814 = vmatprep.mubr.bf16.mxu0 0
      %815 = vmatmul.mubr.bf16.gmra.mrb[0].mxu0 %v777
      %v816 = vpop.f32.mrb[0].mxu0
      %v817 = vadd.f32 0.0, %v816
      %v818 = vpop.f32.mrb[0].mxu0
      %v819 = vpop.f32.mrb[0].mxu0
      %v820 = vpop.f32.mrb[0].mxu0
      %821 = vdwg.mxu0
      %v822 = vadd.f32 %v772, %v817
      %823 = vst.msk [vmem:[%s765] sm:$0xff] %vm282, %v822
      %824 = vst.msk [vmem:[%s740] sm:$0xff] %vm351, %v745
      // Predicated region
      $region37: #{transformer_model_forward.7} parent=31 // pred_check
        %p825 = pneg %p261
      $region38: #{transformer_model_forward.7} parent=31 // pred_check_branch
        %827 = sbr.rel (%p825) target = $region40
      $region39: #{transformer_model_forward.7} parent=31 // pred_region
        %v828 = vld [vmem:[#allocation4] sm:$0xff]
        %v829 = vld [vmem:[#allocation3] sm:$0xff]
        %v830 = vrcp.pop %v829
        %832 = vset.pattern.permute.xlu0 0
        %833 = vperm.xlu0 %832, %v830
        %v834 = vpop.permute.xlu0 %833
        %v836 = vmul.f32 %v828, %v834
        %v837 = vld [vmem:[%s492] sm:$0xff]
        %v838 = vld [vmem:[%s484] sm:$0xff]
        %v839 = vrcp.pop %v838
        %841 = vset.pattern.permute.xlu0 0
        %842 = vperm.xlu0 %841, %v839
        %v843 = vpop.permute.xlu0 %842
        %v845 = vmul.f32 %v837, %v843
        %v846 = vld [vmem:[%s630] sm:$0xff]
        %v847 = vld [vmem:[%s622] sm:$0xff]
        %v848 = vrcp.pop %v847
        %850 = vset.pattern.permute.xlu0 0
        %851 = vperm.xlu0 %850, %v848
        %v852 = vpop.permute.xlu0 %851
        %v854 = vmul.f32 %v846, %v852
        %v855 = vld [vmem:[%s765] sm:$0xff]
        %v856 = vld [vmem:[%s757] sm:$0xff]
        %v857 = vrcp.pop %v856
        %859 = vset.pattern.permute.xlu0 0
        %860 = vperm.xlu0 %859, %v857
        %v861 = vpop.permute.xlu0 %860
        %v863 = vmul.f32 %v855, %v861
        %865 = vrot.lane.b32.xlu0 %v845, 8
        %v866 = vpop.permute.xlu0 %865
        %869 = vrot.lane.b32.xlu0 %v854, 16
        %v870 = vpop.permute.xlu0 %869
        %873 = vrot.lane.b32.xlu0 %v863, 24
        %v874 = vpop.permute.xlu0 %873
        %v876 = vsel %vm282, %v836, %v866
        %vm877 = vcmask 130048
        %v878 = vsel %vm877, %v876, %v870
        %vm879 = vcmask 195584
        %v880 = vsel %vm879, %v878, %v874
        %v881 = vpack.c.bf16 %v880, %v880
        %vm882 = vcmask 257024
        %883 = vst.msk [vmem:[%s259] sm:$0xf] %vm882, %v881
      $region40: #{transformer_model_forward.7} parent=31 // pred_fallthru
        _
      %p884 = scmp.lt.s32.totalorder %s19, 1
      %s885 = scalar_select %p884, %s19, 1
      %p886 = scmp.lt.s32.totalorder %s20, 0
      %s887 = scalar_select %p886, %s20, 0
      %s888 = sadd.s32 %s887, %s885
      %s889 = smul.addr %s888, 4
      %s890 = scalar_lea.vmem %s3, %s889
      // Predicated region
      $region41: #{transformer_model_forward.7} parent=31 // pred_check
        %p891 = pneg %p137
      $region42: #{transformer_model_forward.7} parent=31 // pred_check_branch
        %893 = sbr.rel (%p891) target = $region44
      $region43: #{transformer_model_forward.7} parent=31 // pred_region
        _
      $region44: #{transformer_model_forward.7} parent=31 // pred_fallthru
        _
    $region32: #{transformer_model_forward.7} parent=5 // pred_fallthru
      _
    %p894 = scmp.le.s32.totalorder 2, %s9
    // Predicated region
    $region45: #{transformer_model_forward.7} parent=5 // pred_check
      %p895 = pneg %p894
    $region46: #{transformer_model_forward.7} parent=5 // pred_check_branch
      %897 = sbr.rel (%p895) target = $region48
    $region47: #{transformer_model_forward.7} parent=5 // pred_region
      %s898 = ssub.s32 %s9, 2
      // Predicated region
      $region49: #{transformer_model_forward.7} parent=47 // pred_check
        %p899 = pneg %p143
      $region50: #{transformer_model_forward.7} parent=47 // pred_check_branch
        %901 = sbr.rel (%p899) target = $region52
      $region51: #{transformer_model_forward.7} parent=47 // pred_region
        %p902 = scmp.lt.s32.totalorder %s22, 1
        %s903 = scalar_select %p902, %s22, 1
        %p904 = scmp.lt.s32.totalorder %s23, 0
        %s905 = scalar_select %p904, %s23, 0
        %s906 = sadd.s32 %s905, %s903
        %s907 = smul.addr %s906, 4
        %s908 = scalar_lea.vmem %s3, %s907
      $region52: #{transformer_model_forward.7} parent=47 // pred_fallthru
        _
    $region48: #{transformer_model_forward.7} parent=5 // pred_fallthru
      _
  $region6: #{transformer_model_forward.7} parent=0 // loop_footer
    %s13 = sadd.s32 1, %s9
  $region7: #{transformer_model_forward.7} parent=0 // loop_footer_branch
    %8 = sbr.rel target = $region3
  $region8: #{transformer_model_forward.7} parent=0 // loop_exit
    _

// kernel: transformer_model_forward.6
$region0: #{transformer_model_forward.6}
  #allocation0 [shape = 'u32[]', space=smem, size = 0x4, offset = 0x4, fixed_abs, tag = 'smem constant byte address 0x4 - core index']
  #allocation1 [shape = 'u32[144,128]{1,0:T(1,128)}', space=vmem, size = 0x12000, scoped, tag = 'internal scratch']
  %s0 = inlined_call_operand.vmem [shape: bf16[2,8,32], index: 0, kind: input, shape index: {}]
  %s1 = inlined_call_operand.vmem [shape: bf16[32,96], index: 1, kind: input, shape index: {}]
  %s2 = inlined_call_operand.vmem [shape: f32[1,96], index: 2, kind: input, shape index: {}]
  %s3 = inlined_call_operand.vmem [shape: bf16[2,8,32], index: 3, kind: output, shape index: {0}]
  %s4 = inlined_call_operand.vmem [shape: bf16[2,8,32], index: 4, kind: output, shape index: {1}]
  %s5 = inlined_call_operand.vmem [shape: bf16[2,8,32], index: 5, kind: output, shape index: {2}]
  %6 = xla_tuple %s3, %s4, %s5
  %s7 = sld [smem:[#allocation0]]
  $region61: #{transformer_model_forward.6} parent=0
    _
  %s9 = ssub.s32 1, %s7
  %s10 = scalar_select 0, %s9, %s7
  loop: start=0, step=1, limit=4
  $region2: #{transformer_model_forward.6} parent=0 // loop_pre_header
    _
  $region3: #{transformer_model_forward.6} parent=0 // loop_header
    %s12 = sphi 0, %s16
    %p13 = scmp.ge.s32.totalorder %s12, 4
    %s19 = sphi 0, %s31
    %s20 = sphi 0, %s27
    %s21 = sphi 0, %s19
    %s22 = sphi 0, %s20
    %s23 = sphi 0, %s21
    %s24 = sphi 0, %s22
    %s36 = sphi 0, %s38
    %s39 = sphi 0, %s36
    %s40 = sphi 0, %s39
    %s56 = sphi 0, %s40
    %s60 = sphi 0, %s60
    %s62 = sphi 0, %s60
    %s63 = sphi 0, %s62
    %s77 = sphi 0, %s63
    %s81 = sphi 0, %s81
    %s83 = sphi 0, %s81
    %s84 = sphi 0, %s83
    %s98 = sphi 0, %s84
    %s106 = sphi 0, %s108
    %s109 = sphi 0, %s106
    %s110 = sphi 0, %s109
    %s126 = sphi 0, %s110
    %s134 = sphi 0, %s136
    %s137 = sphi 0, %s134
    %s138 = sphi 0, %s137
    %s154 = sphi 0, %s138
    %s162 = sphi 0, %s164
    %s165 = sphi 0, %s162
    %s166 = sphi 0, %s165
    %s182 = sphi 0, %s166
  $region4: #{transformer_model_forward.6} parent=0 // loop_header_branch
    %15 = sbr.rel (%p13) target = $region8
  $region5: #{transformer_model_forward.6} parent=0 // loop_body
    %s17 = ssub.s32 %s12, 1
    %s18 = ssub.s32 %s12, 2
    %s25 = sadd.s32 1, %s20
    %p26 = scmp.ge.s32.totalorder %s25, 1
    %s27 = scalar_select %p26, 0, %s25
    %s28 = sadd.s32 1, %s19
    %s29 = scalar_select %p26, %s28, %s19
    %p30 = scmp.ge.s32.totalorder %s29, 2
    %s31 = scalar_select %p30, 0, %s29
    %s32 = ssub.s32 %s19, %s31
    %s33 = ssub.s32 %s20, %s27
    %s34 = sor.u32 %s32, %s33
    %p35 = scmp.eq.s32.totalorder %s34, 0
    %s37 = sadd.s32 %s36, 1
    %s38 = scalar_select %p35, %s36, %s37
    %p41 = pneg %p35
    %p42 = scmp.eq.s32.totalorder %s12, 1
    %p43 = por %p41, %p42
    %p44 = scmp.ne.s32.totalorder %s36, %s39
    %p45 = scmp.eq.s32.totalorder %s12, 0
    %p46 = por %p44, %p45
    %p47 = scmp.ne.s32.totalorder %s36, %s39
    %p48 = scmp.eq.s32.totalorder %s17, 1
    %p49 = por %p47, %p48
    %p50 = scmp.ne.s32.totalorder %s39, %s40
    %p51 = scmp.eq.s32.totalorder %s17, 0
    %p52 = por %p50, %p51
    %p53 = scmp.ne.s32.totalorder %s39, %s40
    %p54 = scmp.eq.s32.totalorder %s18, 1
    %p55 = por %p53, %p54
    %p57 = scmp.ne.s32.totalorder %s40, %s56
    %p58 = scmp.eq.s32.totalorder %s18, 0
    %p59 = por %p57, %p58
    %s61 = sadd.s32 %s60, 1
    %p64 = scmp.eq.s32.totalorder %s12, 1
    %p65 = scmp.ne.s32.totalorder %s60, %s62
    %p66 = scmp.eq.s32.totalorder %s12, 0
    %p67 = por %p65, %p66
    %p68 = scmp.ne.s32.totalorder %s60, %s62
    %p69 = scmp.eq.s32.totalorder %s17, 1
    %p70 = por %p68, %p69
    %p71 = scmp.ne.s32.totalorder %s62, %s63
    %p72 = scmp.eq.s32.totalorder %s17, 0
    %p73 = por %p71, %p72
    %p74 = scmp.ne.s32.totalorder %s62, %s63
    %p75 = scmp.eq.s32.totalorder %s18, 1
    %p76 = por %p74, %p75
    %p78 = scmp.ne.s32.totalorder %s63, %s77
    %p79 = scmp.eq.s32.totalorder %s18, 0
    %p80 = por %p78, %p79
    %s82 = sadd.s32 %s81, 1
    %p85 = scmp.eq.s32.totalorder %s12, 1
    %p86 = scmp.ne.s32.totalorder %s81, %s83
    %p87 = scmp.eq.s32.totalorder %s12, 0
    %p88 = por %p86, %p87
    %p89 = scmp.ne.s32.totalorder %s81, %s83
    %p90 = scmp.eq.s32.totalorder %s17, 1
    %p91 = por %p89, %p90
    %p92 = scmp.ne.s32.totalorder %s83, %s84
    %p93 = scmp.eq.s32.totalorder %s17, 0
    %p94 = por %p92, %p93
    %p95 = scmp.ne.s32.totalorder %s83, %s84
    %p96 = scmp.eq.s32.totalorder %s18, 1
    %p97 = por %p95, %p96
    %p99 = scmp.ne.s32.totalorder %s84, %s98
    %p100 = scmp.eq.s32.totalorder %s18, 0
    %p101 = por %p99, %p100
    %s102 = ssub.s32 %s19, %s31
    %s103 = ssub.s32 %s20, %s27
    %s104 = sor.u32 %s102, %s103
    %p105 = scmp.eq.s32.totalorder %s104, 0
    %s107 = sadd.s32 %s106, 1
    %s108 = scalar_select %p105, %s106, %s107
    %p111 = pneg %p105
    %p112 = scmp.eq.s32.totalorder %s12, 1
    %p113 = por %p111, %p112
    %p114 = scmp.ne.s32.totalorder %s106, %s109
    %p115 = scmp.eq.s32.totalorder %s12, 0
    %p116 = por %p114, %p115
    %p117 = scmp.ne.s32.totalorder %s106, %s109
    %p118 = scmp.eq.s32.totalorder %s17, 1
    %p119 = por %p117, %p118
    %p120 = scmp.ne.s32.totalorder %s109, %s110
    %p121 = scmp.eq.s32.totalorder %s17, 0
    %p122 = por %p120, %p121
    %p123 = scmp.ne.s32.totalorder %s109, %s110
    %p124 = scmp.eq.s32.totalorder %s18, 1
    %p125 = por %p123, %p124
    %p127 = scmp.ne.s32.totalorder %s110, %s126
    %p128 = scmp.eq.s32.totalorder %s18, 0
    %p129 = por %p127, %p128
    %s130 = ssub.s32 %s19, %s31
    %s131 = ssub.s32 %s20, %s27
    %s132 = sor.u32 %s130, %s131
    %p133 = scmp.eq.s32.totalorder %s132, 0
    %s135 = sadd.s32 %s134, 1
    %s136 = scalar_select %p133, %s134, %s135
    %p139 = pneg %p133
    %p140 = scmp.eq.s32.totalorder %s12, 1
    %p141 = por %p139, %p140
    %p142 = scmp.ne.s32.totalorder %s134, %s137
    %p143 = scmp.eq.s32.totalorder %s12, 0
    %p144 = por %p142, %p143
    %p145 = scmp.ne.s32.totalorder %s134, %s137
    %p146 = scmp.eq.s32.totalorder %s17, 1
    %p147 = por %p145, %p146
    %p148 = scmp.ne.s32.totalorder %s137, %s138
    %p149 = scmp.eq.s32.totalorder %s17, 0
    %p150 = por %p148, %p149
    %p151 = scmp.ne.s32.totalorder %s137, %s138
    %p152 = scmp.eq.s32.totalorder %s18, 1
    %p153 = por %p151, %p152
    %p155 = scmp.ne.s32.totalorder %s138, %s154
    %p156 = scmp.eq.s32.totalorder %s18, 0
    %p157 = por %p155, %p156
    %s158 = ssub.s32 %s19, %s31
    %s159 = ssub.s32 %s20, %s27
    %s160 = sor.u32 %s158, %s159
    %p161 = scmp.eq.s32.totalorder %s160, 0
    %s163 = sadd.s32 %s162, 1
    %s164 = scalar_select %p161, %s162, %s163
    %p167 = pneg %p161
    %p168 = scmp.eq.s32.totalorder %s12, 1
    %p169 = por %p167, %p168
    %p170 = scmp.ne.s32.totalorder %s162, %s165
    %p171 = scmp.eq.s32.totalorder %s12, 0
    %p172 = por %p170, %p171
    %p173 = scmp.ne.s32.totalorder %s162, %s165
    %p174 = scmp.eq.s32.totalorder %s17, 1
    %p175 = por %p173, %p174
    %p176 = scmp.ne.s32.totalorder %s165, %s166
    %p177 = scmp.eq.s32.totalorder %s17, 0
    %p178 = por %p176, %p177
    %p179 = scmp.ne.s32.totalorder %s165, %s166
    %p180 = scmp.eq.s32.totalorder %s18, 1
    %p181 = por %p179, %p180
    %p183 = scmp.ne.s32.totalorder %s166, %s182
    %p184 = scmp.eq.s32.totalorder %s18, 0
    %p185 = por %p183, %p184
    %p186 = scmp.le.s32.totalorder 1, %s12
    %p187 = scmp.lt.s32.totalorder %s12, 3
    %p188 = pnand %p186, %p187
    %p189 = pneg %p188
    // Predicated region
    $region9: #{transformer_model_forward.6} parent=5 // pred_check
      _
    $region10: #{transformer_model_forward.6} parent=5 // pred_check_branch
      %191 = sbr.rel (%p188) target = $region12
    $region11: #{transformer_model_forward.6} parent=5 // pred_region
      %s192 = ssub.s32 %s12, 1
      // Predicated region
      $region13: #{transformer_model_forward.6} parent=11 // pred_check
        %p193 = pneg %p73
      $region14: #{transformer_model_forward.6} parent=11 // pred_check_branch
        %195 = sbr.rel (%p193) target = $region16
      $region15: #{transformer_model_forward.6} parent=11 // pred_region
        _
      $region16: #{transformer_model_forward.6} parent=11 // pred_fallthru
        _
      // Predicated region
      $region17: #{transformer_model_forward.6} parent=11 // pred_check
        %p196 = pneg %p94
      $region18: #{transformer_model_forward.6} parent=11 // pred_check_branch
        %198 = sbr.rel (%p196) target = $region20
      $region19: #{transformer_model_forward.6} parent=11 // pred_region
        _
      $region20: #{transformer_model_forward.6} parent=11 // pred_fallthru
        _
    $region12: #{transformer_model_forward.6} parent=5 // pred_fallthru
      _
    %p199 = scmp.lt.s32.totalorder %s12, 2
    // Predicated region
    $region21: #{transformer_model_forward.6} parent=5 // pred_check
      %p200 = pneg %p199
    $region22: #{transformer_model_forward.6} parent=5 // pred_check_branch
      %202 = sbr.rel (%p200) target = $region24
    $region23: #{transformer_model_forward.6} parent=5 // pred_region
      // Predicated region
      $region25: #{transformer_model_forward.6} parent=23 // pred_check
        %p203 = pneg %p46
      $region26: #{transformer_model_forward.6} parent=23 // pred_check_branch
        %205 = sbr.rel (%p203) target = $region28
      $region27: #{transformer_model_forward.6} parent=23 // pred_region
        %p206 = scmp.lt.s32.totalorder %s19, 1
        %s207 = scalar_select %p206, %s19, 1
        %p208 = scmp.lt.s32.totalorder %s20, 0
        %s209 = scalar_select %p208, %s20, 0
        %s210 = sadd.s32 %s209, %s207
        %s211 = smul.addr %s210, 4
        %s212 = scalar_lea.vmem %s0, %s211
      $region28: #{transformer_model_forward.6} parent=23 // pred_fallthru
        _
    $region24: #{transformer_model_forward.6} parent=5 // pred_fallthru
      _
    %p213 = scmp.le.s32.totalorder 1, %s12
    %p214 = scmp.lt.s32.totalorder %s12, 3
    %p215 = pnand %p213, %p214
    %p216 = pneg %p215
    // Predicated region
    $region29: #{transformer_model_forward.6} parent=5 // pred_check
      _
    $region30: #{transformer_model_forward.6} parent=5 // pred_check_branch
      %218 = sbr.rel (%p215) target = $region32
    $region31: #{transformer_model_forward.6} parent=5 // pred_region
      %s219 = ssub.s32 %s12, 1
      %p220 = scmp.lt.s32.totalorder %s21, 1
      %s221 = scalar_select %p220, %s21, 1
      %p222 = scmp.lt.s32.totalorder %s22, 0
      %s223 = scalar_select %p222, %s22, 0
      %s224 = sadd.s32 %s223, %s221
      %s225 = smul.addr %s224, 4
      %s226 = scalar_lea.vmem %s0, %s225
      %p227 = pneg %p52
      %p228 = pneg %p49
      %p229 = pneg %p73
      %p230 = pneg %p70
      %p231 = pneg %p94
      %p232 = pneg %p91
      %p233 = pneg %p122
      %p234 = pneg %p119
      %p235 = scmp.lt.s32.totalorder %s21, 1
      %s236 = scalar_select %p235, %s21, 1
      %p237 = scmp.lt.s32.totalorder %s22, 0
      %s238 = scalar_select %p237, %s22, 0
      %s239 = sadd.s32 %s238, %s236
      %s240 = smul.addr %s239, 4
      %s241 = scalar_lea.vmem %s3, %s240
      %p242 = pneg %p150
      %p243 = pneg %p147
      %p244 = scmp.lt.s32.totalorder %s21, 1
      %s245 = scalar_select %p244, %s21, 1
      %p246 = scmp.lt.s32.totalorder %s22, 0
      %s247 = scalar_select %p246, %s22, 0
      %s248 = sadd.s32 %s247, %s245
      %s249 = smul.addr %s248, 4
      %s250 = scalar_lea.vmem %s4, %s249
      %p251 = pneg %p178
      %p252 = pneg %p175
      %p253 = scmp.lt.s32.totalorder %s21, 1
      %s254 = scalar_select %p253, %s21, 1
      %p255 = scmp.lt.s32.totalorder %s22, 0
      %s256 = scalar_select %p255, %s22, 0
      %s257 = sadd.s32 %s256, %s254
      %s258 = smul.addr %s257, 4
      %s259 = scalar_lea.vmem %s5, %s258
      %p260 = scmp.lt.s32.totalorder %s21, 1
      %s261 = scalar_select %p260, %s21, 1
      %p262 = scmp.lt.s32.totalorder %s22, 0
      %s263 = scalar_select %p262, %s22, 0
      %s264 = sadd.s32 %s263, %s261
      %s265 = smul.addr %s264, 4
      %s266 = scalar_lea.vmem %s0, %s265
      %p267 = scmp.lt.s32.totalorder %s21, 1
      %s268 = scalar_select %p267, %s21, 1
      %p269 = scmp.lt.s32.totalorder %s22, 0
      %s270 = scalar_select %p269, %s22, 0
      %s271 = sadd.s32 %s270, %s268
      %s272 = smul.addr %s271, 4
      %s273 = scalar_lea.vmem %s3, %s272
      %p274 = scmp.lt.s32.totalorder %s21, 1
      %s275 = scalar_select %p274, %s21, 1
      %p276 = scmp.lt.s32.totalorder %s22, 0
      %s277 = scalar_select %p276, %s22, 0
      %s278 = sadd.s32 %s277, %s275
      %s279 = smul.addr %s278, 4
      %s280 = scalar_lea.vmem %s4, %s279
      %p281 = scmp.lt.s32.totalorder %s21, 1
      %s282 = scalar_select %p281, %s21, 1
      %p283 = scmp.lt.s32.totalorder %s22, 0
      %s284 = scalar_select %p283, %s22, 0
      %s285 = sadd.s32 %s284, %s282
      %s286 = smul.addr %s285, 4
      %s287 = scalar_lea.vmem %s5, %s286
      %v289 = vld [vmem:[%s266] sm:$0xf]
      %v290 = vld [vmem:[%s1] sm:$0xf]
      %v291 = vld [vmem:[%s1 + $0x4] sm:$0xf]
      %v292 = vld [vmem:[%s1 + $0x8] sm:$0xf]
      %v293 = vld [vmem:[%s1 + $0xc] sm:$0xf]
      %v294 = vld [vmem:[%s2] sm:$0x1]
      %v296 = vlaneseq
      %v297 = vshrl.u32 %v296, 7
      %v298 = vsub.s32 0, %v297
      %v299 = vrot.slane %v294, %v298
      %v305 = vunpack.c.l.b16 %v290
      %v306 = vunpack.c.l.b16 %v291
      %v307 = vunpack.c.l.b16 %v292
      %v308 = vunpack.c.l.b16 %v293
      %v309 = vpack.c.b16 %v306, %v305
      %v310 = vpack.c.b16 %v308, %v307
      %vm313 = vcmask 261120
      %v315 = vsel %vm313, %v289, 0
      %317 = vmatprep.subr.bf16.mxu0 0
      %318 = vmatpush1.bf16.msra.mxu0 %v309
      %319 = vmatprep.subr.bf16.mxu0 0
      %320 = vmatpush1.bf16.msra.mxu0 %v310
      %321 = vmatprep.subr.bf16.mxu0 0
      %322 = vmatpush1.bf16.msra.mxu0 0
      %323 = vmatprep.subr.bf16.mxu0 0
      %324 = vmatpush1.bf16.msra.mxu0 0
      %325 = vmatprep.subr.bf16.mxu0 0
      %326 = vmatpush1.bf16.msra.mxu0 0
      %327 = vmatprep.subr.bf16.mxu0 0
      %328 = vmatpush1.bf16.msra.mxu0 0
      %329 = vmatprep.subr.bf16.mxu0 0
      %330 = vmatpush1.bf16.msra.mxu0 0
      %331 = vmatprep.subr.bf16.mxu0 0
      %332 = vmatpush1.bf16.msra.mxu0 0
      %333 = vmatprep.subr.bf16.mxu0 0
      %334 = vmatpush1.bf16.msra.mxu0 0
      %335 = vmatprep.subr.bf16.mxu0 0
      %336 = vmatpush1.bf16.msra.mxu0 0
      %337 = vmatprep.subr.bf16.mxu0 0
      %338 = vmatpush1.bf16.msra.mxu0 0
      %339 = vmatprep.subr.bf16.mxu0 0
      %340 = vmatpush1.bf16.msra.mxu0 0
      %341 = vmatprep.subr.bf16.mxu0 0
      %342 = vmatpush1.bf16.msra.mxu0 0
      %343 = vmatprep.subr.bf16.mxu0 0
      %344 = vmatpush1.bf16.msra.mxu0 0
      %345 = vmatprep.subr.bf16.mxu0 0
      %346 = vmatpush1.bf16.msra.mxu0 0
      %347 = vmatprep.subr.bf16.mxu0 0
      %348 = vmatpush1.bf16.msra.mxu0 0
      %349 = vmatprep.mubr.bf16.mxu0 0
      %350 = vmatmul.mubr.bf16.gmra.mrb[0].mxu0 %v315
      %v351 = vpop.f32.mrb[0].mxu0
      %v352 = vadd.f32 %v299, %v351
      %v353 = vpop.f32.mrb[0].mxu0
      %v354 = vpop.f32.mrb[0].mxu0
      %v355 = vpop.f32.mrb[0].mxu0
      %356 = vdwg.mxu0
      %v357 = vpack.c.bf16 %v352, %v352
      %vm358 = vcmask 257024
      %359 = vst.msk [vmem:[%s273] sm:$0xf] %vm358, %v357
      %v361 = vunpack.c.l.b16 %v357
      %v362 = vpack.c.b16 %v361, %v361
      %363 = vrot.lane.b32.xlu0 %v362, 96
      %v364 = vpop.permute.xlu0 %363
      %366 = vst.msk [vmem:[%s280] sm:$0xf] %vm358, %v364
      %367 = vrot.lane.b32.xlu0 %v362, 64
      %v368 = vpop.permute.xlu0 %367
      %370 = vst.msk [vmem:[%s287] sm:$0xf] %vm358, %v368
      %p371 = scmp.lt.s32.totalorder %s21, 1
      %s372 = scalar_select %p371, %s21, 1
      %p373 = scmp.lt.s32.totalorder %s22, 0
      %s374 = scalar_select %p373, %s22, 0
      %s375 = sadd.s32 %s374, %s372
      %s376 = smul.addr %s375, 4
      %s377 = scalar_lea.vmem %s3, %s376
      %p378 = scmp.lt.s32.totalorder %s21, 1
      %s379 = scalar_select %p378, %s21, 1
      %p380 = scmp.lt.s32.totalorder %s22, 0
      %s381 = scalar_select %p380, %s22, 0
      %s382 = sadd.s32 %s381, %s379
      %s383 = smul.addr %s382, 4
      %s384 = scalar_lea.vmem %s4, %s383
      %p385 = scmp.lt.s32.totalorder %s21, 1
      %s386 = scalar_select %p385, %s21, 1
      %p387 = scmp.lt.s32.totalorder %s22, 0
      %s388 = scalar_select %p387, %s22, 0
      %s389 = sadd.s32 %s388, %s386
      %s390 = smul.addr %s389, 4
      %s391 = scalar_lea.vmem %s5, %s390
      // Predicated region
      $region33: #{transformer_model_forward.6} parent=31 // pred_check
        %p392 = pneg %p119
      $region34: #{transformer_model_forward.6} parent=31 // pred_check_branch
        %394 = sbr.rel (%p392) target = $region36
      $region35: #{transformer_model_forward.6} parent=31 // pred_region
        _
      $region36: #{transformer_model_forward.6} parent=31 // pred_fallthru
        _
      // Predicated region
      $region37: #{transformer_model_forward.6} parent=31 // pred_check
        %p395 = pneg %p147
      $region38: #{transformer_model_forward.6} parent=31 // pred_check_branch
        %397 = sbr.rel (%p395) target = $region40
      $region39: #{transformer_model_forward.6} parent=31 // pred_region
        _
      $region40: #{transformer_model_forward.6} parent=31 // pred_fallthru
        _
      // Predicated region
      $region41: #{transformer_model_forward.6} parent=31 // pred_check
        %p398 = pneg %p175
      $region42: #{transformer_model_forward.6} parent=31 // pred_check_branch
        %400 = sbr.rel (%p398) target = $region44
      $region43: #{transformer_model_forward.6} parent=31 // pred_region
        _
      $region44: #{transformer_model_forward.6} parent=31 // pred_fallthru
        _
    $region32: #{transformer_model_forward.6} parent=5 // pred_fallthru
      _
    %p401 = scmp.le.s32.totalorder 2, %s12
    // Predicated region
    $region45: #{transformer_model_forward.6} parent=5 // pred_check
      %p402 = pneg %p401
    $region46: #{transformer_model_forward.6} parent=5 // pred_check_branch
      %404 = sbr.rel (%p402) target = $region48
    $region47: #{transformer_model_forward.6} parent=5 // pred_region
      %s405 = ssub.s32 %s12, 2
      // Predicated region
      $region49: #{transformer_model_forward.6} parent=47 // pred_check
        %p406 = pneg %p125
      $region50: #{transformer_model_forward.6} parent=47 // pred_check_branch
        %408 = sbr.rel (%p406) target = $region52
      $region51: #{transformer_model_forward.6} parent=47 // pred_region
        %p409 = scmp.lt.s32.totalorder %s23, 1
        %s410 = scalar_select %p409, %s23, 1
        %p411 = scmp.lt.s32.totalorder %s24, 0
        %s412 = scalar_select %p411, %s24, 0
        %s413 = sadd.s32 %s412, %s410
        %s414 = smul.addr %s413, 4
        %s415 = scalar_lea.vmem %s3, %s414
      $region52: #{transformer_model_forward.6} parent=47 // pred_fallthru
        _
      // Predicated region
      $region53: #{transformer_model_forward.6} parent=47 // pred_check
        %p416 = pneg %p153
      $region54: #{transformer_model_forward.6} parent=47 // pred_check_branch
        %418 = sbr.rel (%p416) target = $region56
      $region55: #{transformer_model_forward.6} parent=47 // pred_region
        %p419 = scmp.lt.s32.totalorder %s23, 1
        %s420 = scalar_select %p419, %s23, 1
        %p421 = scmp.lt.s32.totalorder %s24, 0
        %s422 = scalar_select %p421, %s24, 0
        %s423 = sadd.s32 %s422, %s420
        %s424 = smul.addr %s423, 4
        %s425 = scalar_lea.vmem %s4, %s424
      $region56: #{transformer_model_forward.6} parent=47 // pred_fallthru
        _
      // Predicated region
      $region57: #{transformer_model_forward.6} parent=47 // pred_check
        %p426 = pneg %p181
      $region58: #{transformer_model_forward.6} parent=47 // pred_check_branch
        %428 = sbr.rel (%p426) target = $region60
      $region59: #{transformer_model_forward.6} parent=47 // pred_region
        %p429 = scmp.lt.s32.totalorder %s23, 1
        %s430 = scalar_select %p429, %s23, 1
        %p431 = scmp.lt.s32.totalorder %s24, 0
        %s432 = scalar_select %p431, %s24, 0
        %s433 = sadd.s32 %s432, %s430
        %s434 = smul.addr %s433, 4
        %s435 = scalar_lea.vmem %s5, %s434
      $region60: #{transformer_model_forward.6} parent=47 // pred_fallthru
        _
    $region48: #{transformer_model_forward.6} parent=5 // pred_fallthru
      _
  $region6: #{transformer_model_forward.6} parent=0 // loop_footer
    %s16 = sadd.s32 1, %s12
  $region7: #{transformer_model_forward.6} parent=0 // loop_footer_branch
    %11 = sbr.rel target = $region3
  $region8: #{transformer_model_forward.6} parent=0 // loop_exit
    _

// kernel: transformer_model_forward.8
$region0: #{transformer_model_forward.8}
  #allocation0 [shape = 'u32[]', space=smem, size = 0x4, offset = 0x4, fixed_abs, tag = 'smem constant byte address 0x4 - core index']
  #allocation1 [shape = 'u32[144,128]{1,0:T(1,128)}', space=vmem, size = 0x12000, scoped, tag = 'internal scratch']
  #allocation2 [shape = 'bf16[8,32]{1,0:T(8,128)(2,1)}', space=vmem, size = 0x800, scoped, tag = 'scratch operand']
  #allocation3 [shape = 'f32[8,32]{1,0:T(8,128)}', space=vmem, size = 0x1000, scoped, tag = 'scratch operand']
  %s0 = inlined_call_operand.vmem [shape: bf16[16,32], index: 0, kind: input, shape index: {}]
  %s1 = inlined_call_operand.vmem [shape: bf16[16,32], index: 1, kind: input, shape index: {}]
  %s2 = inlined_call_operand.vmem [shape: bf16[32,32], index: 2, kind: input, shape index: {}]
  %s3 = inlined_call_operand.vmem [shape: f32[1,32], index: 3, kind: input, shape index: {}]
  %s4 = inlined_call_operand.vmem [shape: bf16[32,64], index: 4, kind: input, shape index: {}]
  %s5 = inlined_call_operand.vmem [shape: f32[1,64], index: 5, kind: input, shape index: {}]
  %s6 = inlined_call_operand.vmem [shape: bf16[64,32], index: 6, kind: input, shape index: {}]
  %s7 = inlined_call_operand.vmem [shape: f32[1,32], index: 7, kind: input, shape index: {}]
  %s8 = inlined_call_operand.vmem [shape: f32[1,32], index: 8, kind: input, shape index: {}]
  %s9 = inlined_call_operand.vmem [shape: f32[1,32], index: 9, kind: input, shape index: {}]
  %s10 = inlined_call_operand.vmem [shape: f32[1,32], index: 10, kind: input, shape index: {}]
  %s11 = inlined_call_operand.vmem [shape: f32[1,32], index: 11, kind: input, shape index: {}]
  %s12 = inlined_call_operand.vmem [shape: bf16[16,32], index: 12, kind: output, shape index: {}]
  %s13 = sld [smem:[#allocation0]]
  $region89: #{transformer_model_forward.8} parent=0
    _
  %s15 = ssub.s32 1, %s13
  %s16 = scalar_select 0, %s15, %s13
  loop: start=0, step=1, limit=4
  $region2: #{transformer_model_forward.8} parent=0 // loop_pre_header
    _
  $region3: #{transformer_model_forward.8} parent=0 // loop_header
    %s18 = sphi 0, %s22
    %p19 = scmp.ge.s32.totalorder %s18, 4
    %s25 = sphi 0, %s37
    %s26 = sphi 0, %s33
    %s27 = sphi 0, %s25
    %s28 = sphi 0, %s26
    %s29 = sphi 0, %s27
    %s30 = sphi 0, %s28
    %s40 = sphi 0, %s42
    %s43 = sphi 0, %s40
    %s44 = sphi 0, %s43
    %s60 = sphi 0, %s44
    %s66 = sphi 0, %s68
    %s69 = sphi 0, %s66
    %s70 = sphi 0, %s69
    %s86 = sphi 0, %s70
    %s90 = sphi 0, %s90
    %s92 = sphi 0, %s90
    %s93 = sphi 0, %s92
    %s107 = sphi 0, %s93
    %s111 = sphi 0, %s111
    %s113 = sphi 0, %s111
    %s114 = sphi 0, %s113
    %s128 = sphi 0, %s114
    %s134 = sphi 0, %s136
    %s137 = sphi 0, %s134
    %s138 = sphi 0, %s137
    %s154 = sphi 0, %s138
    %s160 = sphi 0, %s162
    %s163 = sphi 0, %s160
    %s164 = sphi 0, %s163
    %s180 = sphi 0, %s164
    %s186 = sphi 0, %s188
    %s189 = sphi 0, %s186
    %s190 = sphi 0, %s189
    %s206 = sphi 0, %s190
    %s210 = sphi 0, %s210
    %s212 = sphi 0, %s210
    %s213 = sphi 0, %s212
    %s227 = sphi 0, %s213
    %s231 = sphi 0, %s231
    %s233 = sphi 0, %s231
    %s234 = sphi 0, %s233
    %s248 = sphi 0, %s234
    %s252 = sphi 0, %s252
    %s254 = sphi 0, %s252
    %s255 = sphi 0, %s254
    %s269 = sphi 0, %s255
    %s273 = sphi 0, %s273
    %s275 = sphi 0, %s273
    %s276 = sphi 0, %s275
    %s290 = sphi 0, %s276
    %s294 = sphi 0, %s294
    %s296 = sphi 0, %s294
    %s297 = sphi 0, %s296
    %s311 = sphi 0, %s297
    %s317 = sphi 0, %s319
    %s320 = sphi 0, %s317
    %s321 = sphi 0, %s320
    %s337 = sphi 0, %s321
  $region4: #{transformer_model_forward.8} parent=0 // loop_header_branch
    %21 = sbr.rel (%p19) target = $region8
  $region5: #{transformer_model_forward.8} parent=0 // loop_body
    %s23 = ssub.s32 %s18, 1
    %s24 = ssub.s32 %s18, 2
    %s31 = sadd.s32 1, %s26
    %p32 = scmp.ge.s32.totalorder %s31, 1
    %s33 = scalar_select %p32, 0, %s31
    %s34 = sadd.s32 1, %s25
    %s35 = scalar_select %p32, %s34, %s25
    %p36 = scmp.ge.s32.totalorder %s35, 2
    %s37 = scalar_select %p36, 0, %s35
    %s38 = ssub.s32 %s25, %s37
    %p39 = scmp.eq.s32.totalorder %s38, 0
    %s41 = sadd.s32 %s40, 1
    %s42 = scalar_select %p39, %s40, %s41
    %p45 = pneg %p39
    %p46 = scmp.eq.s32.totalorder %s18, 1
    %p47 = por %p45, %p46
    %p48 = scmp.ne.s32.totalorder %s40, %s43
    %p49 = scmp.eq.s32.totalorder %s18, 0
    %p50 = por %p48, %p49
    %p51 = scmp.ne.s32.totalorder %s40, %s43
    %p52 = scmp.eq.s32.totalorder %s23, 1
    %p53 = por %p51, %p52
    %p54 = scmp.ne.s32.totalorder %s43, %s44
    %p55 = scmp.eq.s32.totalorder %s23, 0
    %p56 = por %p54, %p55
    %p57 = scmp.ne.s32.totalorder %s43, %s44
    %p58 = scmp.eq.s32.totalorder %s24, 1
    %p59 = por %p57, %p58
    %p61 = scmp.ne.s32.totalorder %s44, %s60
    %p62 = scmp.eq.s32.totalorder %s24, 0
    %p63 = por %p61, %p62
    %s64 = ssub.s32 %s25, %s37
    %p65 = scmp.eq.s32.totalorder %s64, 0
    %s67 = sadd.s32 %s66, 1
    %s68 = scalar_select %p65, %s66, %s67
    %p71 = pneg %p65
    %p72 = scmp.eq.s32.totalorder %s18, 1
    %p73 = por %p71, %p72
    %p74 = scmp.ne.s32.totalorder %s66, %s69
    %p75 = scmp.eq.s32.totalorder %s18, 0
    %p76 = por %p74, %p75
    %p77 = scmp.ne.s32.totalorder %s66, %s69
    %p78 = scmp.eq.s32.totalorder %s23, 1
    %p79 = por %p77, %p78
    %p80 = scmp.ne.s32.totalorder %s69, %s70
    %p81 = scmp.eq.s32.totalorder %s23, 0
    %p82 = por %p80, %p81
    %p83 = scmp.ne.s32.totalorder %s69, %s70
    %p84 = scmp.eq.s32.totalorder %s24, 1
    %p85 = por %p83, %p84
    %p87 = scmp.ne.s32.totalorder %s70, %s86
    %p88 = scmp.eq.s32.totalorder %s24, 0
    %p89 = por %p87, %p88
    %s91 = sadd.s32 %s90, 1
    %p94 = scmp.eq.s32.totalorder %s18, 1
    %p95 = scmp.ne.s32.totalorder %s90, %s92
    %p96 = scmp.eq.s32.totalorder %s18, 0
    %p97 = por %p95, %p96
    %p98 = scmp.ne.s32.totalorder %s90, %s92
    %p99 = scmp.eq.s32.totalorder %s23, 1
    %p100 = por %p98, %p99
    %p101 = scmp.ne.s32.totalorder %s92, %s93
    %p102 = scmp.eq.s32.totalorder %s23, 0
    %p103 = por %p101, %p102
    %p104 = scmp.ne.s32.totalorder %s92, %s93
    %p105 = scmp.eq.s32.totalorder %s24, 1
    %p106 = por %p104, %p105
    %p108 = scmp.ne.s32.totalorder %s93, %s107
    %p109 = scmp.eq.s32.totalorder %s24, 0
    %p110 = por %p108, %p109
    %s112 = sadd.s32 %s111, 1
    %p115 = scmp.eq.s32.totalorder %s18, 1
    %p116 = scmp.ne.s32.totalorder %s111, %s113
    %p117 = scmp.eq.s32.totalorder %s18, 0
    %p118 = por %p116, %p117
    %p119 = scmp.ne.s32.totalorder %s111, %s113
    %p120 = scmp.eq.s32.totalorder %s23, 1
    %p121 = por %p119, %p120
    %p122 = scmp.ne.s32.totalorder %s113, %s114
    %p123 = scmp.eq.s32.totalorder %s23, 0
    %p124 = por %p122, %p123
    %p125 = scmp.ne.s32.totalorder %s113, %s114
    %p126 = scmp.eq.s32.totalorder %s24, 1
    %p127 = por %p125, %p126
    %p129 = scmp.ne.s32.totalorder %s114, %s128
    %p130 = scmp.eq.s32.totalorder %s24, 0
    %p131 = por %p129, %p130
    %s132 = ssub.s32 %s26, %s33
    %p133 = scmp.eq.s32.totalorder %s132, 0
    %s135 = sadd.s32 %s134, 1
    %s136 = scalar_select %p133, %s134, %s135
    %p139 = pneg %p133
    %p140 = scmp.eq.s32.totalorder %s18, 1
    %p141 = por %p139, %p140
    %p142 = scmp.ne.s32.totalorder %s134, %s137
    %p143 = scmp.eq.s32.totalorder %s18, 0
    %p144 = por %p142, %p143
    %p145 = scmp.ne.s32.totalorder %s134, %s137
    %p146 = scmp.eq.s32.totalorder %s23, 1
    %p147 = por %p145, %p146
    %p148 = scmp.ne.s32.totalorder %s137, %s138
    %p149 = scmp.eq.s32.totalorder %s23, 0
    %p150 = por %p148, %p149
    %p151 = scmp.ne.s32.totalorder %s137, %s138
    %p152 = scmp.eq.s32.totalorder %s24, 1
    %p153 = por %p151, %p152
    %p155 = scmp.ne.s32.totalorder %s138, %s154
    %p156 = scmp.eq.s32.totalorder %s24, 0
    %p157 = por %p155, %p156
    %s158 = ssub.s32 %s26, %s33
    %p159 = scmp.eq.s32.totalorder %s158, 0
    %s161 = sadd.s32 %s160, 1
    %s162 = scalar_select %p159, %s160, %s161
    %p165 = pneg %p159
    %p166 = scmp.eq.s32.totalorder %s18, 1
    %p167 = por %p165, %p166
    %p168 = scmp.ne.s32.totalorder %s160, %s163
    %p169 = scmp.eq.s32.totalorder %s18, 0
    %p170 = por %p168, %p169
    %p171 = scmp.ne.s32.totalorder %s160, %s163
    %p172 = scmp.eq.s32.totalorder %s23, 1
    %p173 = por %p171, %p172
    %p174 = scmp.ne.s32.totalorder %s163, %s164
    %p175 = scmp.eq.s32.totalorder %s23, 0
    %p176 = por %p174, %p175
    %p177 = scmp.ne.s32.totalorder %s163, %s164
    %p178 = scmp.eq.s32.totalorder %s24, 1
    %p179 = por %p177, %p178
    %p181 = scmp.ne.s32.totalorder %s164, %s180
    %p182 = scmp.eq.s32.totalorder %s24, 0
    %p183 = por %p181, %p182
    %s184 = ssub.s32 %s26, %s33
    %p185 = scmp.eq.s32.totalorder %s184, 0
    %s187 = sadd.s32 %s186, 1
    %s188 = scalar_select %p185, %s186, %s187
    %p191 = pneg %p185
    %p192 = scmp.eq.s32.totalorder %s18, 1
    %p193 = por %p191, %p192
    %p194 = scmp.ne.s32.totalorder %s186, %s189
    %p195 = scmp.eq.s32.totalorder %s18, 0
    %p196 = por %p194, %p195
    %p197 = scmp.ne.s32.totalorder %s186, %s189
    %p198 = scmp.eq.s32.totalorder %s23, 1
    %p199 = por %p197, %p198
    %p200 = scmp.ne.s32.totalorder %s189, %s190
    %p201 = scmp.eq.s32.totalorder %s23, 0
    %p202 = por %p200, %p201
    %p203 = scmp.ne.s32.totalorder %s189, %s190
    %p204 = scmp.eq.s32.totalorder %s24, 1
    %p205 = por %p203, %p204
    %p207 = scmp.ne.s32.totalorder %s190, %s206
    %p208 = scmp.eq.s32.totalorder %s24, 0
    %p209 = por %p207, %p208
    %s211 = sadd.s32 %s210, 1
    %p214 = scmp.eq.s32.totalorder %s18, 1
    %p215 = scmp.ne.s32.totalorder %s210, %s212
    %p216 = scmp.eq.s32.totalorder %s18, 0
    %p217 = por %p215, %p216
    %p218 = scmp.ne.s32.totalorder %s210, %s212
    %p219 = scmp.eq.s32.totalorder %s23, 1
    %p220 = por %p218, %p219
    %p221 = scmp.ne.s32.totalorder %s212, %s213
    %p222 = scmp.eq.s32.totalorder %s23, 0
    %p223 = por %p221, %p222
    %p224 = scmp.ne.s32.totalorder %s212, %s213
    %p225 = scmp.eq.s32.totalorder %s24, 1
    %p226 = por %p224, %p225
    %p228 = scmp.ne.s32.totalorder %s213, %s227
    %p229 = scmp.eq.s32.totalorder %s24, 0
    %p230 = por %p228, %p229
    %s232 = sadd.s32 %s231, 1
    %p235 = scmp.eq.s32.totalorder %s18, 1
    %p236 = scmp.ne.s32.totalorder %s231, %s233
    %p237 = scmp.eq.s32.totalorder %s18, 0
    %p238 = por %p236, %p237
    %p239 = scmp.ne.s32.totalorder %s231, %s233
    %p240 = scmp.eq.s32.totalorder %s23, 1
    %p241 = por %p239, %p240
    %p242 = scmp.ne.s32.totalorder %s233, %s234
    %p243 = scmp.eq.s32.totalorder %s23, 0
    %p244 = por %p242, %p243
    %p245 = scmp.ne.s32.totalorder %s233, %s234
    %p246 = scmp.eq.s32.totalorder %s24, 1
    %p247 = por %p245, %p246
    %p249 = scmp.ne.s32.totalorder %s234, %s248
    %p250 = scmp.eq.s32.totalorder %s24, 0
    %p251 = por %p249, %p250
    %s253 = sadd.s32 %s252, 1
    %p256 = scmp.eq.s32.totalorder %s18, 1
    %p257 = scmp.ne.s32.totalorder %s252, %s254
    %p258 = scmp.eq.s32.totalorder %s18, 0
    %p259 = por %p257, %p258
    %p260 = scmp.ne.s32.totalorder %s252, %s254
    %p261 = scmp.eq.s32.totalorder %s23, 1
    %p262 = por %p260, %p261
    %p263 = scmp.ne.s32.totalorder %s254, %s255
    %p264 = scmp.eq.s32.totalorder %s23, 0
    %p265 = por %p263, %p264
    %p266 = scmp.ne.s32.totalorder %s254, %s255
    %p267 = scmp.eq.s32.totalorder %s24, 1
    %p268 = por %p266, %p267
    %p270 = scmp.ne.s32.totalorder %s255, %s269
    %p271 = scmp.eq.s32.totalorder %s24, 0
    %p272 = por %p270, %p271
    %s274 = sadd.s32 %s273, 1
    %p277 = scmp.eq.s32.totalorder %s18, 1
    %p278 = scmp.ne.s32.totalorder %s273, %s275
    %p279 = scmp.eq.s32.totalorder %s18, 0
    %p280 = por %p278, %p279
    %p281 = scmp.ne.s32.totalorder %s273, %s275
    %p282 = scmp.eq.s32.totalorder %s23, 1
    %p283 = por %p281, %p282
    %p284 = scmp.ne.s32.totalorder %s275, %s276
    %p285 = scmp.eq.s32.totalorder %s23, 0
    %p286 = por %p284, %p285
    %p287 = scmp.ne.s32.totalorder %s275, %s276
    %p288 = scmp.eq.s32.totalorder %s24, 1
    %p289 = por %p287, %p288
    %p291 = scmp.ne.s32.totalorder %s276, %s290
    %p292 = scmp.eq.s32.totalorder %s24, 0
    %p293 = por %p291, %p292
    %s295 = sadd.s32 %s294, 1
    %p298 = scmp.eq.s32.totalorder %s18, 1
    %p299 = scmp.ne.s32.totalorder %s294, %s296
    %p300 = scmp.eq.s32.totalorder %s18, 0
    %p301 = por %p299, %p300
    %p302 = scmp.ne.s32.totalorder %s294, %s296
    %p303 = scmp.eq.s32.totalorder %s23, 1
    %p304 = por %p302, %p303
    %p305 = scmp.ne.s32.totalorder %s296, %s297
    %p306 = scmp.eq.s32.totalorder %s23, 0
    %p307 = por %p305, %p306
    %p308 = scmp.ne.s32.totalorder %s296, %s297
    %p309 = scmp.eq.s32.totalorder %s24, 1
    %p310 = por %p308, %p309
    %p312 = scmp.ne.s32.totalorder %s297, %s311
    %p313 = scmp.eq.s32.totalorder %s24, 0
    %p314 = por %p312, %p313
    %s315 = ssub.s32 %s25, %s37
    %p316 = scmp.eq.s32.totalorder %s315, 0
    %s318 = sadd.s32 %s317, 1
    %s319 = scalar_select %p316, %s317, %s318
    %p322 = pneg %p316
    %p323 = scmp.eq.s32.totalorder %s18, 1
    %p324 = por %p322, %p323
    %p325 = scmp.ne.s32.totalorder %s317, %s320
    %p326 = scmp.eq.s32.totalorder %s18, 0
    %p327 = por %p325, %p326
    %p328 = scmp.ne.s32.totalorder %s317, %s320
    %p329 = scmp.eq.s32.totalorder %s23, 1
    %p330 = por %p328, %p329
    %p331 = scmp.ne.s32.totalorder %s320, %s321
    %p332 = scmp.eq.s32.totalorder %s23, 0
    %p333 = por %p331, %p332
    %p334 = scmp.ne.s32.totalorder %s320, %s321
    %p335 = scmp.eq.s32.totalorder %s24, 1
    %p336 = por %p334, %p335
    %p338 = scmp.ne.s32.totalorder %s321, %s337
    %p339 = scmp.eq.s32.totalorder %s24, 0
    %p340 = por %p338, %p339
    %p341 = scmp.le.s32.totalorder 1, %s18
    %p342 = scmp.lt.s32.totalorder %s18, 3
    %p343 = pnand %p341, %p342
    %p344 = pneg %p343
    // Predicated region
    $region9: #{transformer_model_forward.8} parent=5 // pred_check
      _
    $region10: #{transformer_model_forward.8} parent=5 // pred_check_branch
      %346 = sbr.rel (%p343) target = $region12
    $region11: #{transformer_model_forward.8} parent=5 // pred_region
      %s347 = ssub.s32 %s18, 1
      // Predicated region
      $region13: #{transformer_model_forward.8} parent=11 // pred_check
        %p348 = pneg %p103
      $region14: #{transformer_model_forward.8} parent=11 // pred_check_branch
        %350 = sbr.rel (%p348) target = $region16
      $region15: #{transformer_model_forward.8} parent=11 // pred_region
        _
      $region16: #{transformer_model_forward.8} parent=11 // pred_fallthru
        _
      // Predicated region
      $region17: #{transformer_model_forward.8} parent=11 // pred_check
        %p351 = pneg %p124
      $region18: #{transformer_model_forward.8} parent=11 // pred_check_branch
        %353 = sbr.rel (%p351) target = $region20
      $region19: #{transformer_model_forward.8} parent=11 // pred_region
        _
      $region20: #{transformer_model_forward.8} parent=11 // pred_fallthru
        _
      // Predicated region
      $region21: #{transformer_model_forward.8} parent=11 // pred_check
        %p354 = pneg %p150
      $region22: #{transformer_model_forward.8} parent=11 // pred_check_branch
        %356 = sbr.rel (%p354) target = $region24
      $region23: #{transformer_model_forward.8} parent=11 // pred_region
        %p357 = scmp.lt.s32.totalorder %s28, 0
        %s358 = scalar_select %p357, %s28, 0
        %s359 = smul.addr %s358, 4
        %s360 = scalar_lea.vmem %s4, %s359
      $region24: #{transformer_model_forward.8} parent=11 // pred_fallthru
        _
      // Predicated region
      $region25: #{transformer_model_forward.8} parent=11 // pred_check
        %p361 = pneg %p176
      $region26: #{transformer_model_forward.8} parent=11 // pred_check_branch
        %363 = sbr.rel (%p361) target = $region28
      $region27: #{transformer_model_forward.8} parent=11 // pred_region
        %p364 = scmp.lt.s32.totalorder %s28, 0
        %s365 = scalar_select %p364, %s28, 0
        %s366 = scalar_lea.vmem %s5, %s365
      $region28: #{transformer_model_forward.8} parent=11 // pred_fallthru
        _
      // Predicated region
      $region29: #{transformer_model_forward.8} parent=11 // pred_check
        %p367 = pneg %p202
      $region30: #{transformer_model_forward.8} parent=11 // pred_check_branch
        %369 = sbr.rel (%p367) target = $region32
      $region31: #{transformer_model_forward.8} parent=11 // pred_region
        %s370 = smul.u32 8, %s28
        %p371 = scmp.lt.s32.totalorder %s370, 7
        %s372 = scalar_select %p371, %s370, 7
        %s373 = smul.addr %s372, 4
        %s374 = scalar_lea.vmem %s6, %s373
        %s375 = smul.u32 8, %s28
      $region32: #{transformer_model_forward.8} parent=11 // pred_fallthru
        _
      // Predicated region
      $region33: #{transformer_model_forward.8} parent=11 // pred_check
        %p376 = pneg %p223
      $region34: #{transformer_model_forward.8} parent=11 // pred_check_branch
        %378 = sbr.rel (%p376) target = $region36
      $region35: #{transformer_model_forward.8} parent=11 // pred_region
        _
      $region36: #{transformer_model_forward.8} parent=11 // pred_fallthru
        _
      // Predicated region
      $region37: #{transformer_model_forward.8} parent=11 // pred_check
        %p379 = pneg %p244
      $region38: #{transformer_model_forward.8} parent=11 // pred_check_branch
        %381 = sbr.rel (%p379) target = $region40
      $region39: #{transformer_model_forward.8} parent=11 // pred_region
        _
      $region40: #{transformer_model_forward.8} parent=11 // pred_fallthru
        _
      // Predicated region
      $region41: #{transformer_model_forward.8} parent=11 // pred_check
        %p382 = pneg %p265
      $region42: #{transformer_model_forward.8} parent=11 // pred_check_branch
        %384 = sbr.rel (%p382) target = $region44
      $region43: #{transformer_model_forward.8} parent=11 // pred_region
        _
      $region44: #{transformer_model_forward.8} parent=11 // pred_fallthru
        _
      // Predicated region
      $region45: #{transformer_model_forward.8} parent=11 // pred_check
        %p385 = pneg %p286
      $region46: #{transformer_model_forward.8} parent=11 // pred_check_branch
        %387 = sbr.rel (%p385) target = $region48
      $region47: #{transformer_model_forward.8} parent=11 // pred_region
        _
      $region48: #{transformer_model_forward.8} parent=11 // pred_fallthru
        _
      // Predicated region
      $region49: #{transformer_model_forward.8} parent=11 // pred_check
        %p388 = pneg %p307
      $region50: #{transformer_model_forward.8} parent=11 // pred_check_branch
        %390 = sbr.rel (%p388) target = $region52
      $region51: #{transformer_model_forward.8} parent=11 // pred_region
        _
      $region52: #{transformer_model_forward.8} parent=11 // pred_fallthru
        _
    $region12: #{transformer_model_forward.8} parent=5 // pred_fallthru
      _
    %p391 = scmp.lt.s32.totalorder %s18, 2
    // Predicated region
    $region53: #{transformer_model_forward.8} parent=5 // pred_check
      %p392 = pneg %p391
    $region54: #{transformer_model_forward.8} parent=5 // pred_check_branch
      %394 = sbr.rel (%p392) target = $region56
    $region55: #{transformer_model_forward.8} parent=5 // pred_region
      // Predicated region
      $region57: #{transformer_model_forward.8} parent=55 // pred_check
        %p395 = pneg %p50
      $region58: #{transformer_model_forward.8} parent=55 // pred_check_branch
        %397 = sbr.rel (%p395) target = $region60
      $region59: #{transformer_model_forward.8} parent=55 // pred_region
        %p398 = scmp.lt.s32.totalorder %s25, 1
        %s399 = scalar_select %p398, %s25, 1
        %s400 = smul.addr %s399, 4
        %s401 = scalar_lea.vmem %s0, %s400
      $region60: #{transformer_model_forward.8} parent=55 // pred_fallthru
        _
      // Predicated region
      $region61: #{transformer_model_forward.8} parent=55 // pred_check
        %p402 = pneg %p76
      $region62: #{transformer_model_forward.8} parent=55 // pred_check_branch
        %404 = sbr.rel (%p402) target = $region64
      $region63: #{transformer_model_forward.8} parent=55 // pred_region
        %p405 = scmp.lt.s32.totalorder %s25, 1
        %s406 = scalar_select %p405, %s25, 1
        %s407 = smul.addr %s406, 4
        %s408 = scalar_lea.vmem %s1, %s407
      $region64: #{transformer_model_forward.8} parent=55 // pred_fallthru
        _
    $region56: #{transformer_model_forward.8} parent=5 // pred_fallthru
      _
    %p409 = scmp.le.s32.totalorder 1, %s18
    %p410 = scmp.lt.s32.totalorder %s18, 3
    %p411 = pnand %p409, %p410
    %p412 = pneg %p411
    // Predicated region
    $region65: #{transformer_model_forward.8} parent=5 // pred_check
      _
    $region66: #{transformer_model_forward.8} parent=5 // pred_check_branch
      %414 = sbr.rel (%p411) target = $region68
    $region67: #{transformer_model_forward.8} parent=5 // pred_region
      %s415 = ssub.s32 %s18, 1
      %p416 = scmp.lt.s32.totalorder %s27, 1
      %s417 = scalar_select %p416, %s27, 1
      %s418 = smul.addr %s417, 4
      %s419 = scalar_lea.vmem %s0, %s418
      %p420 = pneg %p56
      %p421 = pneg %p53
      %p422 = scmp.lt.s32.totalorder %s27, 1
      %s423 = scalar_select %p422, %s27, 1
      %s424 = smul.addr %s423, 4
      %s425 = scalar_lea.vmem %s1, %s424
      %p426 = pneg %p82
      %p427 = pneg %p79
      %p428 = pneg %p103
      %p429 = pneg %p100
      %p430 = pneg %p124
      %p431 = pneg %p121
      %p432 = scmp.lt.s32.totalorder %s28, 0
      %s433 = scalar_select %p432, %s28, 0
      %s434 = smul.addr %s433, 4
      %s435 = scalar_lea.vmem %s4, %s434
      %p436 = pneg %p150
      %p437 = pneg %p147
      %p438 = scmp.lt.s32.totalorder %s28, 0
      %s439 = scalar_select %p438, %s28, 0
      %s440 = scalar_lea.vmem %s5, %s439
      %p441 = pneg %p176
      %p442 = pneg %p173
      %s443 = smul.u32 8, %s28
      %p444 = scmp.lt.s32.totalorder %s443, 7
      %s445 = scalar_select %p444, %s443, 7
      %s446 = smul.addr %s445, 4
      %s447 = scalar_lea.vmem %s6, %s446
      %p448 = pneg %p202
      %p449 = pneg %p199
      %p450 = pneg %p223
      %p451 = pneg %p220
      %p452 = pneg %p244
      %p453 = pneg %p241
      %p454 = pneg %p265
      %p455 = pneg %p262
      %p456 = pneg %p286
      %p457 = pneg %p283
      %p458 = pneg %p307
      %p459 = pneg %p304
      %p460 = pneg %p333
      %p461 = pneg %p330
      %p462 = scmp.lt.s32.totalorder %s27, 1
      %s463 = scalar_select %p462, %s27, 1
      %s464 = smul.addr %s463, 4
      %s465 = scalar_lea.vmem %s12, %s464
      %p466 = scmp.lt.s32.totalorder %s27, 1
      %s467 = scalar_select %p466, %s27, 1
      %s468 = smul.addr %s467, 4
      %s469 = scalar_lea.vmem %s0, %s468
      %p470 = scmp.lt.s32.totalorder %s27, 1
      %s471 = scalar_select %p470, %s27, 1
      %s472 = smul.addr %s471, 4
      %s473 = scalar_lea.vmem %s1, %s472
      %p474 = scmp.lt.s32.totalorder %s28, 0
      %s475 = scalar_select %p474, %s28, 0
      %s476 = smul.addr %s475, 4
      %s477 = scalar_lea.vmem %s4, %s476
      %p478 = scmp.lt.s32.totalorder %s28, 0
      %s479 = scalar_select %p478, %s28, 0
      %s480 = scalar_lea.vmem %s5, %s479
      %s481 = smul.u32 8, %s28
      %p482 = scmp.lt.s32.totalorder %s481, 7
      %s483 = scalar_select %p482, %s481, 7
      %s484 = smul.addr %s483, 4
      %s485 = scalar_lea.vmem %s6, %s484
      %s486 = smul.u32 8, %s28
      %p487 = scmp.lt.s32.totalorder %s27, 1
      %s488 = scalar_select %p487, %s27, 1
      %s489 = smul.addr %s488, 4
      %s490 = scalar_lea.vmem %s12, %s489
      %p492 = scmp.eq.s32.totalorder %s28, 0
      // Predicated region
      $region69: #{transformer_model_forward.8} parent=67 // pred_check
        %p493 = pneg %p492
      $region70: #{transformer_model_forward.8} parent=67 // pred_check_branch
        %495 = sbr.rel (%p493) target = $region72
      $region71: #{transformer_model_forward.8} parent=67 // pred_region
        %v496 = vld [vmem:[%s469] sm:$0xf]
        %v497 = vld [vmem:[%s2] sm:$0xf]
        %v498 = vld [vmem:[%s2 + $0x4] sm:$0xf]
        %v499 = vld [vmem:[%s2 + $0x8] sm:$0xf]
        %v500 = vld [vmem:[%s2 + $0xc] sm:$0xf]
        %v501 = vld [vmem:[%s3] sm:$0x1]
        %v503 = vlaneseq
        %v504 = vshrl.u32 %v503, 7
        %v505 = vsub.s32 0, %v504
        %v506 = vrot.slane %v501, %v505
        %v512 = vunpack.c.l.b16 %v497
        %v513 = vunpack.c.l.b16 %v498
        %v514 = vunpack.c.l.b16 %v499
        %v515 = vunpack.c.l.b16 %v500
        %v516 = vpack.c.b16 %v513, %v512
        %v517 = vpack.c.b16 %v515, %v514
        %vm520 = vcmask 261120
        %v522 = vsel %vm520, %v496, 0
        %524 = vmatprep.subr.bf16.mxu0 0
        %525 = vmatpush1.bf16.msra.mxu0 %v516
        %526 = vmatprep.subr.bf16.mxu0 0
        %527 = vmatpush1.bf16.msra.mxu0 %v517
        %528 = vmatprep.subr.bf16.mxu0 0
        %529 = vmatpush1.bf16.msra.mxu0 0
        %530 = vmatprep.subr.bf16.mxu0 0
        %531 = vmatpush1.bf16.msra.mxu0 0
        %532 = vmatprep.subr.bf16.mxu0 0
        %533 = vmatpush1.bf16.msra.mxu0 0
        %534 = vmatprep.subr.bf16.mxu0 0
        %535 = vmatpush1.bf16.msra.mxu0 0
        %536 = vmatprep.subr.bf16.mxu0 0
        %537 = vmatpush1.bf16.msra.mxu0 0
        %538 = vmatprep.subr.bf16.mxu0 0
        %539 = vmatpush1.bf16.msra.mxu0 0
        %540 = vmatprep.subr.bf16.mxu0 0
        %541 = vmatpush1.bf16.msra.mxu0 0
        %542 = vmatprep.subr.bf16.mxu0 0
        %543 = vmatpush1.bf16.msra.mxu0 0
        %544 = vmatprep.subr.bf16.mxu0 0
        %545 = vmatpush1.bf16.msra.mxu0 0
        %546 = vmatprep.subr.bf16.mxu0 0
        %547 = vmatpush1.bf16.msra.mxu0 0
        %548 = vmatprep.subr.bf16.mxu0 0
        %549 = vmatpush1.bf16.msra.mxu0 0
        %550 = vmatprep.subr.bf16.mxu0 0
        %551 = vmatpush1.bf16.msra.mxu0 0
        %552 = vmatprep.subr.bf16.mxu0 0
        %553 = vmatpush1.bf16.msra.mxu0 0
        %554 = vmatprep.subr.bf16.mxu0 0
        %555 = vmatpush1.bf16.msra.mxu0 0
        %556 = vmatprep.mubr.bf16.mxu0 0
        %557 = vmatmul.mubr.bf16.gmra.mrb[0].mxu0 %v522
        %v558 = vpop.f32.mrb[0].mxu0
        %v559 = vadd.f32 %v506, %v558
        %v560 = vpop.f32.mrb[0].mxu0
        %v561 = vpop.f32.mrb[0].mxu0
        %v562 = vpop.f32.mrb[0].mxu0
        %563 = vdwg.mxu0
        %v564 = vld [vmem:[%s473] sm:$0xf]
        %v565 = vunpack.c.l.bf16 %v564
        %v566 = vadd.f32 %v559, %v565
        %v567 = vsel %vm520, %v566, 0.0
        %568 = vadd.xlane.f32.xlu0 %v567
        %v569 = vpop.xlane.xlu0 %568
        %v570 = vrcp.pop 32.0
        %v571 = vmul.f32 %v569, %v570
        %v572 = vsub.f32 %v566, %v571
        %v573 = vmul.f32 %v572, %v572
        %v574 = vsel %vm520, %v573, 0.0
        %575 = vadd.xlane.f32.xlu0 %v574
        %v576 = vpop.xlane.xlu0 %575
        %v577 = vmul.f32 %v576, %v570
        %v578 = vadd.f32 %v577, 1e-05
        %v579 = vrsqrt.pop %v578
        %v580 = vmul.f32 %v572, %v579
        %v581 = vld [vmem:[%s8] sm:$0x1]
        %v583 = vlaneseq
        %v584 = vshrl.u32 %v583, 7
        %v585 = vsub.s32 0, %v584
        %v586 = vrot.slane %v581, %v585
        %v588 = vmul.f32 %v580, %v586
        %v589 = vld [vmem:[%s9] sm:$0x1]
        %v591 = vlaneseq
        %v592 = vshrl.u32 %v591, 7
        %v593 = vsub.s32 0, %v592
        %v594 = vrot.slane %v589, %v593
        %v596 = vadd.f32 %v588, %v594
        %v597 = vpack.c.bf16 %v596, %v596
        %vm598 = vcmask 257024
        %599 = vst.msk [vmem:[#allocation2] sm:$0xf] %vm598, %v597
        %600 = vst.msk [vmem:[#allocation3] sm:$0xff] %vm520, 0.0
      $region72: #{transformer_model_forward.8} parent=67 // pred_fallthru
        _
      %v601 = vld [vmem:[#allocation2] sm:$0xf]
      %v602 = vld [vmem:[%s477] sm:$0xf]
      %v603 = vld [vmem:[%s477 + $0x4] sm:$0xf]
      %v604 = vld [vmem:[%s477 + $0x8] sm:$0xf]
      %v605 = vld [vmem:[%s477 + $0xc] sm:$0xf]
      %v606 = vld [vmem:[%s480] sm:$0x1]
      %v608 = vlaneseq
      %v609 = vshrl.u32 %v608, 7
      %v610 = vsub.s32 0, %v609
      %v611 = vrot.slane %v606, %v610
      %v617 = vunpack.c.l.b16 %v602
      %v618 = vunpack.c.l.b16 %v603
      %v619 = vunpack.c.l.b16 %v604
      %v620 = vunpack.c.l.b16 %v605
      %v621 = vpack.c.b16 %v618, %v617
      %v622 = vpack.c.b16 %v620, %v619
      %vm625 = vcmask 261120
      %v627 = vsel %vm625, %v601, 0
      %629 = vmatprep.subr.bf16.mxu0 0
      %630 = vmatpush1.bf16.msra.mxu0 %v621
      %631 = vmatprep.subr.bf16.mxu0 0
      %632 = vmatpush1.bf16.msra.mxu0 %v622
      %633 = vmatprep.subr.bf16.mxu0 0
      %634 = vmatpush1.bf16.msra.mxu0 0
      %635 = vmatprep.subr.bf16.mxu0 0
      %636 = vmatpush1.bf16.msra.mxu0 0
      %637 = vmatprep.subr.bf16.mxu0 0
      %638 = vmatpush1.bf16.msra.mxu0 0
      %639 = vmatprep.subr.bf16.mxu0 0
      %640 = vmatpush1.bf16.msra.mxu0 0
      %641 = vmatprep.subr.bf16.mxu0 0
      %642 = vmatpush1.bf16.msra.mxu0 0
      %643 = vmatprep.subr.bf16.mxu0 0
      %644 = vmatpush1.bf16.msra.mxu0 0
      %645 = vmatprep.subr.bf16.mxu0 0
      %646 = vmatpush1.bf16.msra.mxu0 0
      %647 = vmatprep.subr.bf16.mxu0 0
      %648 = vmatpush1.bf16.msra.mxu0 0
      %649 = vmatprep.subr.bf16.mxu0 0
      %650 = vmatpush1.bf16.msra.mxu0 0
      %651 = vmatprep.subr.bf16.mxu0 0
      %652 = vmatpush1.bf16.msra.mxu0 0
      %653 = vmatprep.subr.bf16.mxu0 0
      %654 = vmatpush1.bf16.msra.mxu0 0
      %655 = vmatprep.subr.bf16.mxu0 0
      %656 = vmatpush1.bf16.msra.mxu0 0
      %657 = vmatprep.subr.bf16.mxu0 0
      %658 = vmatpush1.bf16.msra.mxu0 0
      %659 = vmatprep.subr.bf16.mxu0 0
      %660 = vmatpush1.bf16.msra.mxu0 0
      %661 = vmatprep.mubr.bf16.mxu0 0
      %662 = vmatmul.mubr.bf16.gmra.mrb[0].mxu0 %v627
      %v663 = vpop.f32.mrb[0].mxu0
      %v664 = vadd.f32 %v611, %v663
      %v665 = vpop.f32.mrb[0].mxu0
      %v666 = vpop.f32.mrb[0].mxu0
      %v667 = vpop.f32.mrb[0].mxu0
      %668 = vdwg.mxu0
      %v669 = vmax.f32 %v664, 0.0
      %v670 = vpack.c.bf16 %v669, %v669
      %v671 = vld [vmem:[#allocation3] sm:$0xff]
      %v672 = vld [vmem:[%s485] sm:$0xf]
      %v673 = vld [vmem:[%s485 + $0x4] sm:$0xf]
      %v674 = vld [vmem:[%s485 + $0x8] sm:$0xf]
      %v675 = vld [vmem:[%s485 + $0xc] sm:$0xf]
      %v676 = vld [vmem:[%s485 + $0x10] sm:$0xf]
      %v677 = vld [vmem:[%s485 + $0x14] sm:$0xf]
      %v678 = vld [vmem:[%s485 + $0x18] sm:$0xf]
      %v679 = vld [vmem:[%s485 + $0x1c] sm:$0xf]
      %v688 = vunpack.c.l.b16 %v672
      %v689 = vunpack.c.l.b16 %v673
      %v690 = vunpack.c.l.b16 %v674
      %v691 = vunpack.c.l.b16 %v675
      %v692 = vunpack.c.l.b16 %v676
      %v693 = vunpack.c.l.b16 %v677
      %v694 = vunpack.c.l.b16 %v678
      %v695 = vunpack.c.l.b16 %v679
      %v696 = vpack.c.b16 %v689, %v688
      %v697 = vpack.c.b16 %v691, %v690
      %v698 = vpack.c.b16 %v693, %v692
      %v699 = vpack.c.b16 %v695, %v694
      %vm704 = vcmask 523264
      %v706 = vsel %vm704, %v670, 0
      %708 = vmatprep.subr.bf16.mxu0 0
      %709 = vmatpush1.bf16.msra.mxu0 %v696
      %710 = vmatprep.subr.bf16.mxu0 0
      %711 = vmatpush1.bf16.msra.mxu0 %v697
      %712 = vmatprep.subr.bf16.mxu0 0
      %713 = vmatpush1.bf16.msra.mxu0 %v698
      %714 = vmatprep.subr.bf16.mxu0 0
      %715 = vmatpush1.bf16.msra.mxu0 %v699
      %716 = vmatprep.subr.bf16.mxu0 0
      %717 = vmatpush1.bf16.msra.mxu0 0
      %718 = vmatprep.subr.bf16.mxu0 0
      %719 = vmatpush1.bf16.msra.mxu0 0
      %720 = vmatprep.subr.bf16.mxu0 0
      %721 = vmatpush1.bf16.msra.mxu0 0
      %722 = vmatprep.subr.bf16.mxu0 0
      %723 = vmatpush1.bf16.msra.mxu0 0
      %724 = vmatprep.subr.bf16.mxu0 0
      %725 = vmatpush1.bf16.msra.mxu0 0
      %726 = vmatprep.subr.bf16.mxu0 0
      %727 = vmatpush1.bf16.msra.mxu0 0
      %728 = vmatprep.subr.bf16.mxu0 0
      %729 = vmatpush1.bf16.msra.mxu0 0
      %730 = vmatprep.subr.bf16.mxu0 0
      %731 = vmatpush1.bf16.msra.mxu0 0
      %732 = vmatprep.subr.bf16.mxu0 0
      %733 = vmatpush1.bf16.msra.mxu0 0
      %734 = vmatprep.subr.bf16.mxu0 0
      %735 = vmatpush1.bf16.msra.mxu0 0
      %736 = vmatprep.subr.bf16.mxu0 0
      %737 = vmatpush1.bf16.msra.mxu0 0
      %738 = vmatprep.subr.bf16.mxu0 0
      %739 = vmatpush1.bf16.msra.mxu0 0
      %740 = vmatprep.mubr.bf16.mxu0 0
      %741 = vmatmul.mubr.bf16.gmra.mrb[0].mxu0 %v706
      %v742 = vpop.f32.mrb[0].mxu0
      %v743 = vadd.f32 0.0, %v742
      %v744 = vpop.f32.mrb[0].mxu0
      %v745 = vpop.f32.mrb[0].mxu0
      %v746 = vpop.f32.mrb[0].mxu0
      %747 = vdwg.mxu0
      %v748 = vadd.f32 %v671, %v743
      %749 = vst.msk [vmem:[#allocation3] sm:$0xff] %vm625, %v748
      // Predicated region
      $region73: #{transformer_model_forward.8} parent=67 // pred_check
        %p750 = pneg %p492
      $region74: #{transformer_model_forward.8} parent=67 // pred_check_branch
        %752 = sbr.rel (%p750) target = $region76
      $region75: #{transformer_model_forward.8} parent=67 // pred_region
        %v753 = vld [vmem:[#allocation3] sm:$0xff]
        %v754 = vld [vmem:[%s7] sm:$0x1]
        %v756 = vlaneseq
        %v757 = vshrl.u32 %v756, 7
        %v758 = vsub.s32 0, %v757
        %v759 = vrot.slane %v754, %v758
        %v761 = vadd.f32 %v753, %v759
        %v762 = vld [vmem:[#allocation2] sm:$0xf]
        %v763 = vunpack.c.l.bf16 %v762
        %v764 = vadd.f32 %v761, %v763
        %v765 = vsel %vm625, %v764, 0.0
        %766 = vadd.xlane.f32.xlu0 %v765
        %v767 = vpop.xlane.xlu0 %766
        %v768 = vrcp.pop 32.0
        %v769 = vmul.f32 %v767, %v768
        %v770 = vsub.f32 %v764, %v769
        %v771 = vmul.f32 %v770, %v770
        %v772 = vsel %vm625, %v771, 0.0
        %773 = vadd.xlane.f32.xlu0 %v772
        %v774 = vpop.xlane.xlu0 %773
        %v775 = vmul.f32 %v774, %v768
        %v776 = vadd.f32 %v775, 1e-05
        %v777 = vrsqrt.pop %v776
        %v778 = vmul.f32 %v770, %v777
        %v779 = vld [vmem:[%s10] sm:$0x1]
        %v781 = vlaneseq
        %v782 = vshrl.u32 %v781, 7
        %v783 = vsub.s32 0, %v782
        %v784 = vrot.slane %v779, %v783
        %v786 = vmul.f32 %v778, %v784
        %v787 = vld [vmem:[%s11] sm:$0x1]
        %v789 = vlaneseq
        %v790 = vshrl.u32 %v789, 7
        %v791 = vsub.s32 0, %v790
        %v792 = vrot.slane %v787, %v791
        %v794 = vadd.f32 %v786, %v792
        %v795 = vpack.c.bf16 %v794, %v794
        %vm796 = vcmask 257024
        %797 = vst.msk [vmem:[%s490] sm:$0xf] %vm796, %v795
      $region76: #{transformer_model_forward.8} parent=67 // pred_fallthru
        _
      %p798 = scmp.lt.s32.totalorder %s27, 1
      %s799 = scalar_select %p798, %s27, 1
      %s800 = smul.addr %s799, 4
      %s801 = scalar_lea.vmem %s12, %s800
      // Predicated region
      $region77: #{transformer_model_forward.8} parent=67 // pred_check
        %p802 = pneg %p330
      $region78: #{transformer_model_forward.8} parent=67 // pred_check_branch
        %804 = sbr.rel (%p802) target = $region80
      $region79: #{transformer_model_forward.8} parent=67 // pred_region
        _
      $region80: #{transformer_model_forward.8} parent=67 // pred_fallthru
        _
    $region68: #{transformer_model_forward.8} parent=5 // pred_fallthru
      _
    %p805 = scmp.le.s32.totalorder 2, %s18
    // Predicated region
    $region81: #{transformer_model_forward.8} parent=5 // pred_check
      %p806 = pneg %p805
    $region82: #{transformer_model_forward.8} parent=5 // pred_check_branch
      %808 = sbr.rel (%p806) target = $region84
    $region83: #{transformer_model_forward.8} parent=5 // pred_region
      %s809 = ssub.s32 %s18, 2
      // Predicated region
      $region85: #{transformer_model_forward.8} parent=83 // pred_check
        %p810 = pneg %p336
      $region86: #{transformer_model_forward.8} parent=83 // pred_check_branch
        %812 = sbr.rel (%p810) target = $region88
      $region87: #{transformer_model_forward.8} parent=83 // pred_region
        %p813 = scmp.lt.s32.totalorder %s29, 1
        %s814 = scalar_select %p813, %s29, 1
        %s815 = smul.addr %s814, 4
        %s816 = scalar_lea.vmem %s12, %s815
      $region88: #{transformer_model_forward.8} parent=83 // pred_fallthru
        _
    $region84: #{transformer_model_forward.8} parent=5 // pred_fallthru
      _
  $region6: #{transformer_model_forward.8} parent=0 // loop_footer
    %s22 = sadd.s32 1, %s18
  $region7: #{transformer_model_forward.8} parent=0 // loop_footer_branch
    %17 = sbr.rel target = $region3
  $region8: #{transformer_model_forward.8} parent=0 // loop_exit
    _

// kernel: transformer_model_forward.7
$region0: #{transformer_model_forward.7}
  #allocation0 [shape = 'u32[]', space=smem, size = 0x4, offset = 0x4, fixed_abs, tag = 'smem constant byte address 0x4 - core index']
  #allocation1 [shape = 'u32[144,128]{1,0:T(1,128)}', space=vmem, size = 0x12000, scoped, tag = 'internal scratch']
  #allocation2 [shape = 'f32[4,8,1]{2,1,0:T(8,128)}', space=vmem, size = 0x4000, scoped, tag = 'scratch operand']
  #allocation3 [shape = 'f32[4,8,1]{2,1,0:T(8,128)}', space=vmem, size = 0x4000, scoped, tag = 'scratch operand']
  #allocation4 [shape = 'f32[4,8,8]{2,1,0:T(8,128)}', space=vmem, size = 0x4000, scoped, tag = 'scratch operand']
  %s0 = inlined_call_operand.vmem [shape: bf16[2,8,32], index: 0, kind: input, shape index: {}]
  %s1 = inlined_call_operand.vmem [shape: bf16[2,8,32], index: 1, kind: input, shape index: {}]
  %s2 = inlined_call_operand.vmem [shape: bf16[2,8,32], index: 2, kind: input, shape index: {}]
  %s3 = inlined_call_operand.vmem [shape: bf16[2,8,32], index: 3, kind: output, shape index: {}]
  %s4 = sld [smem:[#allocation0]]
  $region53: #{transformer_model_forward.7} parent=0
    _
  %s6 = ssub.s32 1, %s4
  %s7 = scalar_select 0, %s6, %s4
  loop: start=0, step=1, limit=4
  $region2: #{transformer_model_forward.7} parent=0 // loop_pre_header
    _
  $region3: #{transformer_model_forward.7} parent=0 // loop_header
    %s9 = sphi 0, %s13
    %p10 = scmp.ge.s32.totalorder %s9, 4
    %s16 = sphi 0, %s35
    %s17 = sphi 0, %s31
    %s18 = sphi 0, %s27
    %s19 = sphi 0, %s16
    %s20 = sphi 0, %s17
    %s21 = sphi 0, %s18
    %s22 = sphi 0, %s19
    %s23 = sphi 0, %s20
    %s24 = sphi 0, %s21
    %s40 = sphi 0, %s42
    %s43 = sphi 0, %s40
    %s44 = sphi 0, %s43
    %s60 = sphi 0, %s44
    %s68 = sphi 0, %s70
    %s71 = sphi 0, %s68
    %s72 = sphi 0, %s71
    %s88 = sphi 0, %s72
    %s96 = sphi 0, %s98
    %s99 = sphi 0, %s96
    %s100 = sphi 0, %s99
    %s116 = sphi 0, %s100
    %s124 = sphi 0, %s126
    %s127 = sphi 0, %s124
    %s128 = sphi 0, %s127
    %s144 = sphi 0, %s128
  $region4: #{transformer_model_forward.7} parent=0 // loop_header_branch
    %12 = sbr.rel (%p10) target = $region8
  $region5: #{transformer_model_forward.7} parent=0 // loop_body
    %s14 = ssub.s32 %s9, 1
    %s15 = ssub.s32 %s9, 2
    %s25 = sadd.s32 1, %s18
    %p26 = scmp.ge.s32.totalorder %s25, 1
    %s27 = scalar_select %p26, 0, %s25
    %s28 = sadd.s32 1, %s17
    %s29 = scalar_select %p26, %s28, %s17
    %p30 = scmp.ge.s32.totalorder %s29, 1
    %s31 = scalar_select %p30, 0, %s29
    %s32 = sadd.s32 1, %s16
    %s33 = scalar_select %p30, %s32, %s16
    %p34 = scmp.ge.s32.totalorder %s33, 2
    %s35 = scalar_select %p34, 0, %s33
    %s36 = ssub.s32 %s16, %s35
    %s37 = ssub.s32 %s17, %s31
    %s38 = sor.u32 %s36, %s37
    %p39 = scmp.eq.s32.totalorder %s38, 0
    %s41 = sadd.s32 %s40, 1
    %s42 = scalar_select %p39, %s40, %s41
    %p45 = pneg %p39
    %p46 = scmp.eq.s32.totalorder %s9, 1
    %p47 = por %p45, %p46
    %p48 = scmp.ne.s32.totalorder %s40, %s43
    %p49 = scmp.eq.s32.totalorder %s9, 0
    %p50 = por %p48, %p49
    %p51 = scmp.ne.s32.totalorder %s40, %s43
    %p52 = scmp.eq.s32.totalorder %s14, 1
    %p53 = por %p51, %p52
    %p54 = scmp.ne.s32.totalorder %s43, %s44
    %p55 = scmp.eq.s32.totalorder %s14, 0
    %p56 = por %p54, %p55
    %p57 = scmp.ne.s32.totalorder %s43, %s44
    %p58 = scmp.eq.s32.totalorder %s15, 1
    %p59 = por %p57, %p58
    %p61 = scmp.ne.s32.totalorder %s44, %s60
    %p62 = scmp.eq.s32.totalorder %s15, 0
    %p63 = por %p61, %p62
    %s64 = ssub.s32 %s16, %s35
    %s65 = ssub.s32 %s18, %s27
    %s66 = sor.u32 %s64, %s65
    %p67 = scmp.eq.s32.totalorder %s66, 0
    %s69 = sadd.s32 %s68, 1
    %s70 = scalar_select %p67, %s68, %s69
    %p73 = pneg %p67
    %p74 = scmp.eq.s32.totalorder %s9, 1
    %p75 = por %p73, %p74
    %p76 = scmp.ne.s32.totalorder %s68, %s71
    %p77 = scmp.eq.s32.totalorder %s9, 0
    %p78 = por %p76, %p77
    %p79 = scmp.ne.s32.totalorder %s68, %s71
    %p80 = scmp.eq.s32.totalorder %s14, 1
    %p81 = por %p79, %p80
    %p82 = scmp.ne.s32.totalorder %s71, %s72
    %p83 = scmp.eq.s32.totalorder %s14, 0
    %p84 = por %p82, %p83
    %p85 = scmp.ne.s32.totalorder %s71, %s72
    %p86 = scmp.eq.s32.totalorder %s15, 1
    %p87 = por %p85, %p86
    %p89 = scmp.ne.s32.totalorder %s72, %s88
    %p90 = scmp.eq.s32.totalorder %s15, 0
    %p91 = por %p89, %p90
    %s92 = ssub.s32 %s16, %s35
    %s93 = ssub.s32 %s18, %s27
    %s94 = sor.u32 %s92, %s93
    %p95 = scmp.eq.s32.totalorder %s94, 0
    %s97 = sadd.s32 %s96, 1
    %s98 = scalar_select %p95, %s96, %s97
    %p101 = pneg %p95
    %p102 = scmp.eq.s32.totalorder %s9, 1
    %p103 = por %p101, %p102
    %p104 = scmp.ne.s32.totalorder %s96, %s99
    %p105 = scmp.eq.s32.totalorder %s9, 0
    %p106 = por %p104, %p105
    %p107 = scmp.ne.s32.totalorder %s96, %s99
    %p108 = scmp.eq.s32.totalorder %s14, 1
    %p109 = por %p107, %p108
    %p110 = scmp.ne.s32.totalorder %s99, %s100
    %p111 = scmp.eq.s32.totalorder %s14, 0
    %p112 = por %p110, %p111
    %p113 = scmp.ne.s32.totalorder %s99, %s100
    %p114 = scmp.eq.s32.totalorder %s15, 1
    %p115 = por %p113, %p114
    %p117 = scmp.ne.s32.totalorder %s100, %s116
    %p118 = scmp.eq.s32.totalorder %s15, 0
    %p119 = por %p117, %p118
    %s120 = ssub.s32 %s16, %s35
    %s121 = ssub.s32 %s17, %s31
    %s122 = sor.u32 %s120, %s121
    %p123 = scmp.eq.s32.totalorder %s122, 0
    %s125 = sadd.s32 %s124, 1
    %s126 = scalar_select %p123, %s124, %s125
    %p129 = pneg %p123
    %p130 = scmp.eq.s32.totalorder %s9, 1
    %p131 = por %p129, %p130
    %p132 = scmp.ne.s32.totalorder %s124, %s127
    %p133 = scmp.eq.s32.totalorder %s9, 0
    %p134 = por %p132, %p133
    %p135 = scmp.ne.s32.totalorder %s124, %s127
    %p136 = scmp.eq.s32.totalorder %s14, 1
    %p137 = por %p135, %p136
    %p138 = scmp.ne.s32.totalorder %s127, %s128
    %p139 = scmp.eq.s32.totalorder %s14, 0
    %p140 = por %p138, %p139
    %p141 = scmp.ne.s32.totalorder %s127, %s128
    %p142 = scmp.eq.s32.totalorder %s15, 1
    %p143 = por %p141, %p142
    %p145 = scmp.ne.s32.totalorder %s128, %s144
    %p146 = scmp.eq.s32.totalorder %s15, 0
    %p147 = por %p145, %p146
    %p148 = scmp.le.s32.totalorder 1, %s9
    %p149 = scmp.lt.s32.totalorder %s9, 3
    %p150 = pnand %p148, %p149
    %p151 = pneg %p150
    // Predicated region
    $region9: #{transformer_model_forward.7} parent=5 // pred_check
      _
    $region10: #{transformer_model_forward.7} parent=5 // pred_check_branch
      %153 = sbr.rel (%p150) target = $region12
    $region11: #{transformer_model_forward.7} parent=5 // pred_region
      %s154 = ssub.s32 %s9, 1
    $region12: #{transformer_model_forward.7} parent=5 // pred_fallthru
      _
    %p155 = scmp.lt.s32.totalorder %s9, 2
    // Predicated region
    $region13: #{transformer_model_forward.7} parent=5 // pred_check
      %p156 = pneg %p155
    $region14: #{transformer_model_forward.7} parent=5 // pred_check_branch
      %158 = sbr.rel (%p156) target = $region16
    $region15: #{transformer_model_forward.7} parent=5 // pred_region
      // Predicated region
      $region17: #{transformer_model_forward.7} parent=15 // pred_check
        %p159 = pneg %p50
      $region18: #{transformer_model_forward.7} parent=15 // pred_check_branch
        %161 = sbr.rel (%p159) target = $region20
      $region19: #{transformer_model_forward.7} parent=15 // pred_region
        %p162 = scmp.lt.s32.totalorder %s16, 1
        %s163 = scalar_select %p162, %s16, 1
        %p164 = scmp.lt.s32.totalorder %s17, 0
        %s165 = scalar_select %p164, %s17, 0
        %s166 = sadd.s32 %s165, %s163
        %s167 = smul.addr %s166, 4
        %s168 = scalar_lea.vmem %s0, %s167
      $region20: #{transformer_model_forward.7} parent=15 // pred_fallthru
        _
      // Predicated region
      $region21: #{transformer_model_forward.7} parent=15 // pred_check
        %p169 = pneg %p78
      $region22: #{transformer_model_forward.7} parent=15 // pred_check_branch
        %171 = sbr.rel (%p169) target = $region24
      $region23: #{transformer_model_forward.7} parent=15 // pred_region
        %p172 = scmp.lt.s32.totalorder %s16, 1
        %s173 = scalar_select %p172, %s16, 1
        %p174 = scmp.lt.s32.totalorder %s18, 0
        %s175 = scalar_select %p174, %s18, 0
        %s176 = sadd.s32 %s175, %s173
        %s177 = smul.addr %s176, 4
        %s178 = scalar_lea.vmem %s1, %s177
      $region24: #{transformer_model_forward.7} parent=15 // pred_fallthru
        _
      // Predicated region
      $region25: #{transformer_model_forward.7} parent=15 // pred_check
        %p179 = pneg %p106
      $region26: #{transformer_model_forward.7} parent=15 // pred_check_branch
        %181 = sbr.rel (%p179) target = $region28
      $region27: #{transformer_model_forward.7} parent=15 // pred_region
        %p182 = scmp.lt.s32.totalorder %s16, 1
        %s183 = scalar_select %p182, %s16, 1
        %p184 = scmp.lt.s32.totalorder %s18, 0
        %s185 = scalar_select %p184, %s18, 0
        %s186 = sadd.s32 %s185, %s183
        %s187 = smul.addr %s186, 4
        %s188 = scalar_lea.vmem %s2, %s187
      $region28: #{transformer_model_forward.7} parent=15 // pred_fallthru
        _
    $region16: #{transformer_model_forward.7} parent=5 // pred_fallthru
      _
    %p189 = scmp.le.s32.totalorder 1, %s9
    %p190 = scmp.lt.s32.totalorder %s9, 3
    %p191 = pnand %p189, %p190
    %p192 = pneg %p191
    // Predicated region
    $region29: #{transformer_model_forward.7} parent=5 // pred_check
      _
    $region30: #{transformer_model_forward.7} parent=5 // pred_check_branch
      %194 = sbr.rel (%p191) target = $region32
    $region31: #{transformer_model_forward.7} parent=5 // pred_region
      %s195 = ssub.s32 %s9, 1
      %p196 = scmp.lt.s32.totalorder %s19, 1
      %s197 = scalar_select %p196, %s19, 1
      %p198 = scmp.lt.s32.totalorder %s20, 0
      %s199 = scalar_select %p198, %s20, 0
      %s200 = sadd.s32 %s199, %s197
      %s201 = smul.addr %s200, 4
      %s202 = scalar_lea.vmem %s0, %s201
      %p203 = pneg %p56
      %p204 = pneg %p53
      %p205 = scmp.lt.s32.totalorder %s19, 1
      %s206 = scalar_select %p205, %s19, 1
      %p207 = scmp.lt.s32.totalorder %s21, 0
      %s208 = scalar_select %p207, %s21, 0
      %s209 = sadd.s32 %s208, %s206
      %s210 = smul.addr %s209, 4
      %s211 = scalar_lea.vmem %s1, %s210
      %p212 = pneg %p84
      %p213 = pneg %p81
      %p214 = scmp.lt.s32.totalorder %s19, 1
      %s215 = scalar_select %p214, %s19, 1
      %p216 = scmp.lt.s32.totalorder %s21, 0
      %s217 = scalar_select %p216, %s21, 0
      %s218 = sadd.s32 %s217, %s215
      %s219 = smul.addr %s218, 4
      %s220 = scalar_lea.vmem %s2, %s219
      %p221 = pneg %p112
      %p222 = pneg %p109
      %p223 = pneg %p140
      %p224 = pneg %p137
      %p225 = scmp.lt.s32.totalorder %s19, 1
      %s226 = scalar_select %p225, %s19, 1
      %p227 = scmp.lt.s32.totalorder %s20, 0
      %s228 = scalar_select %p227, %s20, 0
      %s229 = sadd.s32 %s228, %s226
      %s230 = smul.addr %s229, 4
      %s231 = scalar_lea.vmem %s3, %s230
      %p232 = scmp.lt.s32.totalorder %s19, 1
      %s233 = scalar_select %p232, %s19, 1
      %p234 = scmp.lt.s32.totalorder %s20, 0
      %s235 = scalar_select %p234, %s20, 0
      %s236 = sadd.s32 %s235, %s233
      %s237 = smul.addr %s236, 4
      %s238 = scalar_lea.vmem %s0, %s237
      %p239 = scmp.lt.s32.totalorder %s19, 1
      %s240 = scalar_select %p239, %s19, 1
      %p241 = scmp.lt.s32.totalorder %s21, 0
      %s242 = scalar_select %p241, %s21, 0
      %s243 = sadd.s32 %s242, %s240
      %s244 = smul.addr %s243, 4
      %s245 = scalar_lea.vmem %s1, %s244
      %p246 = scmp.lt.s32.totalorder %s19, 1
      %s247 = scalar_select %p246, %s19, 1
      %p248 = scmp.lt.s32.totalorder %s21, 0
      %s249 = scalar_select %p248, %s21, 0
      %s250 = sadd.s32 %s249, %s247
      %s251 = smul.addr %s250, 4
      %s252 = scalar_lea.vmem %s2, %s251
      %p253 = scmp.lt.s32.totalorder %s19, 1
      %s254 = scalar_select %p253, %s19, 1
      %p255 = scmp.lt.s32.totalorder %s20, 0
      %s256 = scalar_select %p255, %s20, 0
      %s257 = sadd.s32 %s256, %s254
      %s258 = smul.addr %s257, 4
      %s259 = scalar_lea.vmem %s3, %s258
      %p261 = scmp.eq.s32.totalorder %s21, 0
      // Predicated region
      $region33: #{transformer_model_forward.7} parent=31 // pred_check
        %p262 = pneg %p261
      $region34: #{transformer_model_forward.7} parent=31 // pred_check_branch
        %264 = sbr.rel (%p262) target = $region36
      $region35: #{transformer_model_forward.7} parent=31 // pred_region
        %vm265 = vcmask 7168
        %266 = vst.msk [vmem:[#allocation2] sm:$0xff] %vm265, -inf
        %267 = vst.msk [vmem:[#allocation2 + $0x8] sm:$0xff] %vm265, -inf
        %268 = vst.msk [vmem:[#allocation2 + $0x10] sm:$0xff] %vm265, -inf
        %269 = vst.msk [vmem:[#allocation2 + $0x18] sm:$0xff] %vm265, -inf
        %270 = vst.msk [vmem:[#allocation3] sm:$0xff] %vm265, 0.0
        %271 = vst.msk [vmem:[#allocation3 + $0x8] sm:$0xff] %vm265, 0.0
        %272 = vst.msk [vmem:[#allocation3 + $0x10] sm:$0xff] %vm265, 0.0
        %273 = vst.msk [vmem:[#allocation3 + $0x18] sm:$0xff] %vm265, 0.0
        %vm274 = vcmask 64512
        %275 = vst.msk [vmem:[#allocation4] sm:$0xff] %vm274, 0.0
        %276 = vst.msk [vmem:[#allocation4 + $0x8] sm:$0xff] %vm274, 0.0
        %277 = vst.msk [vmem:[#allocation4 + $0x10] sm:$0xff] %vm274, 0.0
        %278 = vst.msk [vmem:[#allocation4 + $0x18] sm:$0xff] %vm274, 0.0
      $region36: #{transformer_model_forward.7} parent=31 // pred_fallthru
        _
      %v279 = vld [vmem:[%s238] sm:$0xf]
      %v280 = vld [vmem:[%s245] sm:$0xf]
      %v281 = vld [vmem:[%s252] sm:$0xf]
      %vm282 = vcmask 64512
      %v284 = vsel %vm282, %v279, 0
      %v287 = vsel %vm282, %v280, 0
      %289 = vmatprep.subr.bf16.mxu0 0
      %290 = vmatpush1.bf16.xpose.msra.mxu0 %v287
      %291 = vmatprep.subr.bf16.mxu0 0
      %292 = vmatpush1.bf16.xpose.msra.mxu0 0
      %293 = vmatprep.subr.bf16.mxu0 0
      %294 = vmatpush1.bf16.xpose.msra.mxu0 0
      %295 = vmatprep.subr.bf16.mxu0 0
      %296 = vmatpush1.bf16.xpose.msra.mxu0 0
      %297 = vmatprep.subr.bf16.mxu0 0
      %298 = vmatpush1.bf16.xpose.msra.mxu0 0
      %299 = vmatprep.subr.bf16.mxu0 0
      %300 = vmatpush1.bf16.xpose.msra.mxu0 0
      %301 = vmatprep.subr.bf16.mxu0 0
      %302 = vmatpush1.bf16.xpose.msra.mxu0 0
      %303 = vmatprep.subr.bf16.mxu0 0
      %304 = vmatpush1.bf16.xpose.msra.mxu0 0
      %305 = vmatprep.subr.bf16.mxu0 0
      %306 = vmatpush1.bf16.xpose.msra.mxu0 0
      %307 = vmatprep.subr.bf16.mxu0 0
      %308 = vmatpush1.bf16.xpose.msra.mxu0 0
      %309 = vmatprep.subr.bf16.mxu0 0
      %310 = vmatpush1.bf16.xpose.msra.mxu0 0
      %311 = vmatprep.subr.bf16.mxu0 0
      %312 = vmatpush1.bf16.xpose.msra.mxu0 0
      %313 = vmatprep.subr.bf16.mxu0 0
      %314 = vmatpush1.bf16.xpose.msra.mxu0 0
      %315 = vmatprep.subr.bf16.mxu0 0
      %316 = vmatpush1.bf16.xpose.msra.mxu0 0
      %317 = vmatprep.subr.bf16.mxu0 0
      %318 = vmatpush1.bf16.xpose.msra.mxu0 0
      %319 = vmatprep.subr.bf16.mxu0 0
      %320 = vmatpush1.bf16.xpose.msra.mxu0 0
      %321 = vmatprep.mubr.bf16.mxu0 0
      %322 = vmatmul.mubr.bf16.gmra.mrb[0].mxu0 %v284
      %v323 = vpop.f32.mrb[0].mxu0
      %v324 = vadd.f32 0.0, %v323
      %v325 = vpop.f32.mrb[0].mxu0
      %v326 = vpop.f32.mrb[0].mxu0
      %v327 = vpop.f32.mrb[0].mxu0
      %328 = vdwg.mxu0
      %v329 = vld [vmem:[#allocation2] sm:$0xff]
      %v330 = vsel %vm282, %v324, -inf
      %331 = vmax.xlane.f32.xlu0 %v330
      %v332 = vpop.xlane.xlu0 %331
      %v333 = vmax.f32 %v329, %v332
      %v334 = vsub.f32 %v329, %v333
      %v335 = vmul.f32 %v334, 1.442695
      %v336 = vpow.pop %v335
      %338 = vset.pattern.permute.xlu0 0
      %339 = vperm.xlu0 %338, %v333
      %v340 = vpop.permute.xlu0 %339
      %v342 = vsub.f32 %v324, %v340
      %v343 = vmul.f32 %v342, 1.442695
      %v344 = vpow.pop %v343
      %v345 = vld [vmem:[#allocation3] sm:$0xff]
      %v346 = vmul.f32 %v336, %v345
      %v347 = vsel %vm282, %v344, 0.0
      %348 = vadd.xlane.f32.xlu0 %v347
      %v349 = vpop.xlane.xlu0 %348
      %v350 = vadd.f32 %v346, %v349
      %vm351 = vcmask 7168
      %352 = vst.msk [vmem:[#allocation3] sm:$0xff] %vm351, %v350
      %v353 = vld [vmem:[#allocation4] sm:$0xff]
      %355 = vset.pattern.permute.xlu0 0
      %356 = vperm.xlu0 %355, %v336
      %v357 = vpop.permute.xlu0 %356
      %v359 = vmul.f32 %v357, %v353
      %v360 = vpack.c.bf16 %v344, %v344
      %v362 = vsel %vm282, %v360, 0
      %vm364 = vcmask 1043456
      %v366 = vsel %vm364, %v281, 0
      %368 = vmatprep.subr.bf16.mxu0 0
      %369 = vmatpush1.bf16.msra.mxu0 %v366
      %370 = vmatprep.subr.bf16.mxu0 0
      %371 = vmatpush1.bf16.msra.mxu0 0
      %372 = vmatprep.subr.bf16.mxu0 0
      %373 = vmatpush1.bf16.msra.mxu0 0
      %374 = vmatprep.subr.bf16.mxu0 0
      %375 = vmatpush1.bf16.msra.mxu0 0
      %376 = vmatprep.subr.bf16.mxu0 0
      %377 = vmatpush1.bf16.msra.mxu0 0
      %378 = vmatprep.subr.bf16.mxu0 0
      %379 = vmatpush1.bf16.msra.mxu0 0
      %380 = vmatprep.subr.bf16.mxu0 0
      %381 = vmatpush1.bf16.msra.mxu0 0
      %382 = vmatprep.subr.bf16.mxu0 0
      %383 = vmatpush1.bf16.msra.mxu0 0
      %384 = vmatprep.subr.bf16.mxu0 0
      %385 = vmatpush1.bf16.msra.mxu0 0
      %386 = vmatprep.subr.bf16.mxu0 0
      %387 = vmatpush1.bf16.msra.mxu0 0
      %388 = vmatprep.subr.bf16.mxu0 0
      %389 = vmatpush1.bf16.msra.mxu0 0
      %390 = vmatprep.subr.bf16.mxu0 0
      %391 = vmatpush1.bf16.msra.mxu0 0
      %392 = vmatprep.subr.bf16.mxu0 0
      %393 = vmatpush1.bf16.msra.mxu0 0
      %394 = vmatprep.subr.bf16.mxu0 0
      %395 = vmatpush1.bf16.msra.mxu0 0
      %396 = vmatprep.subr.bf16.mxu0 0
      %397 = vmatpush1.bf16.msra.mxu0 0
      %398 = vmatprep.subr.bf16.mxu0 0
      %399 = vmatpush1.bf16.msra.mxu0 0
      %400 = vmatprep.mubr.bf16.mxu0 0
      %401 = vmatmul.mubr.bf16.gmra.mrb[0].mxu0 %v362
      %v402 = vpop.f32.mrb[0].mxu0
      %v403 = vadd.f32 0.0, %v402
      %v404 = vpop.f32.mrb[0].mxu0
      %v405 = vpop.f32.mrb[0].mxu0
      %v406 = vpop.f32.mrb[0].mxu0
      %407 = vdwg.mxu0
      %v408 = vadd.f32 %v359, %v403
      %409 = vst.msk [vmem:[#allocation4] sm:$0xff] %vm282, %v408
      %410 = vst.msk [vmem:[#allocation2] sm:$0xff] %vm351, %v333
      %v412 = vunpack.c.l.b16 %v279
      %v413 = vpack.c.b16 %v412, %v412
      %414 = vrot.lane.b32.xlu0 %v413, 120
      %v415 = vpop.permute.xlu0 %414
      %v417 = vunpack.c.l.b16 %v280
      %v418 = vpack.c.b16 %v417, %v417
      %419 = vrot.lane.b32.xlu0 %v418, 120
      %v420 = vpop.permute.xlu0 %419
      %v422 = vsel %vm282, %v415, 0
      %v425 = vsel %vm282, %v420, 0
      %427 = vmatprep.subr.bf16.mxu0 0
      %428 = vmatpush1.bf16.xpose.msra.mxu0 %v425
      %429 = vmatprep.subr.bf16.mxu0 0
      %430 = vmatpush1.bf16.xpose.msra.mxu0 0
      %431 = vmatprep.subr.bf16.mxu0 0
      %432 = vmatpush1.bf16.xpose.msra.mxu0 0
      %433 = vmatprep.subr.bf16.mxu0 0
      %434 = vmatpush1.bf16.xpose.msra.mxu0 0
      %435 = vmatprep.subr.bf16.mxu0 0
      %436 = vmatpush1.bf16.xpose.msra.mxu0 0
      %437 = vmatprep.subr.bf16.mxu0 0
      %438 = vmatpush1.bf16.xpose.msra.mxu0 0
      %439 = vmatprep.subr.bf16.mxu0 0
      %440 = vmatpush1.bf16.xpose.msra.mxu0 0
      %441 = vmatprep.subr.bf16.mxu0 0
      %442 = vmatpush1.bf16.xpose.msra.mxu0 0
      %443 = vmatprep.subr.bf16.mxu0 0
      %444 = vmatpush1.bf16.xpose.msra.mxu0 0
      %445 = vmatprep.subr.bf16.mxu0 0
      %446 = vmatpush1.bf16.xpose.msra.mxu0 0
      %447 = vmatprep.subr.bf16.mxu0 0
      %448 = vmatpush1.bf16.xpose.msra.mxu0 0
      %449 = vmatprep.subr.bf16.mxu0 0
      %450 = vmatpush1.bf16.xpose.msra.mxu0 0
      %451 = vmatprep.subr.bf16.mxu0 0
      %452 = vmatpush1.bf16.xpose.msra.mxu0 0
      %453 = vmatprep.subr.bf16.mxu0 0
      %454 = vmatpush1.bf16.xpose.msra.mxu0 0
      %455 = vmatprep.subr.bf16.mxu0 0
      %456 = vmatpush1.bf16.xpose.msra.mxu0 0
      %457 = vmatprep.subr.bf16.mxu0 0
      %458 = vmatpush1.bf16.xpose.msra.mxu0 0
      %459 = vmatprep.mubr.bf16.mxu0 0
      %460 = vmatmul.mubr.bf16.gmra.mrb[0].mxu0 %v422
      %v461 = vpop.f32.mrb[0].mxu0
      %v462 = vadd.f32 0.0, %v461
      %v463 = vpop.f32.mrb[0].mxu0
      %v464 = vpop.f32.mrb[0].mxu0
      %v465 = vpop.f32.mrb[0].mxu0
      %466 = vdwg.mxu0
      %s467 = scalar_lea.vmem [#allocation2], 8
      %v468 = vld [vmem:[%s467] sm:$0xff]
      %v469 = vsel %vm282, %v462, -inf
      %470 = vmax.xlane.f32.xlu0 %v469
      %v471 = vpop.xlane.xlu0 %470
      %v472 = vmax.f32 %v468, %v471
      %v473 = vsub.f32 %v468, %v472
      %v474 = vmul.f32 %v473, 1.442695
      %v475 = vpow.pop %v474
      %477 = vset.pattern.permute.xlu0 0
      %478 = vperm.xlu0 %477, %v472
      %v479 = vpop.permute.xlu0 %478
      %v481 = vsub.f32 %v462, %v479
      %v482 = vmul.f32 %v481, 1.442695
      %v483 = vpow.pop %v482
      %s484 = scalar_lea.vmem [#allocation3], 8
      %v485 = vld [vmem:[%s484] sm:$0xff]
      %v486 = vmul.f32 %v475, %v485
      %v487 = vsel %vm282, %v483, 0.0
      %488 = vadd.xlane.f32.xlu0 %v487
      %v489 = vpop.xlane.xlu0 %488
      %v490 = vadd.f32 %v486, %v489
      %491 = vst.msk [vmem:[%s484] sm:$0xff] %vm351, %v490
      %s492 = scalar_lea.vmem [#allocation4], 8
      %v493 = vld [vmem:[%s492] sm:$0xff]
      %495 = vset.pattern.permute.xlu0 0
      %496 = vperm.xlu0 %495, %v475
      %v497 = vpop.permute.xlu0 %496
      %v499 = vmul.f32 %v497, %v493
      %v500 = vpack.c.bf16 %v483, %v483
      %v502 = vunpack.c.l.b16 %v281
      %v503 = vpack.c.b16 %v502, %v502
      %504 = vrot.lane.b32.xlu0 %v503, 120
      %v505 = vpop.permute.xlu0 %504
      %v507 = vsel %vm282, %v500, 0
      %v510 = vsel %vm364, %v505, 0
      %512 = vmatprep.subr.bf16.mxu0 0
      %513 = vmatpush1.bf16.msra.mxu0 %v510
      %514 = vmatprep.subr.bf16.mxu0 0
      %515 = vmatpush1.bf16.msra.mxu0 0
      %516 = vmatprep.subr.bf16.mxu0 0
      %517 = vmatpush1.bf16.msra.mxu0 0
      %518 = vmatprep.subr.bf16.mxu0 0
      %519 = vmatpush1.bf16.msra.mxu0 0
      %520 = vmatprep.subr.bf16.mxu0 0
      %521 = vmatpush1.bf16.msra.mxu0 0
      %522 = vmatprep.subr.bf16.mxu0 0
      %523 = vmatpush1.bf16.msra.mxu0 0
      %524 = vmatprep.subr.bf16.mxu0 0
      %525 = vmatpush1.bf16.msra.mxu0 0
      %526 = vmatprep.subr.bf16.mxu0 0
      %527 = vmatpush1.bf16.msra.mxu0 0
      %528 = vmatprep.subr.bf16.mxu0 0
      %529 = vmatpush1.bf16.msra.mxu0 0
      %530 = vmatprep.subr.bf16.mxu0 0
      %531 = vmatpush1.bf16.msra.mxu0 0
      %532 = vmatprep.subr.bf16.mxu0 0
      %533 = vmatpush1.bf16.msra.mxu0 0
      %534 = vmatprep.subr.bf16.mxu0 0
      %535 = vmatpush1.bf16.msra.mxu0 0
      %536 = vmatprep.subr.bf16.mxu0 0
      %537 = vmatpush1.bf16.msra.mxu0 0
      %538 = vmatprep.subr.bf16.mxu0 0
      %539 = vmatpush1.bf16.msra.mxu0 0
      %540 = vmatprep.subr.bf16.mxu0 0
      %541 = vmatpush1.bf16.msra.mxu0 0
      %542 = vmatprep.subr.bf16.mxu0 0
      %543 = vmatpush1.bf16.msra.mxu0 0
      %544 = vmatprep.mubr.bf16.mxu0 0
      %545 = vmatmul.mubr.bf16.gmra.mrb[0].mxu0 %v507
      %v546 = vpop.f32.mrb[0].mxu0
      %v547 = vadd.f32 0.0, %v546
      %v548 = vpop.f32.mrb[0].mxu0
      %v549 = vpop.f32.mrb[0].mxu0
      %v550 = vpop.f32.mrb[0].mxu0
      %551 = vdwg.mxu0
      %v552 = vadd.f32 %v499, %v547
      %553 = vst.msk [vmem:[%s492] sm:$0xff] %vm282, %v552
      %554 = vst.msk [vmem:[%s467] sm:$0xff] %vm351, %v472
      %555 = vrot.lane.b32.xlu0 %v413, 112
      %v556 = vpop.permute.xlu0 %555
      %557 = vrot.lane.b32.xlu0 %v418, 112
      %v558 = vpop.permute.xlu0 %557
      %v560 = vsel %vm282, %v556, 0
      %v563 = vsel %vm282, %v558, 0
      %565 = vmatprep.subr.bf16.mxu0 0
      %566 = vmatpush1.bf16.xpose.msra.mxu0 %v563
      %567 = vmatprep.subr.bf16.mxu0 0
      %568 = vmatpush1.bf16.xpose.msra.mxu0 0
      %569 = vmatprep.subr.bf16.mxu0 0
      %570 = vmatpush1.bf16.xpose.msra.mxu0 0
      %571 = vmatprep.subr.bf16.mxu0 0
      %572 = vmatpush1.bf16.xpose.msra.mxu0 0
      %573 = vmatprep.subr.bf16.mxu0 0
      %574 = vmatpush1.bf16.xpose.msra.mxu0 0
      %575 = vmatprep.subr.bf16.mxu0 0
      %576 = vmatpush1.bf16.xpose.msra.mxu0 0
      %577 = vmatprep.subr.bf16.mxu0 0
      %578 = vmatpush1.bf16.xpose.msra.mxu0 0
      %579 = vmatprep.subr.bf16.mxu0 0
      %580 = vmatpush1.bf16.xpose.msra.mxu0 0
      %581 = vmatprep.subr.bf16.mxu0 0
      %582 = vmatpush1.bf16.xpose.msra.mxu0 0
      %583 = vmatprep.subr.bf16.mxu0 0
      %584 = vmatpush1.bf16.xpose.msra.mxu0 0
      %585 = vmatprep.subr.bf16.mxu0 0
      %586 = vmatpush1.bf16.xpose.msra.mxu0 0
      %587 = vmatprep.subr.bf16.mxu0 0
      %588 = vmatpush1.bf16.xpose.msra.mxu0 0
      %589 = vmatprep.subr.bf16.mxu0 0
      %590 = vmatpush1.bf16.xpose.msra.mxu0 0
      %591 = vmatprep.subr.bf16.mxu0 0
      %592 = vmatpush1.bf16.xpose.msra.mxu0 0
      %593 = vmatprep.subr.bf16.mxu0 0
      %594 = vmatpush1.bf16.xpose.msra.mxu0 0
      %595 = vmatprep.subr.bf16.mxu0 0
      %596 = vmatpush1.bf16.xpose.msra.mxu0 0
      %597 = vmatprep.mubr.bf16.mxu0 0
      %598 = vmatmul.mubr.bf16.gmra.mrb[0].mxu0 %v560
      %v599 = vpop.f32.mrb[0].mxu0
      %v600 = vadd.f32 0.0, %v599
      %v601 = vpop.f32.mrb[0].mxu0
      %v602 = vpop.f32.mrb[0].mxu0
      %v603 = vpop.f32.mrb[0].mxu0
      %604 = vdwg.mxu0
      %s605 = scalar_lea.vmem [#allocation2], 16
      %v606 = vld [vmem:[%s605] sm:$0xff]
      %v607 = vsel %vm282, %v600, -inf
      %608 = vmax.xlane.f32.xlu0 %v607
      %v609 = vpop.xlane.xlu0 %608
      %v610 = vmax.f32 %v606, %v609
      %v611 = vsub.f32 %v606, %v610
      %v612 = vmul.f32 %v611, 1.442695
      %v613 = vpow.pop %v612
      %615 = vset.pattern.permute.xlu0 0
      %616 = vperm.xlu0 %615, %v610
      %v617 = vpop.permute.xlu0 %616
      %v619 = vsub.f32 %v600, %v617
      %v620 = vmul.f32 %v619, 1.442695
      %v621 = vpow.pop %v620
      %s622 = scalar_lea.vmem [#allocation3], 16
      %v623 = vld [vmem:[%s622] sm:$0xff]
      %v624 = vmul.f32 %v613, %v623
      %v625 = vsel %vm282, %v621, 0.0
      %626 = vadd.xlane.f32.xlu0 %v625
      %v627 = vpop.xlane.xlu0 %626
      %v628 = vadd.f32 %v624, %v627
      %629 = vst.msk [vmem:[%s622] sm:$0xff] %vm351, %v628
      %s630 = scalar_lea.vmem [#allocation4], 16
      %v631 = vld [vmem:[%s630] sm:$0xff]
      %633 = vset.pattern.permute.xlu0 0
      %634 = vperm.xlu0 %633, %v613
      %v635 = vpop.permute.xlu0 %634
      %v637 = vmul.f32 %v635, %v631
      %v638 = vpack.c.bf16 %v621, %v621
      %639 = vrot.lane.b32.xlu0 %v503, 112
      %v640 = vpop.permute.xlu0 %639
      %v642 = vsel %vm282, %v638, 0
      %v645 = vsel %vm364, %v640, 0
      %647 = vmatprep.subr.bf16.mxu0 0
      %648 = vmatpush1.bf16.msra.mxu0 %v645
      %649 = vmatprep.subr.bf16.mxu0 0
      %650 = vmatpush1.bf16.msra.mxu0 0
      %651 = vmatprep.subr.bf16.mxu0 0
      %652 = vmatpush1.bf16.msra.mxu0 0
      %653 = vmatprep.subr.bf16.mxu0 0
      %654 = vmatpush1.bf16.msra.mxu0 0
      %655 = vmatprep.subr.bf16.mxu0 0
      %656 = vmatpush1.bf16.msra.mxu0 0
      %657 = vmatprep.subr.bf16.mxu0 0
      %658 = vmatpush1.bf16.msra.mxu0 0
      %659 = vmatprep.subr.bf16.mxu0 0
      %660 = vmatpush1.bf16.msra.mxu0 0
      %661 = vmatprep.subr.bf16.mxu0 0
      %662 = vmatpush1.bf16.msra.mxu0 0
      %663 = vmatprep.subr.bf16.mxu0 0
      %664 = vmatpush1.bf16.msra.mxu0 0
      %665 = vmatprep.subr.bf16.mxu0 0
      %666 = vmatpush1.bf16.msra.mxu0 0
      %667 = vmatprep.subr.bf16.mxu0 0
      %668 = vmatpush1.bf16.msra.mxu0 0
      %669 = vmatprep.subr.bf16.mxu0 0
      %670 = vmatpush1.bf16.msra.mxu0 0
      %671 = vmatprep.subr.bf16.mxu0 0
      %672 = vmatpush1.bf16.msra.mxu0 0
      %673 = vmatprep.subr.bf16.mxu0 0
      %674 = vmatpush1.bf16.msra.mxu0 0
      %675 = vmatprep.subr.bf16.mxu0 0
      %676 = vmatpush1.bf16.msra.mxu0 0
      %677 = vmatprep.subr.bf16.mxu0 0
      %678 = vmatpush1.bf16.msra.mxu0 0
      %679 = vmatprep.mubr.bf16.mxu0 0
      %680 = vmatmul.mubr.bf16.gmra.mrb[0].mxu0 %v642
      %v681 = vpop.f32.mrb[0].mxu0
      %v682 = vadd.f32 0.0, %v681
      %v683 = vpop.f32.mrb[0].mxu0
      %v684 = vpop.f32.mrb[0].mxu0
      %v685 = vpop.f32.mrb[0].mxu0
      %686 = vdwg.mxu0
      %v687 = vadd.f32 %v637, %v682
      %688 = vst.msk [vmem:[%s630] sm:$0xff] %vm282, %v687
      %689 = vst.msk [vmem:[%s605] sm:$0xff] %vm351, %v610
      %690 = vrot.lane.b32.xlu0 %v413, 104
      %v691 = vpop.permute.xlu0 %690
      %692 = vrot.lane.b32.xlu0 %v418, 104
      %v693 = vpop.permute.xlu0 %692
      %v695 = vsel %vm282, %v691, 0
      %v698 = vsel %vm282, %v693, 0
      %700 = vmatprep.subr.bf16.mxu0 0
      %701 = vmatpush1.bf16.xpose.msra.mxu0 %v698
      %702 = vmatprep.subr.bf16.mxu0 0
      %703 = vmatpush1.bf16.xpose.msra.mxu0 0
      %704 = vmatprep.subr.bf16.mxu0 0
      %705 = vmatpush1.bf16.xpose.msra.mxu0 0
      %706 = vmatprep.subr.bf16.mxu0 0
      %707 = vmatpush1.bf16.xpose.msra.mxu0 0
      %708 = vmatprep.subr.bf16.mxu0 0
      %709 = vmatpush1.bf16.xpose.msra.mxu0 0
      %710 = vmatprep.subr.bf16.mxu0 0
      %711 = vmatpush1.bf16.xpose.msra.mxu0 0
      %712 = vmatprep.subr.bf16.mxu0 0
      %713 = vmatpush1.bf16.xpose.msra.mxu0 0
      %714 = vmatprep.subr.bf16.mxu0 0
      %715 = vmatpush1.bf16.xpose.msra.mxu0 0
      %716 = vmatprep.subr.bf16.mxu0 0
      %717 = vmatpush1.bf16.xpose.msra.mxu0 0
      %718 = vmatprep.subr.bf16.mxu0 0
      %719 = vmatpush1.bf16.xpose.msra.mxu0 0
      %720 = vmatprep.subr.bf16.mxu0 0
      %721 = vmatpush1.bf16.xpose.msra.mxu0 0
      %722 = vmatprep.subr.bf16.mxu0 0
      %723 = vmatpush1.bf16.xpose.msra.mxu0 0
      %724 = vmatprep.subr.bf16.mxu0 0
      %725 = vmatpush1.bf16.xpose.msra.mxu0 0
      %726 = vmatprep.subr.bf16.mxu0 0
      %727 = vmatpush1.bf16.xpose.msra.mxu0 0
      %728 = vmatprep.subr.bf16.mxu0 0
      %729 = vmatpush1.bf16.xpose.msra.mxu0 0
      %730 = vmatprep.subr.bf16.mxu0 0
      %731 = vmatpush1.bf16.xpose.msra.mxu0 0
      %732 = vmatprep.mubr.bf16.mxu0 0
      %733 = vmatmul.mubr.bf16.gmra.mrb[0].mxu0 %v695
      %v734 = vpop.f32.mrb[0].mxu0
      %v735 = vadd.f32 0.0, %v734
      %v736 = vpop.f32.mrb[0].mxu0
      %v737 = vpop.f32.mrb[0].mxu0
      %v738 = vpop.f32.mrb[0].mxu0
      %739 = vdwg.mxu0
      %s740 = scalar_lea.vmem [#allocation2], 24
      %v741 = vld [vmem:[%s740] sm:$0xff]
      %v742 = vsel %vm282, %v735, -inf
      %743 = vmax.xlane.f32.xlu0 %v742
      %v744 = vpop.xlane.xlu0 %743
      %v745 = vmax.f32 %v741, %v744
      %v746 = vsub.f32 %v741, %v745
      %v747 = vmul.f32 %v746, 1.442695
      %v748 = vpow.pop %v747
      %750 = vset.pattern.permute.xlu0 0
      %751 = vperm.xlu0 %750, %v745
      %v752 = vpop.permute.xlu0 %751
      %v754 = vsub.f32 %v735, %v752
      %v755 = vmul.f32 %v754, 1.442695
      %v756 = vpow.pop %v755
      %s757 = scalar_lea.vmem [#allocation3], 24
      %v758 = vld [vmem:[%s757] sm:$0xff]
      %v759 = vmul.f32 %v748, %v758
      %v760 = vsel %vm282, %v756, 0.0
      %761 = vadd.xlane.f32.xlu0 %v760
      %v762 = vpop.xlane.xlu0 %761
      %v763 = vadd.f32 %v759, %v762
      %764 = vst.msk [vmem:[%s757] sm:$0xff] %vm351, %v763
      %s765 = scalar_lea.vmem [#allocation4], 24
      %v766 = vld [vmem:[%s765] sm:$0xff]
      %768 = vset.pattern.permute.xlu0 0
      %769 = vperm.xlu0 %768, %v748
      %v770 = vpop.permute.xlu0 %769
      %v772 = vmul.f32 %v770, %v766
      %v773 = vpack.c.bf16 %v756, %v756
      %774 = vrot.lane.b32.xlu0 %v503, 104
      %v775 = vpop.permute.xlu0 %774
      %v777 = vsel %vm282, %v773, 0
      %v780 = vsel %vm364, %v775, 0
      %782 = vmatprep.subr.bf16.mxu0 0
      %783 = vmatpush1.bf16.msra.mxu0 %v780
      %784 = vmatprep.subr.bf16.mxu0 0
      %785 = vmatpush1.bf16.msra.mxu0 0
      %786 = vmatprep.subr.bf16.mxu0 0
      %787 = vmatpush1.bf16.msra.mxu0 0
      %788 = vmatprep.subr.bf16.mxu0 0
      %789 = vmatpush1.bf16.msra.mxu0 0
      %790 = vmatprep.subr.bf16.mxu0 0
      %791 = vmatpush1.bf16.msra.mxu0 0
      %792 = vmatprep.subr.bf16.mxu0 0
      %793 = vmatpush1.bf16.msra.mxu0 0
      %794 = vmatprep.subr.bf16.mxu0 0
      %795 = vmatpush1.bf16.msra.mxu0 0
      %796 = vmatprep.subr.bf16.mxu0 0
      %797 = vmatpush1.bf16.msra.mxu0 0
      %798 = vmatprep.subr.bf16.mxu0 0
      %799 = vmatpush1.bf16.msra.mxu0 0
      %800 = vmatprep.subr.bf16.mxu0 0
      %801 = vmatpush1.bf16.msra.mxu0 0
      %802 = vmatprep.subr.bf16.mxu0 0
      %803 = vmatpush1.bf16.msra.mxu0 0
      %804 = vmatprep.subr.bf16.mxu0 0
      %805 = vmatpush1.bf16.msra.mxu0 0
      %806 = vmatprep.subr.bf16.mxu0 0
      %807 = vmatpush1.bf16.msra.mxu0 0
      %808 = vmatprep.subr.bf16.mxu0 0
      %809 = vmatpush1.bf16.msra.mxu0 0
      %810 = vmatprep.subr.bf16.mxu0 0
      %811 = vmatpush1.bf16.msra.mxu0 0
      %812 = vmatprep.subr.bf16.mxu0 0
      %813 = vmatpush1.bf16.msra.mxu0 0
      %814 = vmatprep.mubr.bf16.mxu0 0
      %815 = vmatmul.mubr.bf16.gmra.mrb[0].mxu0 %v777
      %v816 = vpop.f32.mrb[0].mxu0
      %v817 = vadd.f32 0.0, %v816
      %v818 = vpop.f32.mrb[0].mxu0
      %v819 = vpop.f32.mrb[0].mxu0
      %v820 = vpop.f32.mrb[0].mxu0
      %821 = vdwg.mxu0
      %v822 = vadd.f32 %v772, %v817
      %823 = vst.msk [vmem:[%s765] sm:$0xff] %vm282, %v822
      %824 = vst.msk [vmem:[%s740] sm:$0xff] %vm351, %v745
      // Predicated region
      $region37: #{transformer_model_forward.7} parent=31 // pred_check
        %p825 = pneg %p261
      $region38: #{transformer_model_forward.7} parent=31 // pred_check_branch
        %827 = sbr.rel (%p825) target = $region40
      $region39: #{transformer_model_forward.7} parent=31 // pred_region
        %v828 = vld [vmem:[#allocation4] sm:$0xff]
        %v829 = vld [vmem:[#allocation3] sm:$0xff]
        %v830 = vrcp.pop %v829
        %832 = vset.pattern.permute.xlu0 0
        %833 = vperm.xlu0 %832, %v830
        %v834 = vpop.permute.xlu0 %833
        %v836 = vmul.f32 %v828, %v834
        %v837 = vld [vmem:[%s492] sm:$0xff]
        %v838 = vld [vmem:[%s484] sm:$0xff]
        %v839 = vrcp.pop %v838
        %841 = vset.pattern.permute.xlu0 0
        %842 = vperm.xlu0 %841, %v839
        %v843 = vpop.permute.xlu0 %842
        %v845 = vmul.f32 %v837, %v843
        %v846 = vld [vmem:[%s630] sm:$0xff]
        %v847 = vld [vmem:[%s622] sm:$0xff]
        %v848 = vrcp.pop %v847
        %850 = vset.pattern.permute.xlu0 0
        %851 = vperm.xlu0 %850, %v848
        %v852 = vpop.permute.xlu0 %851
        %v854 = vmul.f32 %v846, %v852
        %v855 = vld [vmem:[%s765] sm:$0xff]
        %v856 = vld [vmem:[%s757] sm:$0xff]
        %v857 = vrcp.pop %v856
        %859 = vset.pattern.permute.xlu0 0
        %860 = vperm.xlu0 %859, %v857
        %v861 = vpop.permute.xlu0 %860
        %v863 = vmul.f32 %v855, %v861
        %865 = vrot.lane.b32.xlu0 %v845, 8
        %v866 = vpop.permute.xlu0 %865
        %869 = vrot.lane.b32.xlu0 %v854, 16
        %v870 = vpop.permute.xlu0 %869
        %873 = vrot.lane.b32.xlu0 %v863, 24
        %v874 = vpop.permute.xlu0 %873
        %v876 = vsel %vm282, %v836, %v866
        %vm877 = vcmask 130048
        %v878 = vsel %vm877, %v876, %v870
        %vm879 = vcmask 195584
        %v880 = vsel %vm879, %v878, %v874
        %v881 = vpack.c.bf16 %v880, %v880
        %vm882 = vcmask 257024
        %883 = vst.msk [vmem:[%s259] sm:$0xf] %vm882, %v881
      $region40: #{transformer_model_forward.7} parent=31 // pred_fallthru
        _
      %p884 = scmp.lt.s32.totalorder %s19, 1
      %s885 = scalar_select %p884, %s19, 1
      %p886 = scmp.lt.s32.totalorder %s20, 0
      %s887 = scalar_select %p886, %s20, 0
      %s888 = sadd.s32 %s887, %s885
      %s889 = smul.addr %s888, 4
      %s890 = scalar_lea.vmem %s3, %s889
      // Predicated region
      $region41: #{transformer_model_forward.7} parent=31 // pred_check
        %p891 = pneg %p137
      $region42: #{transformer_model_forward.7} parent=31 // pred_check_branch
        %893 = sbr.rel (%p891) target = $region44
      $region43: #{transformer_model_forward.7} parent=31 // pred_region
        _
      $region44: #{transformer_model_forward.7} parent=31 // pred_fallthru
        _
    $region32: #{transformer_model_forward.7} parent=5 // pred_fallthru
      _
    %p894 = scmp.le.s32.totalorder 2, %s9
    // Predicated region
    $region45: #{transformer_model_forward.7} parent=5 // pred_check
      %p895 = pneg %p894
    $region46: #{transformer_model_forward.7} parent=5 // pred_check_branch
      %897 = sbr.rel (%p895) target = $region48
    $region47: #{transformer_model_forward.7} parent=5 // pred_region
      %s898 = ssub.s32 %s9, 2
      // Predicated region
      $region49: #{transformer_model_forward.7} parent=47 // pred_check
        %p899 = pneg %p143
      $region50: #{transformer_model_forward.7} parent=47 // pred_check_branch
        %901 = sbr.rel (%p899) target = $region52
      $region51: #{transformer_model_forward.7} parent=47 // pred_region
        %p902 = scmp.lt.s32.totalorder %s22, 1
        %s903 = scalar_select %p902, %s22, 1
        %p904 = scmp.lt.s32.totalorder %s23, 0
        %s905 = scalar_select %p904, %s23, 0
        %s906 = sadd.s32 %s905, %s903
        %s907 = smul.addr %s906, 4
        %s908 = scalar_lea.vmem %s3, %s907
      $region52: #{transformer_model_forward.7} parent=47 // pred_fallthru
        _
    $region48: #{transformer_model_forward.7} parent=5 // pred_fallthru
      _
  $region6: #{transformer_model_forward.7} parent=0 // loop_footer
    %s13 = sadd.s32 1, %s9
  $region7: #{transformer_model_forward.7} parent=0 // loop_footer_branch
    %8 = sbr.rel target = $region3
  $region8: #{transformer_model_forward.7} parent=0 // loop_exit
    _

</llo_original>
